<compile_context>
chip_gen: v7x
topology: tpu7x:2x2x1
jax: 0.10.0
libtpu: 0.0.40
codegen_flags: <defaults>
</compile_context>

<pallas_src>
import math
import functools

import jax
import jax.numpy as jnp
from jax.experimental import pallas as pl
from jax.experimental.pallas import tpu as pltpu

_GELU_C1 = math.sqrt(2.0 / math.pi)
_GELU_C2 = _GELU_C1 * 0.044715


def mlp_kernel(x_ref, w1_ref, b1_ref, w2_ref, b2_ref, o_ref, acc_ref):
    # x_ref : (TILE_M, C)   streamed token tile (same tile across the h axis)
    # w1_ref: (C, TILE_H)   c_fc weight block
    # b1_ref: (1, TILE_H)   c_fc bias block
    # w2_ref: (TILE_H, C)   c_proj weight block
    # b2_ref: (1, C)        c_proj bias (always resident)
    # o_ref : (TILE_M, C)   output tile (written once, at the last h step)
    # acc_ref: (TILE_M, C)  f32 VMEM accumulator for the c_proj reduction
    h_idx = pl.program_id(1)

    @pl.when(h_idx == 0)
    def _():
        acc_ref[...] = jnp.zeros_like(acc_ref)

    # c_fc block: x @ W1[:, hblk] + b1[hblk]   (MXU, f32 accumulation)
    h = jnp.dot(x_ref[...], w1_ref[...], preferred_element_type=jnp.float32)
    h = h + b1_ref[...].astype(jnp.float32)

    # tanh-GELU (matches nn.GELU(approximate='tanh')); constants folded,
    # tanh goes to the EUP slot, math stays in f32.
    inner = h * (_GELU_C1 + _GELU_C2 * (h * h))
    g = 0.5 * h * (1.0 + jnp.tanh(inner))

    # c_proj partial product accumulated over hidden blocks.
    acc_ref[...] += jnp.dot(g.astype(w2_ref.dtype), w2_ref[...],
                            preferred_element_type=jnp.float32)

    @pl.when(h_idx == pl.num_programs(1) - 1)
    def _():
        o_ref[...] = (acc_ref[...] + b2_ref[...].astype(jnp.float32)
                      ).astype(o_ref.dtype)


def _vmem_budget_bytes() -> int:
    """Generation-aware VMEM budget (~82% of per-core capacity)."""
    try:
        cap = int(pltpu.get_tpu_info().vmem_capacity_bytes)
    except Exception:
        cap = 64 * 1024 * 1024  # conservative fallback (v7x per-core size)
    return int(cap * 0.82)


def _choose_tiles(M, C, H, itemsize, budget, tile_m, tile_h):
    # Token tile: 512 rows when C is small (memory-bound regime), 256 for
    # large-C MXU-bound cases; full M when M is small.
    if tile_m is None:
        tile_m = 512 if C <= 1024 else 256
    tm = tile_m if M >= tile_m else M

    if tile_h is not None:
        th = tile_h if (0 < tile_h <= H and H % tile_h == 0) else H
        return tm, th

    def fits(th, n_weight_bufs):
        w_bytes = 2 * C * th * itemsize * n_weight_bufs      # W1 + W2 blocks
        b_bytes = 2 * (th + C) * itemsize                    # b1 + b2
        streams = 2 * 2 * tm * C * itemsize                  # x/out, double-buffered
        scratch = tm * C * 4 + 2 * tm * th * 4               # f32 acc + hidden temps
        return w_bytes + b_bytes + streams + scratch <= budget

    if fits(H, 1):           # fully resident weights, single-buffered
        return tm, H
    for th in (4096, 2048, 1024, 512, 256, 128):
        if th < H and H % th == 0 and fits(th, 2):
            return tm, th
    return tm, H


def _resident_spec(shape, index_map):
    # Constant index_map -> a single VMEM buffer suffices (no double buffer).
    try:
        return pl.BlockSpec(shape, index_map, pipeline_mode=pl.Buffered(1))
    except TypeError:
        return pl.BlockSpec(shape, index_map)


@functools.partial(jax.jit, static_argnames=("tile_m", "tile_h"))
def mlp_forward(x, w1, b1, w2, b2, *, tile_m=None, tile_h=None):
    """x: (B, T, C) -> (B, T, C). Weights in (in_features, out_features) layout."""
    B, T, C = x.shape
    H = w1.shape[1]
    M = B * T
    out_dtype = x.dtype
    compute_dtype = w1.dtype

    x2d = x.reshape(M, C)
    if x2d.dtype != compute_dtype:   # avoid mixed f32 x bf16 dot in the kernel
        x2d = x2d.astype(compute_dtype)

    budget = _vmem_budget_bytes()
    itemsize = jnp.dtype(compute_dtype).itemsize
    tm, th = _choose_tiles(M, C, H, itemsize, budget, tile_m, tile_h)

    m_tiles = pl.cdiv(M, tm)          # no wrapper-side pad; Pallas masks the tail
    h_tiles = H // th
    weights_resident = (h_tiles == 1)

    def wspec(shape, index_map):
        return _resident_spec(shape, index_map) if weights_resident \
            else pl.BlockSpec(shape, index_map)

    cost = pl.CostEstimate(
        flops=4 * M * C * H,                              # two matmuls: 2*M*C*H each
        transcendentals=M * H,                            # one tanh per hidden elem
        bytes_accessed=(2 * M * C * itemsize              # x stream + out stream
                        + (1 if weights_resident else m_tiles) * 2 * C * H * itemsize
                        + (H + C) * itemsize),
    )

    out = pl.pallas_call(
        mlp_kernel,
        out_shape=jax.ShapeDtypeStruct((M, C), out_dtype),
        grid=(m_tiles, h_tiles),
        in_specs=[
            pl.BlockSpec((tm, C), lambda i, h: (i, 0)),        # streamed x tile
            wspec((C, th), lambda i, h: (0, h)),               # W1 block
            wspec((1, th), lambda i, h: (0, h)),               # b1 block
            wspec((th, C), lambda i, h: (h, 0)),               # W2 block
            _resident_spec((1, C), lambda i, h: (0, 0)),       # b2 (always const)
        ],
        out_specs=pl.BlockSpec((tm, C), lambda i, h: (i, 0)),
        scratch_shapes=[pltpu.VMEM((tm, C), jnp.float32)],     # c_proj accumulator
        compiler_params=pltpu.CompilerParams(
            dimension_semantics=("parallel", "arbitrary"),
            vmem_limit_bytes=budget,
        ),
        cost_estimate=cost,
    )(x2d, w1, b1.reshape(1, H), w2, b2.reshape(1, C))

    return out.reshape(B, T, C)


def init_params(key, n_embd, dtype=jnp.float32):
    """nn.Linear-style init; weights returned in (in_features, out_features) layout."""
    hidden = 4 * n_embd
    k1, k2, k3, k4 = jax.random.split(key, 4)
    bound_fc = 1.0 / math.sqrt(n_embd)
    bound_proj = 1.0 / math.sqrt(hidden)
    w1 = jax.random.uniform(k1, (n_embd, hidden), dtype, -bound_fc, bound_fc)
    b1 = jax.random.uniform(k2, (hidden,), dtype, -bound_fc, bound_fc)
    w2 = jax.random.uniform(k3, (hidden, n_embd), dtype, -bound_proj, bound_proj)
    b2 = jax.random.uniform(k4, (n_embd,), dtype, -bound_proj, bound_proj)
    return w1, b1, w2, b2


def mlp_reference(x, w1, b1, w2, b2):
    hp = jax.lax.Precision.HIGHEST
    h = jnp.dot(x, w1, precision=hp) + b1
    g = 0.5 * h * (1.0 + jnp.tanh(_GELU_C1 * (h + 0.044715 * h ** 3)))
    return jnp.dot(g, w2, precision=hp) + b2


if __name__ == "__main__":
    key = jax.random.PRNGKey(0)
    # B*T = 640 tokens -> two token tiles (the second one partial/masked);
    # C = 128, hidden = 512 -> exercises real (8,128) tiling.
    B, T, C = 4, 160, 128
    kx, kp = jax.random.split(key)
    x = jax.random.normal(kx, (B, T, C), jnp.float32)
    w1, b1, w2, b2 = init_params(kp, C)

    ref = mlp_reference(x, w1, b1, w2, b2)

    # Auto tiling: weights fully resident, single hidden block.
    out = mlp_forward(x, w1, b1, w2, b2)
    jax.block_until_ready(out)
    assert out.shape == (B, T, C)
    assert jnp.allclose(out, ref, atol=1e-4, rtol=1e-4)

    # Forced hidden-dim blocking: exercises the f32 accumulator / @pl.when path.
    out_blk = mlp_forward(x, w1, b1, w2, b2, tile_h=128)
    jax.block_until_ready(out_blk)
    assert jnp.allclose(out_blk, ref, atol=1e-4, rtol=1e-4)

    print("KERNEL_OK")
</pallas_src>

<mosaic_0001>
module attributes {stable_mosaic.version = 11 : i64} {
  func.func @mlp_kernel(%arg0: i32, %arg1: i32, %arg2: memref<512x128xf32, #tpu.memory_space<vmem>>, %arg3: memref<128x512xf32, #tpu.memory_space<vmem>>, %arg4: memref<1x512xf32, #tpu.memory_space<vmem>>, %arg5: memref<512x128xf32, #tpu.memory_space<vmem>>, %arg6: memref<1x128xf32, #tpu.memory_space<vmem>>, %arg7: memref<512x128xf32, #tpu.memory_space<vmem>>, %arg8: memref<512x128xf32, #tpu.memory_space<vmem>>) attributes {dimension_semantics = [#tpu.dimension_semantics<parallel>, #tpu.dimension_semantics<arbitrary>], iteration_bounds = array<i64: 2, 1>, scalar_prefetch = 0 : i64, scratch_operands = 1 : i64, tpu.core_type = #tpu.core_type<tc>, window_params = [{transform_indices = @transform_0, window_bounds = array<i64: 512, 128>}, {pipeline_mode = #tpu.pipeline_mode<synchronous>, transform_indices = @transform_1, window_bounds = array<i64: 128, 512>}, {pipeline_mode = #tpu.pipeline_mode<synchronous>, transform_indices = @transform_2, window_bounds = array<i64: 1, 512>}, {pipeline_mode = #tpu.pipeline_mode<synchronous>, transform_indices = @transform_3, window_bounds = array<i64: 512, 128>}, {pipeline_mode = #tpu.pipeline_mode<synchronous>, transform_indices = @transform_4, window_bounds = array<i64: 1, 128>}, {transform_indices = @transform_5, window_bounds = array<i64: 512, 128>}]} {
    %c0_i32 = arith.constant 0 : i32
    %0 = arith.cmpi eq, %arg1, %c0_i32 : i32
    %1 = arith.extui %0 : i1 to i32
    %c0_i32_0 = arith.constant 0 : i32
    %2 = arith.cmpi ne, %1, %c0_i32_0 : i32
    scf.if %2 {
      %cst_19 = arith.constant 0.000000e+00 : f32
      %29 = vector.broadcast %cst_19 : f32 to vector<512x128xf32>
      %c0_20 = arith.constant 0 : index
      %c0_21 = arith.constant 0 : index
      %30 = vector.load %arg8[%c0_20, %c0_21] : memref<512x128xf32, #tpu.memory_space<vmem>>, vector<512x128xf32>
      tpu.vector_store %arg8[%c0_20, %c0_21], %29 {strides = array<i32>} : memref<512x128xf32, #tpu.memory_space<vmem>>, vector<512x128xf32>,
    } else {
    }
    %c0 = arith.constant 0 : index
    %c0_1 = arith.constant 0 : index
    %3 = vector.load %arg2[%c0, %c0_1] : memref<512x128xf32, #tpu.memory_space<vmem>>, vector<512x128xf32>
    %c0_2 = arith.constant 0 : index
    %c0_3 = arith.constant 0 : index
    %4 = vector.load %arg3[%c0_2, %c0_3] : memref<128x512xf32, #tpu.memory_space<vmem>>, vector<128x512xf32>
    %cst = arith.constant dense<0.000000e+00> : vector<512x512xf32>
    %5 = tpu.matmul %3, %4, %cst {dimension_numbers = #tpu.dot_dimension_numbers<[1], [0], [0], [1], [0, 0, 1, 1], [], []>} : vector<512x128xf32>, vector<128x512xf32>, vector<512x512xf32> -> vector<512x512xf32>
    %c0_4 = arith.constant 0 : index
    %c0_5 = arith.constant 0 : index
    %6 = vector.load %arg4[%c0_4, %c0_5] : memref<1x512xf32, #tpu.memory_space<vmem>>, vector<1x512xf32>
    %7 = vector.broadcast %6 : vector<1x512xf32> to vector<512x512xf32>
    %8 = arith.addf %5, %7 : vector<512x512xf32>
    %9 = arith.mulf %8, %8 : vector<512x512xf32>
    %cst_6 = arith.constant 0.0356774069 : f32
    %10 = vector.broadcast %cst_6 : f32 to vector<512x512xf32>
    %11 = arith.mulf %10, %9 : vector<512x512xf32>
    %cst_7 = arith.constant 0.797884583 : f32
    %12 = vector.broadcast %cst_7 : f32 to vector<512x512xf32>
    %13 = arith.addf %12, %11 : vector<512x512xf32>
    %14 = arith.mulf %8, %13 : vector<512x512xf32>
    %cst_8 = arith.constant 5.000000e-01 : f32
    %15 = vector.broadcast %cst_8 : f32 to vector<512x512xf32>
    %16 = arith.mulf %15, %8 : vector<512x512xf32>
    %17 = math.tanh %14 : vector<512x512xf32>
    %cst_9 = arith.constant 1.000000e+00 : f32
    %18 = vector.broadcast %cst_9 : f32 to vector<512x512xf32>
    %19 = arith.addf %18, %17 : vector<512x512xf32>
    %20 = arith.mulf %16, %19 : vector<512x512xf32>
    %c0_10 = arith.constant 0 : index
    %c0_11 = arith.constant 0 : index
    %21 = vector.load %arg8[%c0_10, %c0_11] : memref<512x128xf32, #tpu.memory_space<vmem>>, vector<512x128xf32>
    %c0_12 = arith.constant 0 : index
    %c0_13 = arith.constant 0 : index
    %22 = vector.load %arg5[%c0_12, %c0_13] : memref<512x128xf32, #tpu.memory_space<vmem>>, vector<512x128xf32>
    %cst_14 = arith.constant dense<0.000000e+00> : vector<512x128xf32>
    %23 = tpu.matmul %20, %22, %cst_14 {dimension_numbers = #tpu.dot_dimension_numbers<[1], [0], [0], [1], [0, 0, 1, 1], [], []>} : vector<512x512xf32>, vector<512x128xf32>, vector<512x128xf32> -> vector<512x128xf32>
    %24 = arith.addf %21, %23 : vector<512x128xf32>
    %c0_15 = arith.constant 0 : index
    %c0_16 = arith.constant 0 : index
    %25 = vector.load %arg8[%c0_15, %c0_16] : memref<512x128xf32, #tpu.memory_space<vmem>>, vector<512x128xf32>
    tpu.vector_store %arg8[%c0_15, %c0_16], %24 {strides = array<i32>} : memref<512x128xf32, #tpu.memory_space<vmem>>, vector<512x128xf32>,
    %c0_i32_17 = arith.constant 0 : i32
    %26 = arith.cmpi eq, %arg1, %c0_i32_17 : i32
    %27 = arith.extui %26 : i1 to i32
    %c0_i32_18 = arith.constant 0 : i32
    %28 = arith.cmpi ne, %27, %c0_i32_18 : i32
    scf.if %28 {
      %c0_19 = arith.constant 0 : index
      %c0_20 = arith.constant 0 : index
      %29 = vector.load %arg8[%c0_19, %c0_20] : memref<512x128xf32, #tpu.memory_space<vmem>>, vector<512x128xf32>
      %c0_21 = arith.constant 0 : index
      %c0_22 = arith.constant 0 : index
      %30 = vector.load %arg6[%c0_21, %c0_22] : memref<1x128xf32, #tpu.memory_space<vmem>>, vector<1x128xf32>
      %31 = vector.broadcast %30 : vector<1x128xf32> to vector<512x128xf32>
      %32 = arith.addf %29, %31 : vector<512x128xf32>
      %c0_23 = arith.constant 0 : index
      %c0_24 = arith.constant 0 : index
      %33 = vector.load %arg7[%c0_23, %c0_24] : memref<512x128xf32, #tpu.memory_space<vmem>>, vector<512x128xf32>
      tpu.vector_store %arg7[%c0_23, %c0_24], %32 {strides = array<i32>} : memref<512x128xf32, #tpu.memory_space<vmem>>, vector<512x128xf32>,
    } else {
    }
    return
  }
  func.func @transform_0(%arg0: i32, %arg1: i32) -> (i32, i32) {
    %c0_i32 = arith.constant 0 : i32
    %c0_i32_0 = arith.constant 0 : i32
    return %arg0, %c0_i32 : i32, i32
  }
  func.func @transform_1(%arg0: i32, %arg1: i32) -> (i32, i32) {
    %c0_i32 = arith.constant 0 : i32
    %c0_i32_0 = arith.constant 0 : i32
    return %c0_i32, %arg1 : i32, i32
  }
  func.func @transform_2(%arg0: i32, %arg1: i32) -> (i32, i32) {
    %c0_i32 = arith.constant 0 : i32
    %c0_i32_0 = arith.constant 0 : i32
    return %c0_i32, %arg1 : i32, i32
  }
  func.func @transform_3(%arg0: i32, %arg1: i32) -> (i32, i32) {
    %c0_i32 = arith.constant 0 : i32
    %c0_i32_0 = arith.constant 0 : i32
    return %arg1, %c0_i32 : i32, i32
  }
  func.func @transform_4(%arg0: i32, %arg1: i32) -> (i32, i32) {
    %c0_i32 = arith.constant 0 : i32
    %c0_i32_0 = arith.constant 0 : i32
    %c0_i32_1 = arith.constant 0 : i32
    return %c0_i32, %c0_i32_0 : i32, i32
  }
  func.func @transform_5(%arg0: i32, %arg1: i32) -> (i32, i32) {
    %c0_i32 = arith.constant 0 : i32
    %c0_i32_0 = arith.constant 0 : i32
    return %arg0, %c0_i32 : i32, i32
  }
}

</mosaic_0001>

<llo_original>
// kernel: mlp_forward.1
$region0: #{mlp_forward.1}
  #allocation0 [shape = 'u32[]', space=smem, size = 0x4, offset = 0x4, fixed_abs, tag = 'smem constant byte address 0x4 - core index']
  #allocation1 [shape = 'u32[144,128]{1,0:T(1,128)}', space=vmem, size = 0x12000, scoped, tag = 'internal scratch']
  #allocation2 [shape = 'f32[512,128]{1,0:T(8,128)}', space=vmem, size = 0x40000, scoped, tag = 'scratch operand']
  %s0 = inlined_call_operand.hbm [shape: f32[640,128], index: 0, kind: input, shape index: {}]
  %s1 = inlined_call_operand.hbm [shape: f32[128,512], index: 1, kind: input, shape index: {}]
  %s2 = inlined_call_operand.vmem [shape: f32[1,512], index: 2, kind: input, shape index: {}]
  %s3 = inlined_call_operand.hbm [shape: f32[512,128], index: 3, kind: input, shape index: {}]
  %s4 = inlined_call_operand.vmem [shape: f32[1,128], index: 4, kind: input, shape index: {}]
  %s5 = inlined_call_operand.hbm [shape: f32[640,128], index: 5, kind: output, shape index: {}]
  %s6 = sld [smem:[#allocation0]]
  $region73: #{mlp_forward.1} parent=0
    _
  %s8 = ssub.s32 1, %s6
  %s9 = scalar_select 0, %s8, %s6
  $region1: #{mlp_forward.1} parent=0
    #allocation3 [shape = 'u8[524288]{0}', space=vmem, size = 0x80000, scoped, tag = 'input window, operand 0']
    #allocation4 [shape = 's32[2]{0}', space=sflag, size = 0x8, scoped, tag = 'scoped memory for mlp_forward.1']
    #allocation5 [shape = 's32[2]{0}', space=sflag, size = 0x8, scoped, tag = 'scoped memory for mlp_forward.1']
    #allocation6 [shape = 'u8[262144]{0}', space=vmem, size = 0x40000, scoped, tag = 'input window, operand 1, single buffered']
    #allocation7 [shape = 's32[1]{0}', space=sflag, size = 0x4, scoped, tag = 'scoped memory for mlp_forward.1']
    #allocation8 [shape = 'u8[262144]{0}', space=vmem, size = 0x40000, scoped, tag = 'input window, operand 3, single buffered']
    #allocation9 [shape = 'u8[524288]{0}', space=vmem, size = 0x80000, scoped, tag = 'output window, operand 0']
    %10 = vsyncpa [#allocation4], 0
    %s11 = scalar_lea.sflag [#allocation4], 1
    %12 = vsyncpa %s11, 0
    %13 = vsyncpa [#allocation7], 0
    %14 = vsyncpa [#allocation5], 0
    %s15 = scalar_lea.sflag [#allocation5], 1
    %16 = vsyncpa %s15, 0
    loop: start=0, step=1, limit=4
    $region2: #{mlp_forward.1} parent=1 // loop_pre_header
      _
    $region3: #{mlp_forward.1} parent=1 // loop_header
      %s18 = sphi 0, %s22
      %p19 = scmp.ge.s32.totalorder %s18, 4
      %s25 = sphi 0, %s37
      %s26 = sphi 0, %s33
      %s27 = sphi 0, %s25
      %s28 = sphi 0, %s26
      %s29 = sphi 0, %s27
      %s30 = sphi 0, %s28
      %s40 = sphi 0, %s42
      %s43 = sphi 0, %s40
      %s44 = sphi 0, %s43
      %s60 = sphi 0, %s44
      %s66 = sphi 0, %s68
      %s69 = sphi 0, %s66
      %s70 = sphi 0, %s69
      %s86 = sphi 0, %s70
      %s92 = sphi 0, %s94
      %s95 = sphi 0, %s92
      %s96 = sphi 0, %s95
      %s112 = sphi 0, %s96
      %s118 = sphi 0, %s120
      %s121 = sphi 0, %s118
      %s122 = sphi 0, %s121
      %s138 = sphi 0, %s122
      %s142 = sphi 0, %s142
      %s144 = sphi 0, %s142
      %s145 = sphi 0, %s144
      %s159 = sphi 0, %s145
      %s165 = sphi 0, %s167
      %s168 = sphi 0, %s165
      %s169 = sphi 0, %s168
      %s185 = sphi 0, %s169
    $region4: #{mlp_forward.1} parent=1 // loop_header_branch
      %21 = sbr.rel (%p19) target = $region8
    $region5: #{mlp_forward.1} parent=1 // loop_body
      %s23 = ssub.s32 %s18, 1
      %s24 = ssub.s32 %s18, 2
      %s31 = sadd.s32 1, %s26
      %p32 = scmp.ge.s32.totalorder %s31, 1
      %s33 = scalar_select %p32, 0, %s31
      %s34 = sadd.s32 1, %s25
      %s35 = scalar_select %p32, %s34, %s25
      %p36 = scmp.ge.s32.totalorder %s35, 2
      %s37 = scalar_select %p36, 0, %s35
      %s38 = ssub.s32 %s25, %s37
      %p39 = scmp.eq.s32.totalorder %s38, 0
      %s41 = sadd.s32 %s40, 1
      %s42 = scalar_select %p39, %s40, %s41
      %p45 = pneg %p39
      %p46 = scmp.eq.s32.totalorder %s18, 1
      %p47 = por %p45, %p46
      %p48 = scmp.ne.s32.totalorder %s40, %s43
      %p49 = scmp.eq.s32.totalorder %s18, 0
      %p50 = por %p48, %p49
      %p51 = scmp.ne.s32.totalorder %s40, %s43
      %p52 = scmp.eq.s32.totalorder %s23, 1
      %p53 = por %p51, %p52
      %p54 = scmp.ne.s32.totalorder %s43, %s44
      %p55 = scmp.eq.s32.totalorder %s23, 0
      %p56 = por %p54, %p55
      %p57 = scmp.ne.s32.totalorder %s43, %s44
      %p58 = scmp.eq.s32.totalorder %s24, 1
      %p59 = por %p57, %p58
      %p61 = scmp.ne.s32.totalorder %s44, %s60
      %p62 = scmp.eq.s32.totalorder %s24, 0
      %p63 = por %p61, %p62
      %s64 = ssub.s32 %s26, %s33
      %p65 = scmp.eq.s32.totalorder %s64, 0
      %s67 = sadd.s32 %s66, 1
      %s68 = scalar_select %p65, %s66, %s67
      %p71 = pneg %p65
      %p72 = scmp.eq.s32.totalorder %s18, 1
      %p73 = por %p71, %p72
      %p74 = scmp.ne.s32.totalorder %s66, %s69
      %p75 = scmp.eq.s32.totalorder %s18, 0
      %p76 = por %p74, %p75
      %p77 = scmp.ne.s32.totalorder %s66, %s69
      %p78 = scmp.eq.s32.totalorder %s23, 1
      %p79 = por %p77, %p78
      %p80 = scmp.ne.s32.totalorder %s69, %s70
      %p81 = scmp.eq.s32.totalorder %s23, 0
      %p82 = por %p80, %p81
      %p83 = scmp.ne.s32.totalorder %s69, %s70
      %p84 = scmp.eq.s32.totalorder %s24, 1
      %p85 = por %p83, %p84
      %p87 = scmp.ne.s32.totalorder %s70, %s86
      %p88 = scmp.eq.s32.totalorder %s24, 0
      %p89 = por %p87, %p88
      %s90 = ssub.s32 %s26, %s33
      %p91 = scmp.eq.s32.totalorder %s90, 0
      %s93 = sadd.s32 %s92, 1
      %s94 = scalar_select %p91, %s92, %s93
      %p97 = pneg %p91
      %p98 = scmp.eq.s32.totalorder %s18, 1
      %p99 = por %p97, %p98
      %p100 = scmp.ne.s32.totalorder %s92, %s95
      %p101 = scmp.eq.s32.totalorder %s18, 0
      %p102 = por %p100, %p101
      %p103 = scmp.ne.s32.totalorder %s92, %s95
      %p104 = scmp.eq.s32.totalorder %s23, 1
      %p105 = por %p103, %p104
      %p106 = scmp.ne.s32.totalorder %s95, %s96
      %p107 = scmp.eq.s32.totalorder %s23, 0
      %p108 = por %p106, %p107
      %p109 = scmp.ne.s32.totalorder %s95, %s96
      %p110 = scmp.eq.s32.totalorder %s24, 1
      %p111 = por %p109, %p110
      %p113 = scmp.ne.s32.totalorder %s96, %s112
      %p114 = scmp.eq.s32.totalorder %s24, 0
      %p115 = por %p113, %p114
      %s116 = ssub.s32 %s26, %s33
      %p117 = scmp.eq.s32.totalorder %s116, 0
      %s119 = sadd.s32 %s118, 1
      %s120 = scalar_select %p117, %s118, %s119
      %p123 = pneg %p117
      %p124 = scmp.eq.s32.totalorder %s18, 1
      %p125 = por %p123, %p124
      %p126 = scmp.ne.s32.totalorder %s118, %s121
      %p127 = scmp.eq.s32.totalorder %s18, 0
      %p128 = por %p126, %p127
      %p129 = scmp.ne.s32.totalorder %s118, %s121
      %p130 = scmp.eq.s32.totalorder %s23, 1
      %p131 = por %p129, %p130
      %p132 = scmp.ne.s32.totalorder %s121, %s122
      %p133 = scmp.eq.s32.totalorder %s23, 0
      %p134 = por %p132, %p133
      %p135 = scmp.ne.s32.totalorder %s121, %s122
      %p136 = scmp.eq.s32.totalorder %s24, 1
      %p137 = por %p135, %p136
      %p139 = scmp.ne.s32.totalorder %s122, %s138
      %p140 = scmp.eq.s32.totalorder %s24, 0
      %p141 = por %p139, %p140
      %s143 = sadd.s32 %s142, 1
      %p146 = scmp.eq.s32.totalorder %s18, 1
      %p147 = scmp.ne.s32.totalorder %s142, %s144
      %p148 = scmp.eq.s32.totalorder %s18, 0
      %p149 = por %p147, %p148
      %p150 = scmp.ne.s32.totalorder %s142, %s144
      %p151 = scmp.eq.s32.totalorder %s23, 1
      %p152 = por %p150, %p151
      %p153 = scmp.ne.s32.totalorder %s144, %s145
      %p154 = scmp.eq.s32.totalorder %s23, 0
      %p155 = por %p153, %p154
      %p156 = scmp.ne.s32.totalorder %s144, %s145
      %p157 = scmp.eq.s32.totalorder %s24, 1
      %p158 = por %p156, %p157
      %p160 = scmp.ne.s32.totalorder %s145, %s159
      %p161 = scmp.eq.s32.totalorder %s24, 0
      %p162 = por %p160, %p161
      %s163 = ssub.s32 %s25, %s37
      %p164 = scmp.eq.s32.totalorder %s163, 0
      %s166 = sadd.s32 %s165, 1
      %s167 = scalar_select %p164, %s165, %s166
      %p170 = pneg %p164
      %p171 = scmp.eq.s32.totalorder %s18, 1
      %p172 = por %p170, %p171
      %p173 = scmp.ne.s32.totalorder %s165, %s168
      %p174 = scmp.eq.s32.totalorder %s18, 0
      %p175 = por %p173, %p174
      %p176 = scmp.ne.s32.totalorder %s165, %s168
      %p177 = scmp.eq.s32.totalorder %s23, 1
      %p178 = por %p176, %p177
      %p179 = scmp.ne.s32.totalorder %s168, %s169
      %p180 = scmp.eq.s32.totalorder %s23, 0
      %p181 = por %p179, %p180
      %p182 = scmp.ne.s32.totalorder %s168, %s169
      %p183 = scmp.eq.s32.totalorder %s24, 1
      %p184 = por %p182, %p183
      %p186 = scmp.ne.s32.totalorder %s169, %s185
      %p187 = scmp.eq.s32.totalorder %s24, 0
      %p188 = por %p186, %p187
      %p189 = scmp.le.s32.totalorder 1, %s18
      %p190 = scmp.lt.s32.totalorder %s18, 3
      %p191 = pnand %p189, %p190
      %p192 = pneg %p191
      // Predicated region
      $region9: #{mlp_forward.1} parent=5 // pred_check
        _
      $region10: #{mlp_forward.1} parent=5 // pred_check_branch
        %194 = sbr.rel (%p191) target = $region12
      $region11: #{mlp_forward.1} parent=5 // pred_region
        %s195 = ssub.s32 %s18, 1
        // Predicated region
        $region13: #{mlp_forward.1} parent=11 // pred_check
          %p196 = pneg %p82
        $region14: #{mlp_forward.1} parent=11 // pred_check_branch
          %198 = sbr.rel (%p196) target = $region16
        $region15: #{mlp_forward.1} parent=11 // pred_region
          %s199 = smul.u32 4, %s28
          %s201 = ssub.s32 8192, 8192
          %202 = vsyncadd [#allocation7], %s201
          %s203 = smul.addr %s199, 128
          %s204 = scalar_lea.hbm %s1, %s203
          %s205 = sshll.u32 [#allocation6], 4
          %s206 = int_to_ptr.vmem [resolvable:$true] %s205
          %211 = dma.hbm_to_vmem [thread:$0]  %s204, 8192, %s206, [#allocation7], 512, 512, 32
        $region16: #{mlp_forward.1} parent=11 // pred_fallthru
          _
        // Predicated region
        $region17: #{mlp_forward.1} parent=11 // pred_check
          %p212 = pneg %p108
        $region18: #{mlp_forward.1} parent=11 // pred_check_branch
          %214 = sbr.rel (%p212) target = $region20
        $region19: #{mlp_forward.1} parent=11 // pred_region
          %s215 = smul.u32 4, %s28
          %p216 = scmp.lt.s32.totalorder %s215, 3
          %s217 = scalar_select %p216, %s215, 3
          %s218 = scalar_lea.vmem %s2, %s217
          %s219 = smul.u32 4, %s28
        $region20: #{mlp_forward.1} parent=11 // pred_fallthru
          _
        // Predicated region
        $region21: #{mlp_forward.1} parent=11 // pred_check
          %p220 = pneg %p134
        $region22: #{mlp_forward.1} parent=11 // pred_check_branch
          %222 = sbr.rel (%p220) target = $region24
        $region23: #{mlp_forward.1} parent=11 // pred_region
          %s223 = smul.u32 64, %s28
          %s225 = ssub.s32 8192, 8192
          %226 = vsyncadd [#allocation7], %s225
          %s227 = smul.addr %s223, 128
          %s228 = scalar_lea.hbm %s3, %s227
          %s229 = sshll.u32 [#allocation8], 4
          %s230 = int_to_ptr.vmem [resolvable:$true] %s229
          %235 = dma.hbm_to_vmem [thread:$0]  %s228, 8192, %s230, [#allocation7], 128, 128, 8
        $region24: #{mlp_forward.1} parent=11 // pred_fallthru
          _
        // Predicated region
        $region25: #{mlp_forward.1} parent=11 // pred_check
          %p236 = pneg %p155
        $region26: #{mlp_forward.1} parent=11 // pred_check_branch
          %238 = sbr.rel (%p236) target = $region28
        $region27: #{mlp_forward.1} parent=11 // pred_region
          _
        $region28: #{mlp_forward.1} parent=11 // pred_fallthru
          _
      $region12: #{mlp_forward.1} parent=5 // pred_fallthru
        _
      %p239 = scmp.lt.s32.totalorder %s18, 2
      // Predicated region
      $region29: #{mlp_forward.1} parent=5 // pred_check
        %p240 = pneg %p239
      $region30: #{mlp_forward.1} parent=5 // pred_check_branch
        %242 = sbr.rel (%p240) target = $region32
      $region31: #{mlp_forward.1} parent=5 // pred_region
        // Predicated region
        $region33: #{mlp_forward.1} parent=31 // pred_check
          %p243 = pneg %p50
        $region34: #{mlp_forward.1} parent=31 // pred_check_branch
          %245 = sbr.rel (%p243) target = $region36
        $region35: #{mlp_forward.1} parent=31 // pred_region
          %s246 = sand.u32 %s40, 1
          %s247 = scalar_lea.sflag [#allocation4], %s246
          %s248 = sand.u32 %s40, 1
          %s249 = smul.addr %s248, 512
          %s250 = scalar_lea.vmem [#allocation3], %s249
          %s251 = smul.u32 64, %s25
          %s252 = ssub.s32 80, %s251
          %p253 = scmp.lt.s32.totalorder %s252, 64
          %s254 = scalar_select %p253, %s252, 64
          %s255 = smul.u32 128, %s254
          %s257 = ssub.s32 8192, %s255
          %258 = vsyncadd %s247, %s257
          %p259 = scmp.ne.s32.totalorder 0, %s255
          %s260 = smul.addr %s251, 128
          %s261 = scalar_lea.hbm %s0, %s260
          %s262 = smul.u32 8, %s254
          %s263 = sshll.u32 %s250, 4
          %s264 = int_to_ptr.vmem [resolvable:$true] %s263
          %s265 = sshll.u32 %s262, 4
          %269 = dma.hbm_to_vmem [thread:$0]  (%p259), %s261, %s265, %s264, %s247, 128, 128, 8
        $region36: #{mlp_forward.1} parent=31 // pred_fallthru
          _
      $region32: #{mlp_forward.1} parent=5 // pred_fallthru
        _
      %p270 = scmp.le.s32.totalorder 1, %s18
      %p271 = scmp.lt.s32.totalorder %s18, 3
      %p272 = pnand %p270, %p271
      %p273 = pneg %p272
      // Predicated region
      $region37: #{mlp_forward.1} parent=5 // pred_check
        _
      $region38: #{mlp_forward.1} parent=5 // pred_check_branch
        %275 = sbr.rel (%p272) target = $region40
      $region39: #{mlp_forward.1} parent=5 // pred_region
        %s276 = ssub.s32 %s18, 1
        %s277 = sand.u32 %s43, 1
        %s278 = scalar_lea.sflag [#allocation4], %s277
        %s279 = sand.u32 %s43, 1
        %s280 = smul.addr %s279, 512
        %s281 = scalar_lea.vmem [#allocation3], %s280
        // Predicated region
        $region41: #{mlp_forward.1} parent=39 // pred_check
          %p282 = pneg %p56
        $region42: #{mlp_forward.1} parent=39 // pred_check_branch
          %284 = sbr.rel (%p282) target = $region44
        $region43: #{mlp_forward.1} parent=39 // pred_region
          %285 = dma.done %s278, 8192
        $region44: #{mlp_forward.1} parent=39 // pred_fallthru
          _
        // Predicated region
        $region45: #{mlp_forward.1} parent=39 // pred_check
          %p286 = pneg %p82
        $region46: #{mlp_forward.1} parent=39 // pred_check_branch
          %288 = sbr.rel (%p286) target = $region48
        $region47: #{mlp_forward.1} parent=39 // pred_region
          %289 = dma.done [#allocation7], 8192
        $region48: #{mlp_forward.1} parent=39 // pred_fallthru
          _
        // Predicated region
        $region49: #{mlp_forward.1} parent=39 // pred_check
          %p290 = pneg %p134
        $region50: #{mlp_forward.1} parent=39 // pred_check_branch
          %292 = sbr.rel (%p290) target = $region52
        $region51: #{mlp_forward.1} parent=39 // pred_region
          %293 = dma.done [#allocation7], 8192
        $region52: #{mlp_forward.1} parent=39 // pred_fallthru
          _
        %s294 = sand.u32 %s43, 1
        %s295 = scalar_lea.sflag [#allocation4], %s294
        %s296 = sand.u32 %s43, 1
        %s297 = smul.addr %s296, 512
        %s298 = scalar_lea.vmem [#allocation3], %s297
        %p299 = pneg %p56
        %p300 = pneg %p53
        %p301 = pneg %p82
        %p302 = pneg %p79
        %s303 = smul.u32 4, %s28
        %p304 = scmp.lt.s32.totalorder %s303, 3
        %s305 = scalar_select %p304, %s303, 3
        %s306 = scalar_lea.vmem %s2, %s305
        %p307 = pneg %p108
        %p308 = pneg %p105
        %p309 = pneg %p134
        %p310 = pneg %p131
        %p311 = pneg %p155
        %p312 = pneg %p152
        %p313 = pneg %p181
        %p314 = pneg %p178
        %s315 = sand.u32 %s168, 1
        %s316 = scalar_lea.sflag [#allocation5], %s315
        %s317 = sand.u32 %s168, 1
        %s318 = smul.addr %s317, 512
        %s319 = scalar_lea.vmem [#allocation9], %s318
        %s320 = smul.u32 64, %s27
        %s321 = ssub.s32 80, %s320
        %p322 = scmp.lt.s32.totalorder %s321, 64
        %s323 = scalar_select %p322, %s321, 64
        %s324 = smul.u32 128, %s323
        %s325 = smul.u32 4, %s28
        %s326 = smul.u32 4, %s28
        %p327 = scmp.lt.s32.totalorder %s326, 3
        %s328 = scalar_select %p327, %s326, 3
        %s329 = scalar_lea.vmem %s2, %s328
        %s330 = smul.u32 4, %s28
        %s331 = smul.u32 64, %s28
        %s332 = smul.u32 64, %s27
        %s333 = ssub.s32 80, %s332
        %p334 = scmp.lt.s32.totalorder %s333, 64
        %s335 = scalar_select %p334, %s333, 64
        %s336 = smul.u32 128, %s335
        %p337 = scmp.eq.s32.totalorder %s28, 0
        // Predicated region
        $region53: #{mlp_forward.1} parent=39 // pred_check
          %p338 = pneg %p337
        $region54: #{mlp_forward.1} parent=39 // pred_check_branch
          %340 = sbr.rel (%p338) target = $region56
        $region55: #{mlp_forward.1} parent=39 // pred_region
          %341 = vst [vmem:[#allocation2] sm:$0xff] 0.0
          %342 = vst [vmem:[#allocation2 + $0x8] sm:$0xff] 0.0
          %343 = vst [vmem:[#allocation2 + $0x10] sm:$0xff] 0.0
          %344 = vst [vmem:[#allocation2 + $0x18] sm:$0xff] 0.0
          %345 = vst [vmem:[#allocation2 + $0x20] sm:$0xff] 0.0
          %346 = vst [vmem:[#allocation2 + $0x28] sm:$0xff] 0.0
          %347 = vst [vmem:[#allocation2 + $0x30] sm:$0xff] 0.0
          %348 = vst [vmem:[#allocation2 + $0x38] sm:$0xff] 0.0
          %349 = vst [vmem:[#allocation2 + $0x40] sm:$0xff] 0.0
          %350 = vst [vmem:[#allocation2 + $0x48] sm:$0xff] 0.0
          %351 = vst [vmem:[#allocation2 + $0x50] sm:$0xff] 0.0
          %352 = vst [vmem:[#allocation2 + $0x58] sm:$0xff] 0.0
          %353 = vst [vmem:[#allocation2 + $0x60] sm:$0xff] 0.0
          %354 = vst [vmem:[#allocation2 + $0x68] sm:$0xff] 0.0
          %355 = vst [vmem:[#allocation2 + $0x70] sm:$0xff] 0.0
          %356 = vst [vmem:[#allocation2 + $0x78] sm:$0xff] 0.0
          %357 = vst [vmem:[#allocation2 + $0x80] sm:$0xff] 0.0
          %358 = vst [vmem:[#allocation2 + $0x88] sm:$0xff] 0.0
          %359 = vst [vmem:[#allocation2 + $0x90] sm:$0xff] 0.0
          %360 = vst [vmem:[#allocation2 + $0x98] sm:$0xff] 0.0
          %361 = vst [vmem:[#allocation2 + $0xa0] sm:$0xff] 0.0
          %362 = vst [vmem:[#allocation2 + $0xa8] sm:$0xff] 0.0
          %363 = vst [vmem:[#allocation2 + $0xb0] sm:$0xff] 0.0
          %364 = vst [vmem:[#allocation2 + $0xb8] sm:$0xff] 0.0
          %365 = vst [vmem:[#allocation2 + $0xc0] sm:$0xff] 0.0
          %366 = vst [vmem:[#allocation2 + $0xc8] sm:$0xff] 0.0
          %367 = vst [vmem:[#allocation2 + $0xd0] sm:$0xff] 0.0
          %368 = vst [vmem:[#allocation2 + $0xd8] sm:$0xff] 0.0
          %369 = vst [vmem:[#allocation2 + $0xe0] sm:$0xff] 0.0
          %370 = vst [vmem:[#allocation2 + $0xe8] sm:$0xff] 0.0
          %371 = vst [vmem:[#allocation2 + $0xf0] sm:$0xff] 0.0
          %372 = vst [vmem:[#allocation2 + $0xf8] sm:$0xff] 0.0
          %373 = vst [vmem:[#allocation2 + $0x100] sm:$0xff] 0.0
          %374 = vst [vmem:[#allocation2 + $0x108] sm:$0xff] 0.0
          %375 = vst [vmem:[#allocation2 + $0x110] sm:$0xff] 0.0
          %376 = vst [vmem:[#allocation2 + $0x118] sm:$0xff] 0.0
          %377 = vst [vmem:[#allocation2 + $0x120] sm:$0xff] 0.0
          %378 = vst [vmem:[#allocation2 + $0x128] sm:$0xff] 0.0
          %379 = vst [vmem:[#allocation2 + $0x130] sm:$0xff] 0.0
          %380 = vst [vmem:[#allocation2 + $0x138] sm:$0xff] 0.0
          %381 = vst [vmem:[#allocation2 + $0x140] sm:$0xff] 0.0
          %382 = vst [vmem:[#allocation2 + $0x148] sm:$0xff] 0.0
          %383 = vst [vmem:[#allocation2 + $0x150] sm:$0xff] 0.0
          %384 = vst [vmem:[#allocation2 + $0x158] sm:$0xff] 0.0
          %385 = vst [vmem:[#allocation2 + $0x160] sm:$0xff] 0.0
          %386 = vst [vmem:[#allocation2 + $0x168] sm:$0xff] 0.0
          %387 = vst [vmem:[#allocation2 + $0x170] sm:$0xff] 0.0
          %388 = vst [vmem:[#allocation2 + $0x178] sm:$0xff] 0.0
          %389 = vst [vmem:[#allocation2 + $0x180] sm:$0xff] 0.0
          %390 = vst [vmem:[#allocation2 + $0x188] sm:$0xff] 0.0
          %391 = vst [vmem:[#allocation2 + $0x190] sm:$0xff] 0.0
          %392 = vst [vmem:[#allocation2 + $0x198] sm:$0xff] 0.0
          %393 = vst [vmem:[#allocation2 + $0x1a0] sm:$0xff] 0.0
          %394 = vst [vmem:[#allocation2 + $0x1a8] sm:$0xff] 0.0
          %395 = vst [vmem:[#allocation2 + $0x1b0] sm:$0xff] 0.0
          %396 = vst [vmem:[#allocation2 + $0x1b8] sm:$0xff] 0.0
          %397 = vst [vmem:[#allocation2 + $0x1c0] sm:$0xff] 0.0
          %398 = vst [vmem:[#allocation2 + $0x1c8] sm:$0xff] 0.0
          %399 = vst [vmem:[#allocation2 + $0x1d0] sm:$0xff] 0.0
          %400 = vst [vmem:[#allocation2 + $0x1d8] sm:$0xff] 0.0
          %401 = vst [vmem:[#allocation2 + $0x1e0] sm:$0xff] 0.0
          %402 = vst [vmem:[#allocation2 + $0x1e8] sm:$0xff] 0.0
          %403 = vst [vmem:[#allocation2 + $0x1f0] sm:$0xff] 0.0
          %404 = vst [vmem:[#allocation2 + $0x1f8] sm:$0xff] 0.0
        $region56: #{mlp_forward.1} parent=39 // pred_fallthru
          _
        %v405 = vld [vmem:[%s281] sm:$0xff]
        %v406 = vld [vmem:[%s281 + $0x8] sm:$0xff]
        %v407 = vld [vmem:[%s281 + $0x10] sm:$0xff]
        %v408 = vld [vmem:[%s281 + $0x18] sm:$0xff]
        %v409 = vld [vmem:[%s281 + $0x20] sm:$0xff]
        %v410 = vld [vmem:[%s281 + $0x28] sm:$0xff]
        %v411 = vld [vmem:[%s281 + $0x30] sm:$0xff]
        %v412 = vld [vmem:[%s281 + $0x38] sm:$0xff]
        %v413 = vld [vmem:[%s281 + $0x40] sm:$0xff]
        %v414 = vld [vmem:[%s281 + $0x48] sm:$0xff]
        %v415 = vld [vmem:[%s281 + $0x50] sm:$0xff]
        %v416 = vld [vmem:[%s281 + $0x58] sm:$0xff]
        %v417 = vld [vmem:[%s281 + $0x60] sm:$0xff]
        %v418 = vld [vmem:[%s281 + $0x68] sm:$0xff]
        %v419 = vld [vmem:[%s281 + $0x70] sm:$0xff]
        %v420 = vld [vmem:[%s281 + $0x78] sm:$0xff]
        %v421 = vld [vmem:[%s281 + $0x80] sm:$0xff]
        %v422 = vld [vmem:[%s281 + $0x88] sm:$0xff]
        %v423 = vld [vmem:[%s281 + $0x90] sm:$0xff]
        %v424 = vld [vmem:[%s281 + $0x98] sm:$0xff]
        %v425 = vld [vmem:[%s281 + $0xa0] sm:$0xff]
        %v426 = vld [vmem:[%s281 + $0xa8] sm:$0xff]
        %v427 = vld [vmem:[%s281 + $0xb0] sm:$0xff]
        %v428 = vld [vmem:[%s281 + $0xb8] sm:$0xff]
        %v429 = vld [vmem:[%s281 + $0xc0] sm:$0xff]
        %v430 = vld [vmem:[%s281 + $0xc8] sm:$0xff]
        %v431 = vld [vmem:[%s281 + $0xd0] sm:$0xff]
        %v432 = vld [vmem:[%s281 + $0xd8] sm:$0xff]
        %v433 = vld [vmem:[%s281 + $0xe0] sm:$0xff]
        %v434 = vld [vmem:[%s281 + $0xe8] sm:$0xff]
        %v435 = vld [vmem:[%s281 + $0xf0] sm:$0xff]
        %v436 = vld [vmem:[%s281 + $0xf8] sm:$0xff]
        %v437 = vld [vmem:[%s281 + $0x100] sm:$0xff]
        %v438 = vld [vmem:[%s281 + $0x108] sm:$0xff]
        %v439 = vld [vmem:[%s281 + $0x110] sm:$0xff]
        %v440 = vld [vmem:[%s281 + $0x118] sm:$0xff]
        %v441 = vld [vmem:[%s281 + $0x120] sm:$0xff]
        %v442 = vld [vmem:[%s281 + $0x128] sm:$0xff]
        %v443 = vld [vmem:[%s281 + $0x130] sm:$0xff]
        %v444 = vld [vmem:[%s281 + $0x138] sm:$0xff]
        %v445 = vld [vmem:[%s281 + $0x140] sm:$0xff]
        %v446 = vld [vmem:[%s281 + $0x148] sm:$0xff]
        %v447 = vld [vmem:[%s281 + $0x150] sm:$0xff]
        %v448 = vld [vmem:[%s281 + $0x158] sm:$0xff]
        %v449 = vld [vmem:[%s281 + $0x160] sm:$0xff]
        %v450 = vld [vmem:[%s281 + $0x168] sm:$0xff]
        %v451 = vld [vmem:[%s281 + $0x170] sm:$0xff]
        %v452 = vld [vmem:[%s281 + $0x178] sm:$0xff]
        %v453 = vld [vmem:[%s281 + $0x180] sm:$0xff]
        %v454 = vld [vmem:[%s281 + $0x188] sm:$0xff]
        %v455 = vld [vmem:[%s281 + $0x190] sm:$0xff]
        %v456 = vld [vmem:[%s281 + $0x198] sm:$0xff]
        %v457 = vld [vmem:[%s281 + $0x1a0] sm:$0xff]
        %v458 = vld [vmem:[%s281 + $0x1a8] sm:$0xff]
        %v459 = vld [vmem:[%s281 + $0x1b0] sm:$0xff]
        %v460 = vld [vmem:[%s281 + $0x1b8] sm:$0xff]
        %v461 = vld [vmem:[%s281 + $0x1c0] sm:$0xff]
        %v462 = vld [vmem:[%s281 + $0x1c8] sm:$0xff]
        %v463 = vld [vmem:[%s281 + $0x1d0] sm:$0xff]
        %v464 = vld [vmem:[%s281 + $0x1d8] sm:$0xff]
        %v465 = vld [vmem:[%s281 + $0x1e0] sm:$0xff]
        %v466 = vld [vmem:[%s281 + $0x1e8] sm:$0xff]
        %v467 = vld [vmem:[%s281 + $0x1f0] sm:$0xff]
        %v468 = vld [vmem:[%s281 + $0x1f8] sm:$0xff]
        %v469 = vld [vmem:[#allocation6] sm:$0xff]
        %v470 = vld [vmem:[#allocation6 + $0x8] sm:$0xff]
        %v471 = vld [vmem:[#allocation6 + $0x10] sm:$0xff]
        %v472 = vld [vmem:[#allocation6 + $0x18] sm:$0xff]
        %v473 = vld [vmem:[#allocation6 + $0x20] sm:$0xff]
        %v474 = vld [vmem:[#allocation6 + $0x28] sm:$0xff]
        %v475 = vld [vmem:[#allocation6 + $0x30] sm:$0xff]
        %v476 = vld [vmem:[#allocation6 + $0x38] sm:$0xff]
        %v477 = vld [vmem:[#allocation6 + $0x40] sm:$0xff]
        %v478 = vld [vmem:[#allocation6 + $0x48] sm:$0xff]
        %v479 = vld [vmem:[#allocation6 + $0x50] sm:$0xff]
        %v480 = vld [vmem:[#allocation6 + $0x58] sm:$0xff]
        %v481 = vld [vmem:[#allocation6 + $0x60] sm:$0xff]
        %v482 = vld [vmem:[#allocation6 + $0x68] sm:$0xff]
        %v483 = vld [vmem:[#allocation6 + $0x70] sm:$0xff]
        %v484 = vld [vmem:[#allocation6 + $0x78] sm:$0xff]
        %v485 = vld [vmem:[#allocation6 + $0x80] sm:$0xff]
        %v486 = vld [vmem:[#allocation6 + $0x88] sm:$0xff]
        %v487 = vld [vmem:[#allocation6 + $0x90] sm:$0xff]
        %v488 = vld [vmem:[#allocation6 + $0x98] sm:$0xff]
        %v489 = vld [vmem:[#allocation6 + $0xa0] sm:$0xff]
        %v490 = vld [vmem:[#allocation6 + $0xa8] sm:$0xff]
        %v491 = vld [vmem:[#allocation6 + $0xb0] sm:$0xff]
        %v492 = vld [vmem:[#allocation6 + $0xb8] sm:$0xff]
        %v493 = vld [vmem:[#allocation6 + $0xc0] sm:$0xff]
        %v494 = vld [vmem:[#allocation6 + $0xc8] sm:$0xff]
        %v495 = vld [vmem:[#allocation6 + $0xd0] sm:$0xff]
        %v496 = vld [vmem:[#allocation6 + $0xd8] sm:$0xff]
        %v497 = vld [vmem:[#allocation6 + $0xe0] sm:$0xff]
        %v498 = vld [vmem:[#allocation6 + $0xe8] sm:$0xff]
        %v499 = vld [vmem:[#allocation6 + $0xf0] sm:$0xff]
        %v500 = vld [vmem:[#allocation6 + $0xf8] sm:$0xff]
        %v501 = vld [vmem:[#allocation6 + $0x100] sm:$0xff]
        %v502 = vld [vmem:[#allocation6 + $0x108] sm:$0xff]
        %v503 = vld [vmem:[#allocation6 + $0x110] sm:$0xff]
        %v504 = vld [vmem:[#allocation6 + $0x118] sm:$0xff]
        %v505 = vld [vmem:[#allocation6 + $0x120] sm:$0xff]
        %v506 = vld [vmem:[#allocation6 + $0x128] sm:$0xff]
        %v507 = vld [vmem:[#allocation6 + $0x130] sm:$0xff]
        %v508 = vld [vmem:[#allocation6 + $0x138] sm:$0xff]
        %v509 = vld [vmem:[#allocation6 + $0x140] sm:$0xff]
        %v510 = vld [vmem:[#allocation6 + $0x148] sm:$0xff]
        %v511 = vld [vmem:[#allocation6 + $0x150] sm:$0xff]
        %v512 = vld [vmem:[#allocation6 + $0x158] sm:$0xff]
        %v513 = vld [vmem:[#allocation6 + $0x160] sm:$0xff]
        %v514 = vld [vmem:[#allocation6 + $0x168] sm:$0xff]
        %v515 = vld [vmem:[#allocation6 + $0x170] sm:$0xff]
        %v516 = vld [vmem:[#allocation6 + $0x178] sm:$0xff]
        %v517 = vld [vmem:[#allocation6 + $0x180] sm:$0xff]
        %v518 = vld [vmem:[#allocation6 + $0x188] sm:$0xff]
        %v519 = vld [vmem:[#allocation6 + $0x190] sm:$0xff]
        %v520 = vld [vmem:[#allocation6 + $0x198] sm:$0xff]
        %v521 = vld [vmem:[#allocation6 + $0x1a0] sm:$0xff]
        %v522 = vld [vmem:[#allocation6 + $0x1a8] sm:$0xff]
        %v523 = vld [vmem:[#allocation6 + $0x1b0] sm:$0xff]
        %v524 = vld [vmem:[#allocation6 + $0x1b8] sm:$0xff]
        %v525 = vld [vmem:[#allocation6 + $0x1c0] sm:$0xff]
        %v526 = vld [vmem:[#allocation6 + $0x1c8] sm:$0xff]
        %v527 = vld [vmem:[#allocation6 + $0x1d0] sm:$0xff]
        %v528 = vld [vmem:[#allocation6 + $0x1d8] sm:$0xff]
        %v529 = vld [vmem:[#allocation6 + $0x1e0] sm:$0xff]
        %v530 = vld [vmem:[#allocation6 + $0x1e8] sm:$0xff]
        %v531 = vld [vmem:[#allocation6 + $0x1f0] sm:$0xff]
        %v532 = vld [vmem:[#allocation6 + $0x1f8] sm:$0xff]
        %v533 = vld [vmem:[%s329] sm:$0xf]
        %v535 = vlaneseq
        %v536 = vshrl.u32 %v535, 7
        %v537 = vsub.s32 0, %v536
        %v538 = vrot.slane %v533, %v537
        %v539 = vlaneseq
        %v540 = vshrl.u32 %v539, 7
        %v541 = vsub.s32 1, %v540
        %v542 = vrot.slane %v533, %v541
        %v543 = vlaneseq
        %v544 = vshrl.u32 %v543, 7
        %v545 = vsub.s32 2, %v544
        %v546 = vrot.slane %v533, %v545
        %v547 = vlaneseq
        %v548 = vshrl.u32 %v547, 7
        %v549 = vsub.s32 3, %v548
        %v550 = vrot.slane %v533, %v549
        %555 = vmatprep.subr.mxu0 %v470
        %556 = vmatpush1.msra.mxu0 %v469
        %557 = vmatprep.subr.mxu0 %v474
        %558 = vmatpush1.msra.mxu0 %v473
        %559 = vmatprep.subr.mxu0 %v478
        %560 = vmatpush1.msra.mxu0 %v477
        %561 = vmatprep.subr.mxu0 %v482
        %562 = vmatpush1.msra.mxu0 %v481
        %563 = vmatprep.subr.mxu0 %v486
        %564 = vmatpush1.msra.mxu0 %v485
        %565 = vmatprep.subr.mxu0 %v490
        %566 = vmatpush1.msra.mxu0 %v489
        %567 = vmatprep.subr.mxu0 %v494
        %568 = vmatpush1.msra.mxu0 %v493
        %569 = vmatprep.subr.mxu0 %v498
        %570 = vmatpush1.msra.mxu0 %v497
        %571 = vmatprep.subr.mxu0 %v502
        %572 = vmatpush1.msra.mxu0 %v501
        %573 = vmatprep.subr.mxu0 %v506
        %574 = vmatpush1.msra.mxu0 %v505
        %575 = vmatprep.subr.mxu0 %v510
        %576 = vmatpush1.msra.mxu0 %v509
        %577 = vmatprep.subr.mxu0 %v514
        %578 = vmatpush1.msra.mxu0 %v513
        %579 = vmatprep.subr.mxu0 %v518
        %580 = vmatpush1.msra.mxu0 %v517
        %581 = vmatprep.subr.mxu0 %v522
        %582 = vmatpush1.msra.mxu0 %v521
        %583 = vmatprep.subr.mxu0 %v526
        %584 = vmatpush1.msra.mxu0 %v525
        %585 = vmatprep.subr.mxu0 %v530
        %586 = vmatpush1.msra.mxu0 %v529
        %587 = vmatprep.subr.mxu0 0.0
        %588 = vmatpush1.msra.mxu0 0.0
        %589 = vmatprep.subr.mxu0 0.0
        %590 = vmatpush1.msra.mxu0 0.0
        %591 = vmatprep.subr.mxu0 0.0
        %592 = vmatpush1.msra.mxu0 0.0
        %593 = vmatprep.subr.mxu0 0.0
        %594 = vmatpush1.msra.mxu0 0.0
        %595 = vmatprep.subr.mxu0 0.0
        %596 = vmatpush1.msra.mxu0 0.0
        %597 = vmatprep.subr.mxu0 0.0
        %598 = vmatpush1.msra.mxu0 0.0
        %599 = vmatprep.subr.mxu0 0.0
        %600 = vmatpush1.msra.mxu0 0.0
        %601 = vmatprep.subr.mxu0 0.0
        %602 = vmatpush1.msra.mxu0 0.0
        %603 = vmatprep.subr.mxu0 0.0
        %604 = vmatpush1.msra.mxu0 0.0
        %605 = vmatprep.subr.mxu0 0.0
        %606 = vmatpush1.msra.mxu0 0.0
        %607 = vmatprep.subr.mxu0 0.0
        %608 = vmatpush1.msra.mxu0 0.0
        %609 = vmatprep.subr.mxu0 0.0
        %610 = vmatpush1.msra.mxu0 0.0
        %611 = vmatprep.subr.mxu0 0.0
        %612 = vmatpush1.msra.mxu0 0.0
        %613 = vmatprep.subr.mxu0 0.0
        %614 = vmatpush1.msra.mxu0 0.0
        %615 = vmatprep.subr.mxu0 0.0
        %616 = vmatpush1.msra.mxu0 0.0
        %617 = vmatprep.subr.mxu0 0.0
        %618 = vmatpush1.msra.mxu0 0.0
        %619 = vmatprep.mubr.f32.mxu0 0.0
        %620 = vmatmul.mubr.f32.gmra.mrb[0].mxu0 %v405
        %v621 = vpop.f32.mrb[0].mxu0
        %v622 = vadd.f32 %v538, %v621
        %v623 = vpop.f32.mrb[0].mxu0
        %v624 = vadd.f32 %v542, %v623
        %625 = vmatprep.mubr.f32.mxu0 0.0
        %626 = vmatmul.mubr.f32.gmra.mrb[0].mxu0 %v406
        %v627 = vpop.f32.mrb[0].mxu0
        %v628 = vadd.f32 %v538, %v627
        %v629 = vpop.f32.mrb[0].mxu0
        %v630 = vadd.f32 %v542, %v629
        %631 = vmatprep.mubr.f32.mxu0 0.0
        %632 = vmatmul.mubr.f32.gmra.mrb[0].mxu0 %v407
        %v633 = vpop.f32.mrb[0].mxu0
        %v634 = vadd.f32 %v538, %v633
        %v635 = vpop.f32.mrb[0].mxu0
        %v636 = vadd.f32 %v542, %v635
        %637 = vmatprep.mubr.f32.mxu0 0.0
        %638 = vmatmul.mubr.f32.gmra.mrb[0].mxu0 %v408
        %v639 = vpop.f32.mrb[0].mxu0
        %v640 = vadd.f32 %v538, %v639
        %v641 = vpop.f32.mrb[0].mxu0
        %v642 = vadd.f32 %v542, %v641
        %643 = vmatprep.mubr.f32.mxu0 0.0
        %644 = vmatmul.mubr.f32.gmra.mrb[0].mxu0 %v409
        %v645 = vpop.f32.mrb[0].mxu0
        %v646 = vadd.f32 %v538, %v645
        %v647 = vpop.f32.mrb[0].mxu0
        %v648 = vadd.f32 %v542, %v647
        %649 = vmatprep.mubr.f32.mxu0 0.0
        %650 = vmatmul.mubr.f32.gmra.mrb[0].mxu0 %v410
        %v651 = vpop.f32.mrb[0].mxu0
        %v652 = vadd.f32 %v538, %v651
        %v653 = vpop.f32.mrb[0].mxu0
        %v654 = vadd.f32 %v542, %v653
        %655 = vmatprep.mubr.f32.mxu0 0.0
        %656 = vmatmul.mubr.f32.gmra.mrb[0].mxu0 %v411
        %v657 = vpop.f32.mrb[0].mxu0
        %v658 = vadd.f32 %v538, %v657
        %v659 = vpop.f32.mrb[0].mxu0
        %v660 = vadd.f32 %v542, %v659
        %661 = vmatprep.mubr.f32.mxu0 0.0
        %662 = vmatmul.mubr.f32.gmra.mrb[0].mxu0 %v412
        %v663 = vpop.f32.mrb[0].mxu0
        %v664 = vadd.f32 %v538, %v663
        %v665 = vpop.f32.mrb[0].mxu0
        %v666 = vadd.f32 %v542, %v665
        %667 = vmatprep.mubr.f32.mxu0 0.0
        %668 = vmatmul.mubr.f32.gmra.mrb[0].mxu0 %v413
        %v669 = vpop.f32.mrb[0].mxu0
        %v670 = vadd.f32 %v538, %v669
        %v671 = vpop.f32.mrb[0].mxu0
        %v672 = vadd.f32 %v542, %v671
        %673 = vmatprep.mubr.f32.mxu0 0.0
        %674 = vmatmul.mubr.f32.gmra.mrb[0].mxu0 %v414
        %v675 = vpop.f32.mrb[0].mxu0
        %v676 = vadd.f32 %v538, %v675
        %v677 = vpop.f32.mrb[0].mxu0
        %v678 = vadd.f32 %v542, %v677
        %679 = vmatprep.mubr.f32.mxu0 0.0
        %680 = vmatmul.mubr.f32.gmra.mrb[0].mxu0 %v415
        %v681 = vpop.f32.mrb[0].mxu0
        %v682 = vadd.f32 %v538, %v681
        %v683 = vpop.f32.mrb[0].mxu0
        %v684 = vadd.f32 %v542, %v683
        %685 = vmatprep.mubr.f32.mxu0 0.0
        %686 = vmatmul.mubr.f32.gmra.mrb[0].mxu0 %v416
        %v687 = vpop.f32.mrb[0].mxu0
        %v688 = vadd.f32 %v538, %v687
        %v689 = vpop.f32.mrb[0].mxu0
        %v690 = vadd.f32 %v542, %v689
        %691 = vmatprep.mubr.f32.mxu0 0.0
        %692 = vmatmul.mubr.f32.gmra.mrb[0].mxu0 %v417
        %v693 = vpop.f32.mrb[0].mxu0
        %v694 = vadd.f32 %v538, %v693
        %v695 = vpop.f32.mrb[0].mxu0
        %v696 = vadd.f32 %v542, %v695
        %697 = vmatprep.mubr.f32.mxu0 0.0
        %698 = vmatmul.mubr.f32.gmra.mrb[0].mxu0 %v418
        %v699 = vpop.f32.mrb[0].mxu0
        %v700 = vadd.f32 %v538, %v699
        %v701 = vpop.f32.mrb[0].mxu0
        %v702 = vadd.f32 %v542, %v701
        %703 = vmatprep.mubr.f32.mxu0 0.0
        %704 = vmatmul.mubr.f32.gmra.mrb[0].mxu0 %v419
        %v705 = vpop.f32.mrb[0].mxu0
        %v706 = vadd.f32 %v538, %v705
        %v707 = vpop.f32.mrb[0].mxu0
        %v708 = vadd.f32 %v542, %v707
        %709 = vmatprep.mubr.f32.mxu0 0.0
        %710 = vmatmul.mubr.f32.gmra.mrb[0].mxu0 %v420
        %v711 = vpop.f32.mrb[0].mxu0
        %v712 = vadd.f32 %v538, %v711
        %v713 = vpop.f32.mrb[0].mxu0
        %v714 = vadd.f32 %v542, %v713
        %715 = vmatprep.mubr.f32.mxu0 0.0
        %716 = vmatmul.mubr.f32.gmra.mrb[0].mxu0 %v421
        %v717 = vpop.f32.mrb[0].mxu0
        %v718 = vadd.f32 %v538, %v717
        %v719 = vpop.f32.mrb[0].mxu0
        %v720 = vadd.f32 %v542, %v719
        %721 = vmatprep.mubr.f32.mxu0 0.0
        %722 = vmatmul.mubr.f32.gmra.mrb[0].mxu0 %v422
        %v723 = vpop.f32.mrb[0].mxu0
        %v724 = vadd.f32 %v538, %v723
        %v725 = vpop.f32.mrb[0].mxu0
        %v726 = vadd.f32 %v542, %v725
        %727 = vmatprep.mubr.f32.mxu0 0.0
        %728 = vmatmul.mubr.f32.gmra.mrb[0].mxu0 %v423
        %v729 = vpop.f32.mrb[0].mxu0
        %v730 = vadd.f32 %v538, %v729
        %v731 = vpop.f32.mrb[0].mxu0
        %v732 = vadd.f32 %v542, %v731
        %733 = vmatprep.mubr.f32.mxu0 0.0
        %734 = vmatmul.mubr.f32.gmra.mrb[0].mxu0 %v424
        %v735 = vpop.f32.mrb[0].mxu0
        %v736 = vadd.f32 %v538, %v735
        %v737 = vpop.f32.mrb[0].mxu0
        %v738 = vadd.f32 %v542, %v737
        %739 = vmatprep.mubr.f32.mxu0 0.0
        %740 = vmatmul.mubr.f32.gmra.mrb[0].mxu0 %v425
        %v741 = vpop.f32.mrb[0].mxu0
        %v742 = vadd.f32 %v538, %v741
        %v743 = vpop.f32.mrb[0].mxu0
        %v744 = vadd.f32 %v542, %v743
        %745 = vmatprep.mubr.f32.mxu0 0.0
        %746 = vmatmul.mubr.f32.gmra.mrb[0].mxu0 %v426
        %v747 = vpop.f32.mrb[0].mxu0
        %v748 = vadd.f32 %v538, %v747
        %v749 = vpop.f32.mrb[0].mxu0
        %v750 = vadd.f32 %v542, %v749
        %751 = vmatprep.mubr.f32.mxu0 0.0
        %752 = vmatmul.mubr.f32.gmra.mrb[0].mxu0 %v427
        %v753 = vpop.f32.mrb[0].mxu0
        %v754 = vadd.f32 %v538, %v753
        %v755 = vpop.f32.mrb[0].mxu0
        %v756 = vadd.f32 %v542, %v755
        %757 = vmatprep.mubr.f32.mxu0 0.0
        %758 = vmatmul.mubr.f32.gmra.mrb[0].mxu0 %v428
        %v759 = vpop.f32.mrb[0].mxu0
        %v760 = vadd.f32 %v538, %v759
        %v761 = vpop.f32.mrb[0].mxu0
        %v762 = vadd.f32 %v542, %v761
        %763 = vmatprep.mubr.f32.mxu0 0.0
        %764 = vmatmul.mubr.f32.gmra.mrb[0].mxu0 %v429
        %v765 = vpop.f32.mrb[0].mxu0
        %v766 = vadd.f32 %v538, %v765
        %v767 = vpop.f32.mrb[0].mxu0
        %v768 = vadd.f32 %v542, %v767
        %769 = vmatprep.mubr.f32.mxu0 0.0
        %770 = vmatmul.mubr.f32.gmra.mrb[0].mxu0 %v430
        %v771 = vpop.f32.mrb[0].mxu0
        %v772 = vadd.f32 %v538, %v771
        %v773 = vpop.f32.mrb[0].mxu0
        %v774 = vadd.f32 %v542, %v773
        %775 = vmatprep.mubr.f32.mxu0 0.0
        %776 = vmatmul.mubr.f32.gmra.mrb[0].mxu0 %v431
        %v777 = vpop.f32.mrb[0].mxu0
        %v778 = vadd.f32 %v538, %v777
        %v779 = vpop.f32.mrb[0].mxu0
        %v780 = vadd.f32 %v542, %v779
        %781 = vmatprep.mubr.f32.mxu0 0.0
        %782 = vmatmul.mubr.f32.gmra.mrb[0].mxu0 %v432
        %v783 = vpop.f32.mrb[0].mxu0
        %v784 = vadd.f32 %v538, %v783
        %v785 = vpop.f32.mrb[0].mxu0
        %v786 = vadd.f32 %v542, %v785
        %787 = vmatprep.mubr.f32.mxu0 0.0
        %788 = vmatmul.mubr.f32.gmra.mrb[0].mxu0 %v433
        %v789 = vpop.f32.mrb[0].mxu0
        %v790 = vadd.f32 %v538, %v789
        %v791 = vpop.f32.mrb[0].mxu0
        %v792 = vadd.f32 %v542, %v791
        %793 = vmatprep.mubr.f32.mxu0 0.0
        %794 = vmatmul.mubr.f32.gmra.mrb[0].mxu0 %v434
        %v795 = vpop.f32.mrb[0].mxu0
        %v796 = vadd.f32 %v538, %v795
        %v797 = vpop.f32.mrb[0].mxu0
        %v798 = vadd.f32 %v542, %v797
        %799 = vmatprep.mubr.f32.mxu0 0.0
        %800 = vmatmul.mubr.f32.gmra.mrb[0].mxu0 %v435
        %v801 = vpop.f32.mrb[0].mxu0
        %v802 = vadd.f32 %v538, %v801
        %v803 = vpop.f32.mrb[0].mxu0
        %v804 = vadd.f32 %v542, %v803
        %805 = vmatprep.mubr.f32.mxu0 0.0
        %806 = vmatmul.mubr.f32.gmra.mrb[0].mxu0 %v436
        %v807 = vpop.f32.mrb[0].mxu0
        %v808 = vadd.f32 %v538, %v807
        %v809 = vpop.f32.mrb[0].mxu0
        %v810 = vadd.f32 %v542, %v809
        %811 = vmatprep.mubr.f32.mxu0 0.0
        %812 = vmatmul.mubr.f32.gmra.mrb[0].mxu0 %v437
        %v813 = vpop.f32.mrb[0].mxu0
        %v814 = vadd.f32 %v538, %v813
        %v815 = vpop.f32.mrb[0].mxu0
        %v816 = vadd.f32 %v542, %v815
        %817 = vmatprep.mubr.f32.mxu0 0.0
        %818 = vmatmul.mubr.f32.gmra.mrb[0].mxu0 %v438
        %v819 = vpop.f32.mrb[0].mxu0
        %v820 = vadd.f32 %v538, %v819
        %v821 = vpop.f32.mrb[0].mxu0
        %v822 = vadd.f32 %v542, %v821
        %823 = vmatprep.mubr.f32.mxu0 0.0
        %824 = vmatmul.mubr.f32.gmra.mrb[0].mxu0 %v439
        %v825 = vpop.f32.mrb[0].mxu0
        %v826 = vadd.f32 %v538, %v825
        %v827 = vpop.f32.mrb[0].mxu0
        %v828 = vadd.f32 %v542, %v827
        %829 = vmatprep.mubr.f32.mxu0 0.0
        %830 = vmatmul.mubr.f32.gmra.mrb[0].mxu0 %v440
        %v831 = vpop.f32.mrb[0].mxu0
        %v832 = vadd.f32 %v538, %v831
        %v833 = vpop.f32.mrb[0].mxu0
        %v834 = vadd.f32 %v542, %v833
        %835 = vmatprep.mubr.f32.mxu0 0.0
        %836 = vmatmul.mubr.f32.gmra.mrb[0].mxu0 %v441
        %v837 = vpop.f32.mrb[0].mxu0
        %v838 = vadd.f32 %v538, %v837
        %v839 = vpop.f32.mrb[0].mxu0
        %v840 = vadd.f32 %v542, %v839
        %841 = vmatprep.mubr.f32.mxu0 0.0
        %842 = vmatmul.mubr.f32.gmra.mrb[0].mxu0 %v442
        %v843 = vpop.f32.mrb[0].mxu0
        %v844 = vadd.f32 %v538, %v843
        %v845 = vpop.f32.mrb[0].mxu0
        %v846 = vadd.f32 %v542, %v845
        %847 = vmatprep.mubr.f32.mxu0 0.0
        %848 = vmatmul.mubr.f32.gmra.mrb[0].mxu0 %v443
        %v849 = vpop.f32.mrb[0].mxu0
        %v850 = vadd.f32 %v538, %v849
        %v851 = vpop.f32.mrb[0].mxu0
        %v852 = vadd.f32 %v542, %v851
        %853 = vmatprep.mubr.f32.mxu0 0.0
        %854 = vmatmul.mubr.f32.gmra.mrb[0].mxu0 %v444
        %v855 = vpop.f32.mrb[0].mxu0
        %v856 = vadd.f32 %v538, %v855
        %v857 = vpop.f32.mrb[0].mxu0
        %v858 = vadd.f32 %v542, %v857
        %859 = vmatprep.mubr.f32.mxu0 0.0
        %860 = vmatmul.mubr.f32.gmra.mrb[0].mxu0 %v445
        %v861 = vpop.f32.mrb[0].mxu0
        %v862 = vadd.f32 %v538, %v861
        %v863 = vpop.f32.mrb[0].mxu0
        %v864 = vadd.f32 %v542, %v863
        %865 = vmatprep.mubr.f32.mxu0 0.0
        %866 = vmatmul.mubr.f32.gmra.mrb[0].mxu0 %v446
        %v867 = vpop.f32.mrb[0].mxu0
        %v868 = vadd.f32 %v538, %v867
        %v869 = vpop.f32.mrb[0].mxu0
        %v870 = vadd.f32 %v542, %v869
        %871 = vmatprep.mubr.f32.mxu0 0.0
        %872 = vmatmul.mubr.f32.gmra.mrb[0].mxu0 %v447
        %v873 = vpop.f32.mrb[0].mxu0
        %v874 = vadd.f32 %v538, %v873
        %v875 = vpop.f32.mrb[0].mxu0
        %v876 = vadd.f32 %v542, %v875
        %877 = vmatprep.mubr.f32.mxu0 0.0
        %878 = vmatmul.mubr.f32.gmra.mrb[0].mxu0 %v448
        %v879 = vpop.f32.mrb[0].mxu0
        %v880 = vadd.f32 %v538, %v879
        %v881 = vpop.f32.mrb[0].mxu0
        %v882 = vadd.f32 %v542, %v881
        %883 = vmatprep.mubr.f32.mxu0 0.0
        %884 = vmatmul.mubr.f32.gmra.mrb[0].mxu0 %v449
        %v885 = vpop.f32.mrb[0].mxu0
        %v886 = vadd.f32 %v538, %v885
        %v887 = vpop.f32.mrb[0].mxu0
        %v888 = vadd.f32 %v542, %v887
        %889 = vmatprep.mubr.f32.mxu0 0.0
        %890 = vmatmul.mubr.f32.gmra.mrb[0].mxu0 %v450
        %v891 = vpop.f32.mrb[0].mxu0
        %v892 = vadd.f32 %v538, %v891
        %v893 = vpop.f32.mrb[0].mxu0
        %v894 = vadd.f32 %v542, %v893
        %895 = vmatprep.mubr.f32.mxu0 0.0
        %896 = vmatmul.mubr.f32.gmra.mrb[0].mxu0 %v451
        %v897 = vpop.f32.mrb[0].mxu0
        %v898 = vadd.f32 %v538, %v897
        %v899 = vpop.f32.mrb[0].mxu0
        %v900 = vadd.f32 %v542, %v899
        %901 = vmatprep.mubr.f32.mxu0 0.0
        %902 = vmatmul.mubr.f32.gmra.mrb[0].mxu0 %v452
        %v903 = vpop.f32.mrb[0].mxu0
        %v904 = vadd.f32 %v538, %v903
        %v905 = vpop.f32.mrb[0].mxu0
        %v906 = vadd.f32 %v542, %v905
        %907 = vmatprep.mubr.f32.mxu0 0.0
        %908 = vmatmul.mubr.f32.gmra.mrb[0].mxu0 %v453
        %v909 = vpop.f32.mrb[0].mxu0
        %v910 = vadd.f32 %v538, %v909
        %v911 = vpop.f32.mrb[0].mxu0
        %v912 = vadd.f32 %v542, %v911
        %913 = vmatprep.mubr.f32.mxu0 0.0
        %914 = vmatmul.mubr.f32.gmra.mrb[0].mxu0 %v454
        %v915 = vpop.f32.mrb[0].mxu0
        %v916 = vadd.f32 %v538, %v915
        %v917 = vpop.f32.mrb[0].mxu0
        %v918 = vadd.f32 %v542, %v917
        %919 = vmatprep.mubr.f32.mxu0 0.0
        %920 = vmatmul.mubr.f32.gmra.mrb[0].mxu0 %v455
        %v921 = vpop.f32.mrb[0].mxu0
        %v922 = vadd.f32 %v538, %v921
        %v923 = vpop.f32.mrb[0].mxu0
        %v924 = vadd.f32 %v542, %v923
        %925 = vmatprep.mubr.f32.mxu0 0.0
        %926 = vmatmul.mubr.f32.gmra.mrb[0].mxu0 %v456
        %v927 = vpop.f32.mrb[0].mxu0
        %v928 = vadd.f32 %v538, %v927
        %v929 = vpop.f32.mrb[0].mxu0
        %v930 = vadd.f32 %v542, %v929
        %931 = vmatprep.mubr.f32.mxu0 0.0
        %932 = vmatmul.mubr.f32.gmra.mrb[0].mxu0 %v457
        %v933 = vpop.f32.mrb[0].mxu0
        %v934 = vadd.f32 %v538, %v933
        %v935 = vpop.f32.mrb[0].mxu0
        %v936 = vadd.f32 %v542, %v935
        %937 = vmatprep.mubr.f32.mxu0 0.0
        %938 = vmatmul.mubr.f32.gmra.mrb[0].mxu0 %v458
        %v939 = vpop.f32.mrb[0].mxu0
        %v940 = vadd.f32 %v538, %v939
        %v941 = vpop.f32.mrb[0].mxu0
        %v942 = vadd.f32 %v542, %v941
        %943 = vmatprep.mubr.f32.mxu0 0.0
        %944 = vmatmul.mubr.f32.gmra.mrb[0].mxu0 %v459
        %v945 = vpop.f32.mrb[0].mxu0
        %v946 = vadd.f32 %v538, %v945
        %v947 = vpop.f32.mrb[0].mxu0
        %v948 = vadd.f32 %v542, %v947
        %949 = vmatprep.mubr.f32.mxu0 0.0
        %950 = vmatmul.mubr.f32.gmra.mrb[0].mxu0 %v460
        %v951 = vpop.f32.mrb[0].mxu0
        %v952 = vadd.f32 %v538, %v951
        %v953 = vpop.f32.mrb[0].mxu0
        %v954 = vadd.f32 %v542, %v953
        %955 = vmatprep.mubr.f32.mxu0 0.0
        %956 = vmatmul.mubr.f32.gmra.mrb[0].mxu0 %v461
        %v957 = vpop.f32.mrb[0].mxu0
        %v958 = vadd.f32 %v538, %v957
        %v959 = vpop.f32.mrb[0].mxu0
        %v960 = vadd.f32 %v542, %v959
        %961 = vmatprep.mubr.f32.mxu0 0.0
        %962 = vmatmul.mubr.f32.gmra.mrb[0].mxu0 %v462
        %v963 = vpop.f32.mrb[0].mxu0
        %v964 = vadd.f32 %v538, %v963
        %v965 = vpop.f32.mrb[0].mxu0
        %v966 = vadd.f32 %v542, %v965
        %967 = vmatprep.mubr.f32.mxu0 0.0
        %968 = vmatmul.mubr.f32.gmra.mrb[0].mxu0 %v463
        %v969 = vpop.f32.mrb[0].mxu0
        %v970 = vadd.f32 %v538, %v969
        %v971 = vpop.f32.mrb[0].mxu0
        %v972 = vadd.f32 %v542, %v971
        %973 = vmatprep.mubr.f32.mxu0 0.0
        %974 = vmatmul.mubr.f32.gmra.mrb[0].mxu0 %v464
        %v975 = vpop.f32.mrb[0].mxu0
        %v976 = vadd.f32 %v538, %v975
        %v977 = vpop.f32.mrb[0].mxu0
        %v978 = vadd.f32 %v542, %v977
        %979 = vmatprep.mubr.f32.mxu0 0.0
        %980 = vmatmul.mubr.f32.gmra.mrb[0].mxu0 %v465
        %v981 = vpop.f32.mrb[0].mxu0
        %v982 = vadd.f32 %v538, %v981
        %v983 = vpop.f32.mrb[0].mxu0
        %v984 = vadd.f32 %v542, %v983
        %985 = vmatprep.mubr.f32.mxu0 0.0
        %986 = vmatmul.mubr.f32.gmra.mrb[0].mxu0 %v466
        %v987 = vpop.f32.mrb[0].mxu0
        %v988 = vadd.f32 %v538, %v987
        %v989 = vpop.f32.mrb[0].mxu0
        %v990 = vadd.f32 %v542, %v989
        %991 = vmatprep.mubr.f32.mxu0 0.0
        %992 = vmatmul.mubr.f32.gmra.mrb[0].mxu0 %v467
        %v993 = vpop.f32.mrb[0].mxu0
        %v994 = vadd.f32 %v538, %v993
        %v995 = vpop.f32.mrb[0].mxu0
        %v996 = vadd.f32 %v542, %v995
        %997 = vmatprep.mubr.f32.mxu0 0.0
        %998 = vmatmul.mubr.f32.gmra.mrb[0].mxu0 %v468
        %v999 = vpop.f32.mrb[0].mxu0
        %v1000 = vadd.f32 %v538, %v999
        %v1001 = vpop.f32.mrb[0].mxu0
        %v1002 = vadd.f32 %v542, %v1001
        %1003 = vdwg.mxu0
        %1004 = vmatprep.subr.mxu0 %v472
        %1005 = vmatpush1.msra.mxu0 %v471
        %1006 = vmatprep.subr.mxu0 %v476
        %1007 = vmatpush1.msra.mxu0 %v475
        %1008 = vmatprep.subr.mxu0 %v480
        %1009 = vmatpush1.msra.mxu0 %v479
        %1010 = vmatprep.subr.mxu0 %v484
        %1011 = vmatpush1.msra.mxu0 %v483
        %1012 = vmatprep.subr.mxu0 %v488
        %1013 = vmatpush1.msra.mxu0 %v487
        %1014 = vmatprep.subr.mxu0 %v492
        %1015 = vmatpush1.msra.mxu0 %v491
        %1016 = vmatprep.subr.mxu0 %v496
        %1017 = vmatpush1.msra.mxu0 %v495
        %1018 = vmatprep.subr.mxu0 %v500
        %1019 = vmatpush1.msra.mxu0 %v499
        %1020 = vmatprep.subr.mxu0 %v504
        %1021 = vmatpush1.msra.mxu0 %v503
        %1022 = vmatprep.subr.mxu0 %v508
        %1023 = vmatpush1.msra.mxu0 %v507
        %1024 = vmatprep.subr.mxu0 %v512
        %1025 = vmatpush1.msra.mxu0 %v511
        %1026 = vmatprep.subr.mxu0 %v516
        %1027 = vmatpush1.msra.mxu0 %v515
        %1028 = vmatprep.subr.mxu0 %v520
        %1029 = vmatpush1.msra.mxu0 %v519
        %1030 = vmatprep.subr.mxu0 %v524
        %1031 = vmatpush1.msra.mxu0 %v523
        %1032 = vmatprep.subr.mxu0 %v528
        %1033 = vmatpush1.msra.mxu0 %v527
        %1034 = vmatprep.subr.mxu0 %v532
        %1035 = vmatpush1.msra.mxu0 %v531
        %1036 = vmatprep.subr.mxu0 0.0
        %1037 = vmatpush1.msra.mxu0 0.0
        %1038 = vmatprep.subr.mxu0 0.0
        %1039 = vmatpush1.msra.mxu0 0.0
        %1040 = vmatprep.subr.mxu0 0.0
        %1041 = vmatpush1.msra.mxu0 0.0
        %1042 = vmatprep.subr.mxu0 0.0
        %1043 = vmatpush1.msra.mxu0 0.0
        %1044 = vmatprep.subr.mxu0 0.0
        %1045 = vmatpush1.msra.mxu0 0.0
        %1046 = vmatprep.subr.mxu0 0.0
        %1047 = vmatpush1.msra.mxu0 0.0
        %1048 = vmatprep.subr.mxu0 0.0
        %1049 = vmatpush1.msra.mxu0 0.0
        %1050 = vmatprep.subr.mxu0 0.0
        %1051 = vmatpush1.msra.mxu0 0.0
        %1052 = vmatprep.subr.mxu0 0.0
        %1053 = vmatpush1.msra.mxu0 0.0
        %1054 = vmatprep.subr.mxu0 0.0
        %1055 = vmatpush1.msra.mxu0 0.0
        %1056 = vmatprep.subr.mxu0 0.0
        %1057 = vmatpush1.msra.mxu0 0.0
        %1058 = vmatprep.subr.mxu0 0.0
        %1059 = vmatpush1.msra.mxu0 0.0
        %1060 = vmatprep.subr.mxu0 0.0
        %1061 = vmatpush1.msra.mxu0 0.0
        %1062 = vmatprep.subr.mxu0 0.0
        %1063 = vmatpush1.msra.mxu0 0.0
        %1064 = vmatprep.subr.mxu0 0.0
        %1065 = vmatpush1.msra.mxu0 0.0
        %1066 = vmatprep.subr.mxu0 0.0
        %1067 = vmatpush1.msra.mxu0 0.0
        %1068 = vmatprep.mubr.f32.mxu0 0.0
        %1069 = vmatmul.mubr.f32.gmra.mrb[0].mxu0 %v405
        %v1070 = vpop.f32.mrb[0].mxu0
        %v1071 = vadd.f32 %v546, %v1070
        %v1072 = vpop.f32.mrb[0].mxu0
        %v1073 = vadd.f32 %v550, %v1072
        %1074 = vmatprep.mubr.f32.mxu0 0.0
        %1075 = vmatmul.mubr.f32.gmra.mrb[0].mxu0 %v406
        %v1076 = vpop.f32.mrb[0].mxu0
        %v1077 = vadd.f32 %v546, %v1076
        %v1078 = vpop.f32.mrb[0].mxu0
        %v1079 = vadd.f32 %v550, %v1078
        %1080 = vmatprep.mubr.f32.mxu0 0.0
        %1081 = vmatmul.mubr.f32.gmra.mrb[0].mxu0 %v407
        %v1082 = vpop.f32.mrb[0].mxu0
        %v1083 = vadd.f32 %v546, %v1082
        %v1084 = vpop.f32.mrb[0].mxu0
        %v1085 = vadd.f32 %v550, %v1084
        %1086 = vmatprep.mubr.f32.mxu0 0.0
        %1087 = vmatmul.mubr.f32.gmra.mrb[0].mxu0 %v408
        %v1088 = vpop.f32.mrb[0].mxu0
        %v1089 = vadd.f32 %v546, %v1088
        %v1090 = vpop.f32.mrb[0].mxu0
        %v1091 = vadd.f32 %v550, %v1090
        %1092 = vmatprep.mubr.f32.mxu0 0.0
        %1093 = vmatmul.mubr.f32.gmra.mrb[0].mxu0 %v409
        %v1094 = vpop.f32.mrb[0].mxu0
        %v1095 = vadd.f32 %v546, %v1094
        %v1096 = vpop.f32.mrb[0].mxu0
        %v1097 = vadd.f32 %v550, %v1096
        %1098 = vmatprep.mubr.f32.mxu0 0.0
        %1099 = vmatmul.mubr.f32.gmra.mrb[0].mxu0 %v410
        %v1100 = vpop.f32.mrb[0].mxu0
        %v1101 = vadd.f32 %v546, %v1100
        %v1102 = vpop.f32.mrb[0].mxu0
        %v1103 = vadd.f32 %v550, %v1102
        %1104 = vmatprep.mubr.f32.mxu0 0.0
        %1105 = vmatmul.mubr.f32.gmra.mrb[0].mxu0 %v411
        %v1106 = vpop.f32.mrb[0].mxu0
        %v1107 = vadd.f32 %v546, %v1106
        %v1108 = vpop.f32.mrb[0].mxu0
        %v1109 = vadd.f32 %v550, %v1108
        %1110 = vmatprep.mubr.f32.mxu0 0.0
        %1111 = vmatmul.mubr.f32.gmra.mrb[0].mxu0 %v412
        %v1112 = vpop.f32.mrb[0].mxu0
        %v1113 = vadd.f32 %v546, %v1112
        %v1114 = vpop.f32.mrb[0].mxu0
        %v1115 = vadd.f32 %v550, %v1114
        %1116 = vmatprep.mubr.f32.mxu0 0.0
        %1117 = vmatmul.mubr.f32.gmra.mrb[0].mxu0 %v413
        %v1118 = vpop.f32.mrb[0].mxu0
        %v1119 = vadd.f32 %v546, %v1118
        %v1120 = vpop.f32.mrb[0].mxu0
        %v1121 = vadd.f32 %v550, %v1120
        %1122 = vmatprep.mubr.f32.mxu0 0.0
        %1123 = vmatmul.mubr.f32.gmra.mrb[0].mxu0 %v414
        %v1124 = vpop.f32.mrb[0].mxu0
        %v1125 = vadd.f32 %v546, %v1124
        %v1126 = vpop.f32.mrb[0].mxu0
        %v1127 = vadd.f32 %v550, %v1126
        %1128 = vmatprep.mubr.f32.mxu0 0.0
        %1129 = vmatmul.mubr.f32.gmra.mrb[0].mxu0 %v415
        %v1130 = vpop.f32.mrb[0].mxu0
        %v1131 = vadd.f32 %v546, %v1130
        %v1132 = vpop.f32.mrb[0].mxu0
        %v1133 = vadd.f32 %v550, %v1132
        %1134 = vmatprep.mubr.f32.mxu0 0.0
        %1135 = vmatmul.mubr.f32.gmra.mrb[0].mxu0 %v416
        %v1136 = vpop.f32.mrb[0].mxu0
        %v1137 = vadd.f32 %v546, %v1136
        %v1138 = vpop.f32.mrb[0].mxu0
        %v1139 = vadd.f32 %v550, %v1138
        %1140 = vmatprep.mubr.f32.mxu0 0.0
        %1141 = vmatmul.mubr.f32.gmra.mrb[0].mxu0 %v417
        %v1142 = vpop.f32.mrb[0].mxu0
        %v1143 = vadd.f32 %v546, %v1142
        %v1144 = vpop.f32.mrb[0].mxu0
        %v1145 = vadd.f32 %v550, %v1144
        %1146 = vmatprep.mubr.f32.mxu0 0.0
        %1147 = vmatmul.mubr.f32.gmra.mrb[0].mxu0 %v418
        %v1148 = vpop.f32.mrb[0].mxu0
        %v1149 = vadd.f32 %v546, %v1148
        %v1150 = vpop.f32.mrb[0].mxu0
        %v1151 = vadd.f32 %v550, %v1150
        %1152 = vmatprep.mubr.f32.mxu0 0.0
        %1153 = vmatmul.mubr.f32.gmra.mrb[0].mxu0 %v419
        %v1154 = vpop.f32.mrb[0].mxu0
        %v1155 = vadd.f32 %v546, %v1154
        %v1156 = vpop.f32.mrb[0].mxu0
        %v1157 = vadd.f32 %v550, %v1156
        %1158 = vmatprep.mubr.f32.mxu0 0.0
        %1159 = vmatmul.mubr.f32.gmra.mrb[0].mxu0 %v420
        %v1160 = vpop.f32.mrb[0].mxu0
        %v1161 = vadd.f32 %v546, %v1160
        %v1162 = vpop.f32.mrb[0].mxu0
        %v1163 = vadd.f32 %v550, %v1162
        %1164 = vmatprep.mubr.f32.mxu0 0.0
        %1165 = vmatmul.mubr.f32.gmra.mrb[0].mxu0 %v421
        %v1166 = vpop.f32.mrb[0].mxu0
        %v1167 = vadd.f32 %v546, %v1166
        %v1168 = vpop.f32.mrb[0].mxu0
        %v1169 = vadd.f32 %v550, %v1168
        %1170 = vmatprep.mubr.f32.mxu0 0.0
        %1171 = vmatmul.mubr.f32.gmra.mrb[0].mxu0 %v422
        %v1172 = vpop.f32.mrb[0].mxu0
        %v1173 = vadd.f32 %v546, %v1172
        %v1174 = vpop.f32.mrb[0].mxu0
        %v1175 = vadd.f32 %v550, %v1174
        %1176 = vmatprep.mubr.f32.mxu0 0.0
        %1177 = vmatmul.mubr.f32.gmra.mrb[0].mxu0 %v423
        %v1178 = vpop.f32.mrb[0].mxu0
        %v1179 = vadd.f32 %v546, %v1178
        %v1180 = vpop.f32.mrb[0].mxu0
        %v1181 = vadd.f32 %v550, %v1180
        %1182 = vmatprep.mubr.f32.mxu0 0.0
        %1183 = vmatmul.mubr.f32.gmra.mrb[0].mxu0 %v424
        %v1184 = vpop.f32.mrb[0].mxu0
        %v1185 = vadd.f32 %v546, %v1184
        %v1186 = vpop.f32.mrb[0].mxu0
        %v1187 = vadd.f32 %v550, %v1186
        %1188 = vmatprep.mubr.f32.mxu0 0.0
        %1189 = vmatmul.mubr.f32.gmra.mrb[0].mxu0 %v425
        %v1190 = vpop.f32.mrb[0].mxu0
        %v1191 = vadd.f32 %v546, %v1190
        %v1192 = vpop.f32.mrb[0].mxu0
        %v1193 = vadd.f32 %v550, %v1192
        %1194 = vmatprep.mubr.f32.mxu0 0.0
        %1195 = vmatmul.mubr.f32.gmra.mrb[0].mxu0 %v426
        %v1196 = vpop.f32.mrb[0].mxu0
        %v1197 = vadd.f32 %v546, %v1196
        %v1198 = vpop.f32.mrb[0].mxu0
        %v1199 = vadd.f32 %v550, %v1198
        %1200 = vmatprep.mubr.f32.mxu0 0.0
        %1201 = vmatmul.mubr.f32.gmra.mrb[0].mxu0 %v427
        %v1202 = vpop.f32.mrb[0].mxu0
        %v1203 = vadd.f32 %v546, %v1202
        %v1204 = vpop.f32.mrb[0].mxu0
        %v1205 = vadd.f32 %v550, %v1204
        %1206 = vmatprep.mubr.f32.mxu0 0.0
        %1207 = vmatmul.mubr.f32.gmra.mrb[0].mxu0 %v428
        %v1208 = vpop.f32.mrb[0].mxu0
        %v1209 = vadd.f32 %v546, %v1208
        %v1210 = vpop.f32.mrb[0].mxu0
        %v1211 = vadd.f32 %v550, %v1210
        %1212 = vmatprep.mubr.f32.mxu0 0.0
        %1213 = vmatmul.mubr.f32.gmra.mrb[0].mxu0 %v429
        %v1214 = vpop.f32.mrb[0].mxu0
        %v1215 = vadd.f32 %v546, %v1214
        %v1216 = vpop.f32.mrb[0].mxu0
        %v1217 = vadd.f32 %v550, %v1216
        %1218 = vmatprep.mubr.f32.mxu0 0.0
        %1219 = vmatmul.mubr.f32.gmra.mrb[0].mxu0 %v430
        %v1220 = vpop.f32.mrb[0].mxu0
        %v1221 = vadd.f32 %v546, %v1220
        %v1222 = vpop.f32.mrb[0].mxu0
        %v1223 = vadd.f32 %v550, %v1222
        %1224 = vmatprep.mubr.f32.mxu0 0.0
        %1225 = vmatmul.mubr.f32.gmra.mrb[0].mxu0 %v431
        %v1226 = vpop.f32.mrb[0].mxu0
        %v1227 = vadd.f32 %v546, %v1226
        %v1228 = vpop.f32.mrb[0].mxu0
        %v1229 = vadd.f32 %v550, %v1228
        %1230 = vmatprep.mubr.f32.mxu0 0.0
        %1231 = vmatmul.mubr.f32.gmra.mrb[0].mxu0 %v432
        %v1232 = vpop.f32.mrb[0].mxu0
        %v1233 = vadd.f32 %v546, %v1232
        %v1234 = vpop.f32.mrb[0].mxu0
        %v1235 = vadd.f32 %v550, %v1234
        %1236 = vmatprep.mubr.f32.mxu0 0.0
        %1237 = vmatmul.mubr.f32.gmra.mrb[0].mxu0 %v433
        %v1238 = vpop.f32.mrb[0].mxu0
        %v1239 = vadd.f32 %v546, %v1238
        %v1240 = vpop.f32.mrb[0].mxu0
        %v1241 = vadd.f32 %v550, %v1240
        %1242 = vmatprep.mubr.f32.mxu0 0.0
        %1243 = vmatmul.mubr.f32.gmra.mrb[0].mxu0 %v434
        %v1244 = vpop.f32.mrb[0].mxu0
        %v1245 = vadd.f32 %v546, %v1244
        %v1246 = vpop.f32.mrb[0].mxu0
        %v1247 = vadd.f32 %v550, %v1246
        %1248 = vmatprep.mubr.f32.mxu0 0.0
        %1249 = vmatmul.mubr.f32.gmra.mrb[0].mxu0 %v435
        %v1250 = vpop.f32.mrb[0].mxu0
        %v1251 = vadd.f32 %v546, %v1250
        %v1252 = vpop.f32.mrb[0].mxu0
        %v1253 = vadd.f32 %v550, %v1252
        %1254 = vmatprep.mubr.f32.mxu0 0.0
        %1255 = vmatmul.mubr.f32.gmra.mrb[0].mxu0 %v436
        %v1256 = vpop.f32.mrb[0].mxu0
        %v1257 = vadd.f32 %v546, %v1256
        %v1258 = vpop.f32.mrb[0].mxu0
        %v1259 = vadd.f32 %v550, %v1258
        %1260 = vmatprep.mubr.f32.mxu0 0.0
        %1261 = vmatmul.mubr.f32.gmra.mrb[0].mxu0 %v437
        %v1262 = vpop.f32.mrb[0].mxu0
        %v1263 = vadd.f32 %v546, %v1262
        %v1264 = vpop.f32.mrb[0].mxu0
        %v1265 = vadd.f32 %v550, %v1264
        %1266 = vmatprep.mubr.f32.mxu0 0.0
        %1267 = vmatmul.mubr.f32.gmra.mrb[0].mxu0 %v438
        %v1268 = vpop.f32.mrb[0].mxu0
        %v1269 = vadd.f32 %v546, %v1268
        %v1270 = vpop.f32.mrb[0].mxu0
        %v1271 = vadd.f32 %v550, %v1270
        %1272 = vmatprep.mubr.f32.mxu0 0.0
        %1273 = vmatmul.mubr.f32.gmra.mrb[0].mxu0 %v439
        %v1274 = vpop.f32.mrb[0].mxu0
        %v1275 = vadd.f32 %v546, %v1274
        %v1276 = vpop.f32.mrb[0].mxu0
        %v1277 = vadd.f32 %v550, %v1276
        %1278 = vmatprep.mubr.f32.mxu0 0.0
        %1279 = vmatmul.mubr.f32.gmra.mrb[0].mxu0 %v440
        %v1280 = vpop.f32.mrb[0].mxu0
        %v1281 = vadd.f32 %v546, %v1280
        %v1282 = vpop.f32.mrb[0].mxu0
        %v1283 = vadd.f32 %v550, %v1282
        %1284 = vmatprep.mubr.f32.mxu0 0.0
        %1285 = vmatmul.mubr.f32.gmra.mrb[0].mxu0 %v441
        %v1286 = vpop.f32.mrb[0].mxu0
        %v1287 = vadd.f32 %v546, %v1286
        %v1288 = vpop.f32.mrb[0].mxu0
        %v1289 = vadd.f32 %v550, %v1288
        %1290 = vmatprep.mubr.f32.mxu0 0.0
        %1291 = vmatmul.mubr.f32.gmra.mrb[0].mxu0 %v442
        %v1292 = vpop.f32.mrb[0].mxu0
        %v1293 = vadd.f32 %v546, %v1292
        %v1294 = vpop.f32.mrb[0].mxu0
        %v1295 = vadd.f32 %v550, %v1294
        %1296 = vmatprep.mubr.f32.mxu0 0.0
        %1297 = vmatmul.mubr.f32.gmra.mrb[0].mxu0 %v443
        %v1298 = vpop.f32.mrb[0].mxu0
        %v1299 = vadd.f32 %v546, %v1298
        %v1300 = vpop.f32.mrb[0].mxu0
        %v1301 = vadd.f32 %v550, %v1300
        %1302 = vmatprep.mubr.f32.mxu0 0.0
        %1303 = vmatmul.mubr.f32.gmra.mrb[0].mxu0 %v444
        %v1304 = vpop.f32.mrb[0].mxu0
        %v1305 = vadd.f32 %v546, %v1304
        %v1306 = vpop.f32.mrb[0].mxu0
        %v1307 = vadd.f32 %v550, %v1306
        %1308 = vmatprep.mubr.f32.mxu0 0.0
        %1309 = vmatmul.mubr.f32.gmra.mrb[0].mxu0 %v445
        %v1310 = vpop.f32.mrb[0].mxu0
        %v1311 = vadd.f32 %v546, %v1310
        %v1312 = vpop.f32.mrb[0].mxu0
        %v1313 = vadd.f32 %v550, %v1312
        %1314 = vmatprep.mubr.f32.mxu0 0.0
        %1315 = vmatmul.mubr.f32.gmra.mrb[0].mxu0 %v446
        %v1316 = vpop.f32.mrb[0].mxu0
        %v1317 = vadd.f32 %v546, %v1316
        %v1318 = vpop.f32.mrb[0].mxu0
        %v1319 = vadd.f32 %v550, %v1318
        %1320 = vmatprep.mubr.f32.mxu0 0.0
        %1321 = vmatmul.mubr.f32.gmra.mrb[0].mxu0 %v447
        %v1322 = vpop.f32.mrb[0].mxu0
        %v1323 = vadd.f32 %v546, %v1322
        %v1324 = vpop.f32.mrb[0].mxu0
        %v1325 = vadd.f32 %v550, %v1324
        %1326 = vmatprep.mubr.f32.mxu0 0.0
        %1327 = vmatmul.mubr.f32.gmra.mrb[0].mxu0 %v448
        %v1328 = vpop.f32.mrb[0].mxu0
        %v1329 = vadd.f32 %v546, %v1328
        %v1330 = vpop.f32.mrb[0].mxu0
        %v1331 = vadd.f32 %v550, %v1330
        %1332 = vmatprep.mubr.f32.mxu0 0.0
        %1333 = vmatmul.mubr.f32.gmra.mrb[0].mxu0 %v449
        %v1334 = vpop.f32.mrb[0].mxu0
        %v1335 = vadd.f32 %v546, %v1334
        %v1336 = vpop.f32.mrb[0].mxu0
        %v1337 = vadd.f32 %v550, %v1336
        %1338 = vmatprep.mubr.f32.mxu0 0.0
        %1339 = vmatmul.mubr.f32.gmra.mrb[0].mxu0 %v450
        %v1340 = vpop.f32.mrb[0].mxu0
        %v1341 = vadd.f32 %v546, %v1340
        %v1342 = vpop.f32.mrb[0].mxu0
        %v1343 = vadd.f32 %v550, %v1342
        %1344 = vmatprep.mubr.f32.mxu0 0.0
        %1345 = vmatmul.mubr.f32.gmra.mrb[0].mxu0 %v451
        %v1346 = vpop.f32.mrb[0].mxu0
        %v1347 = vadd.f32 %v546, %v1346
        %v1348 = vpop.f32.mrb[0].mxu0
        %v1349 = vadd.f32 %v550, %v1348
        %1350 = vmatprep.mubr.f32.mxu0 0.0
        %1351 = vmatmul.mubr.f32.gmra.mrb[0].mxu0 %v452
        %v1352 = vpop.f32.mrb[0].mxu0
        %v1353 = vadd.f32 %v546, %v1352
        %v1354 = vpop.f32.mrb[0].mxu0
        %v1355 = vadd.f32 %v550, %v1354
        %1356 = vmatprep.mubr.f32.mxu0 0.0
        %1357 = vmatmul.mubr.f32.gmra.mrb[0].mxu0 %v453
        %v1358 = vpop.f32.mrb[0].mxu0
        %v1359 = vadd.f32 %v546, %v1358
        %v1360 = vpop.f32.mrb[0].mxu0
        %v1361 = vadd.f32 %v550, %v1360
        %1362 = vmatprep.mubr.f32.mxu0 0.0
        %1363 = vmatmul.mubr.f32.gmra.mrb[0].mxu0 %v454
        %v1364 = vpop.f32.mrb[0].mxu0
        %v1365 = vadd.f32 %v546, %v1364
        %v1366 = vpop.f32.mrb[0].mxu0
        %v1367 = vadd.f32 %v550, %v1366
        %1368 = vmatprep.mubr.f32.mxu0 0.0
        %1369 = vmatmul.mubr.f32.gmra.mrb[0].mxu0 %v455
        %v1370 = vpop.f32.mrb[0].mxu0
        %v1371 = vadd.f32 %v546, %v1370
        %v1372 = vpop.f32.mrb[0].mxu0
        %v1373 = vadd.f32 %v550, %v1372
        %1374 = vmatprep.mubr.f32.mxu0 0.0
        %1375 = vmatmul.mubr.f32.gmra.mrb[0].mxu0 %v456
        %v1376 = vpop.f32.mrb[0].mxu0
        %v1377 = vadd.f32 %v546, %v1376
        %v1378 = vpop.f32.mrb[0].mxu0
        %v1379 = vadd.f32 %v550, %v1378
        %1380 = vmatprep.mubr.f32.mxu0 0.0
        %1381 = vmatmul.mubr.f32.gmra.mrb[0].mxu0 %v457
        %v1382 = vpop.f32.mrb[0].mxu0
        %v1383 = vadd.f32 %v546, %v1382
        %v1384 = vpop.f32.mrb[0].mxu0
        %v1385 = vadd.f32 %v550, %v1384
        %1386 = vmatprep.mubr.f32.mxu0 0.0
        %1387 = vmatmul.mubr.f32.gmra.mrb[0].mxu0 %v458
        %v1388 = vpop.f32.mrb[0].mxu0
        %v1389 = vadd.f32 %v546, %v1388
        %v1390 = vpop.f32.mrb[0].mxu0
        %v1391 = vadd.f32 %v550, %v1390
        %1392 = vmatprep.mubr.f32.mxu0 0.0
        %1393 = vmatmul.mubr.f32.gmra.mrb[0].mxu0 %v459
        %v1394 = vpop.f32.mrb[0].mxu0
        %v1395 = vadd.f32 %v546, %v1394
        %v1396 = vpop.f32.mrb[0].mxu0
        %v1397 = vadd.f32 %v550, %v1396
        %1398 = vmatprep.mubr.f32.mxu0 0.0
        %1399 = vmatmul.mubr.f32.gmra.mrb[0].mxu0 %v460
        %v1400 = vpop.f32.mrb[0].mxu0
        %v1401 = vadd.f32 %v546, %v1400
        %v1402 = vpop.f32.mrb[0].mxu0
        %v1403 = vadd.f32 %v550, %v1402
        %1404 = vmatprep.mubr.f32.mxu0 0.0
        %1405 = vmatmul.mubr.f32.gmra.mrb[0].mxu0 %v461
        %v1406 = vpop.f32.mrb[0].mxu0
        %v1407 = vadd.f32 %v546, %v1406
        %v1408 = vpop.f32.mrb[0].mxu0
        %v1409 = vadd.f32 %v550, %v1408
        %1410 = vmatprep.mubr.f32.mxu0 0.0
        %1411 = vmatmul.mubr.f32.gmra.mrb[0].mxu0 %v462
        %v1412 = vpop.f32.mrb[0].mxu0
        %v1413 = vadd.f32 %v546, %v1412
        %v1414 = vpop.f32.mrb[0].mxu0
        %v1415 = vadd.f32 %v550, %v1414
        %1416 = vmatprep.mubr.f32.mxu0 0.0
        %1417 = vmatmul.mubr.f32.gmra.mrb[0].mxu0 %v463
        %v1418 = vpop.f32.mrb[0].mxu0
        %v1419 = vadd.f32 %v546, %v1418
        %v1420 = vpop.f32.mrb[0].mxu0
        %v1421 = vadd.f32 %v550, %v1420
        %1422 = vmatprep.mubr.f32.mxu0 0.0
        %1423 = vmatmul.mubr.f32.gmra.mrb[0].mxu0 %v464
        %v1424 = vpop.f32.mrb[0].mxu0
        %v1425 = vadd.f32 %v546, %v1424
        %v1426 = vpop.f32.mrb[0].mxu0
        %v1427 = vadd.f32 %v550, %v1426
        %1428 = vmatprep.mubr.f32.mxu0 0.0
        %1429 = vmatmul.mubr.f32.gmra.mrb[0].mxu0 %v465
        %v1430 = vpop.f32.mrb[0].mxu0
        %v1431 = vadd.f32 %v546, %v1430
        %v1432 = vpop.f32.mrb[0].mxu0
        %v1433 = vadd.f32 %v550, %v1432
        %1434 = vmatprep.mubr.f32.mxu0 0.0
        %1435 = vmatmul.mubr.f32.gmra.mrb[0].mxu0 %v466
        %v1436 = vpop.f32.mrb[0].mxu0
        %v1437 = vadd.f32 %v546, %v1436
        %v1438 = vpop.f32.mrb[0].mxu0
        %v1439 = vadd.f32 %v550, %v1438
        %1440 = vmatprep.mubr.f32.mxu0 0.0
        %1441 = vmatmul.mubr.f32.gmra.mrb[0].mxu0 %v467
        %v1442 = vpop.f32.mrb[0].mxu0
        %v1443 = vadd.f32 %v546, %v1442
        %v1444 = vpop.f32.mrb[0].mxu0
        %v1445 = vadd.f32 %v550, %v1444
        %1446 = vmatprep.mubr.f32.mxu0 0.0
        %1447 = vmatmul.mubr.f32.gmra.mrb[0].mxu0 %v468
        %v1448 = vpop.f32.mrb[0].mxu0
        %v1449 = vadd.f32 %v546, %v1448
        %v1450 = vpop.f32.mrb[0].mxu0
        %v1451 = vadd.f32 %v550, %v1450
        %1452 = vdwg.mxu0
        %v1453 = vmul.f32 %v622, %v622
        %v1454 = vmul.f32 %v624, %v624
        %v1455 = vmul.f32 %v1071, %v1071
        %v1456 = vmul.f32 %v1073, %v1073
        %v1457 = vmul.f32 %v628, %v628
        %v1458 = vmul.f32 %v630, %v630
        %v1459 = vmul.f32 %v1077, %v1077
        %v1460 = vmul.f32 %v1079, %v1079
        %v1461 = vmul.f32 %v634, %v634
        %v1462 = vmul.f32 %v636, %v636
        %v1463 = vmul.f32 %v1083, %v1083
        %v1464 = vmul.f32 %v1085, %v1085
        %v1465 = vmul.f32 %v640, %v640
        %v1466 = vmul.f32 %v642, %v642
        %v1467 = vmul.f32 %v1089, %v1089
        %v1468 = vmul.f32 %v1091, %v1091
        %v1469 = vmul.f32 %v646, %v646
        %v1470 = vmul.f32 %v648, %v648
        %v1471 = vmul.f32 %v1095, %v1095
        %v1472 = vmul.f32 %v1097, %v1097
        %v1473 = vmul.f32 %v652, %v652
        %v1474 = vmul.f32 %v654, %v654
        %v1475 = vmul.f32 %v1101, %v1101
        %v1476 = vmul.f32 %v1103, %v1103
        %v1477 = vmul.f32 %v658, %v658
        %v1478 = vmul.f32 %v660, %v660
        %v1479 = vmul.f32 %v1107, %v1107
        %v1480 = vmul.f32 %v1109, %v1109
        %v1481 = vmul.f32 %v664, %v664
        %v1482 = vmul.f32 %v666, %v666
        %v1483 = vmul.f32 %v1113, %v1113
        %v1484 = vmul.f32 %v1115, %v1115
        %v1485 = vmul.f32 %v670, %v670
        %v1486 = vmul.f32 %v672, %v672
        %v1487 = vmul.f32 %v1119, %v1119
        %v1488 = vmul.f32 %v1121, %v1121
        %v1489 = vmul.f32 %v676, %v676
        %v1490 = vmul.f32 %v678, %v678
        %v1491 = vmul.f32 %v1125, %v1125
        %v1492 = vmul.f32 %v1127, %v1127
        %v1493 = vmul.f32 %v682, %v682
        %v1494 = vmul.f32 %v684, %v684
        %v1495 = vmul.f32 %v1131, %v1131
        %v1496 = vmul.f32 %v1133, %v1133
        %v1497 = vmul.f32 %v688, %v688
        %v1498 = vmul.f32 %v690, %v690
        %v1499 = vmul.f32 %v1137, %v1137
        %v1500 = vmul.f32 %v1139, %v1139
        %v1501 = vmul.f32 %v694, %v694
        %v1502 = vmul.f32 %v696, %v696
        %v1503 = vmul.f32 %v1143, %v1143
        %v1504 = vmul.f32 %v1145, %v1145
        %v1505 = vmul.f32 %v700, %v700
        %v1506 = vmul.f32 %v702, %v702
        %v1507 = vmul.f32 %v1149, %v1149
        %v1508 = vmul.f32 %v1151, %v1151
        %v1509 = vmul.f32 %v706, %v706
        %v1510 = vmul.f32 %v708, %v708
        %v1511 = vmul.f32 %v1155, %v1155
        %v1512 = vmul.f32 %v1157, %v1157
        %v1513 = vmul.f32 %v712, %v712
        %v1514 = vmul.f32 %v714, %v714
        %v1515 = vmul.f32 %v1161, %v1161
        %v1516 = vmul.f32 %v1163, %v1163
        %v1517 = vmul.f32 %v718, %v718
        %v1518 = vmul.f32 %v720, %v720
        %v1519 = vmul.f32 %v1167, %v1167
        %v1520 = vmul.f32 %v1169, %v1169
        %v1521 = vmul.f32 %v724, %v724
        %v1522 = vmul.f32 %v726, %v726
        %v1523 = vmul.f32 %v1173, %v1173
        %v1524 = vmul.f32 %v1175, %v1175
        %v1525 = vmul.f32 %v730, %v730
        %v1526 = vmul.f32 %v732, %v732
        %v1527 = vmul.f32 %v1179, %v1179
        %v1528 = vmul.f32 %v1181, %v1181
        %v1529 = vmul.f32 %v736, %v736
        %v1530 = vmul.f32 %v738, %v738
        %v1531 = vmul.f32 %v1185, %v1185
        %v1532 = vmul.f32 %v1187, %v1187
        %v1533 = vmul.f32 %v742, %v742
        %v1534 = vmul.f32 %v744, %v744
        %v1535 = vmul.f32 %v1191, %v1191
        %v1536 = vmul.f32 %v1193, %v1193
        %v1537 = vmul.f32 %v748, %v748
        %v1538 = vmul.f32 %v750, %v750
        %v1539 = vmul.f32 %v1197, %v1197
        %v1540 = vmul.f32 %v1199, %v1199
        %v1541 = vmul.f32 %v754, %v754
        %v1542 = vmul.f32 %v756, %v756
        %v1543 = vmul.f32 %v1203, %v1203
        %v1544 = vmul.f32 %v1205, %v1205
        %v1545 = vmul.f32 %v760, %v760
        %v1546 = vmul.f32 %v762, %v762
        %v1547 = vmul.f32 %v1209, %v1209
        %v1548 = vmul.f32 %v1211, %v1211
        %v1549 = vmul.f32 %v766, %v766
        %v1550 = vmul.f32 %v768, %v768
        %v1551 = vmul.f32 %v1215, %v1215
        %v1552 = vmul.f32 %v1217, %v1217
        %v1553 = vmul.f32 %v772, %v772
        %v1554 = vmul.f32 %v774, %v774
        %v1555 = vmul.f32 %v1221, %v1221
        %v1556 = vmul.f32 %v1223, %v1223
        %v1557 = vmul.f32 %v778, %v778
        %v1558 = vmul.f32 %v780, %v780
        %v1559 = vmul.f32 %v1227, %v1227
        %v1560 = vmul.f32 %v1229, %v1229
        %v1561 = vmul.f32 %v784, %v784
        %v1562 = vmul.f32 %v786, %v786
        %v1563 = vmul.f32 %v1233, %v1233
        %v1564 = vmul.f32 %v1235, %v1235
        %v1565 = vmul.f32 %v790, %v790
        %v1566 = vmul.f32 %v792, %v792
        %v1567 = vmul.f32 %v1239, %v1239
        %v1568 = vmul.f32 %v1241, %v1241
        %v1569 = vmul.f32 %v796, %v796
        %v1570 = vmul.f32 %v798, %v798
        %v1571 = vmul.f32 %v1245, %v1245
        %v1572 = vmul.f32 %v1247, %v1247
        %v1573 = vmul.f32 %v802, %v802
        %v1574 = vmul.f32 %v804, %v804
        %v1575 = vmul.f32 %v1251, %v1251
        %v1576 = vmul.f32 %v1253, %v1253
        %v1577 = vmul.f32 %v808, %v808
        %v1578 = vmul.f32 %v810, %v810
        %v1579 = vmul.f32 %v1257, %v1257
        %v1580 = vmul.f32 %v1259, %v1259
        %v1581 = vmul.f32 %v814, %v814
        %v1582 = vmul.f32 %v816, %v816
        %v1583 = vmul.f32 %v1263, %v1263
        %v1584 = vmul.f32 %v1265, %v1265
        %v1585 = vmul.f32 %v820, %v820
        %v1586 = vmul.f32 %v822, %v822
        %v1587 = vmul.f32 %v1269, %v1269
        %v1588 = vmul.f32 %v1271, %v1271
        %v1589 = vmul.f32 %v826, %v826
        %v1590 = vmul.f32 %v828, %v828
        %v1591 = vmul.f32 %v1275, %v1275
        %v1592 = vmul.f32 %v1277, %v1277
        %v1593 = vmul.f32 %v832, %v832
        %v1594 = vmul.f32 %v834, %v834
        %v1595 = vmul.f32 %v1281, %v1281
        %v1596 = vmul.f32 %v1283, %v1283
        %v1597 = vmul.f32 %v838, %v838
        %v1598 = vmul.f32 %v840, %v840
        %v1599 = vmul.f32 %v1287, %v1287
        %v1600 = vmul.f32 %v1289, %v1289
        %v1601 = vmul.f32 %v844, %v844
        %v1602 = vmul.f32 %v846, %v846
        %v1603 = vmul.f32 %v1293, %v1293
        %v1604 = vmul.f32 %v1295, %v1295
        %v1605 = vmul.f32 %v850, %v850
        %v1606 = vmul.f32 %v852, %v852
        %v1607 = vmul.f32 %v1299, %v1299
        %v1608 = vmul.f32 %v1301, %v1301
        %v1609 = vmul.f32 %v856, %v856
        %v1610 = vmul.f32 %v858, %v858
        %v1611 = vmul.f32 %v1305, %v1305
        %v1612 = vmul.f32 %v1307, %v1307
        %v1613 = vmul.f32 %v862, %v862
        %v1614 = vmul.f32 %v864, %v864
        %v1615 = vmul.f32 %v1311, %v1311
        %v1616 = vmul.f32 %v1313, %v1313
        %v1617 = vmul.f32 %v868, %v868
        %v1618 = vmul.f32 %v870, %v870
        %v1619 = vmul.f32 %v1317, %v1317
        %v1620 = vmul.f32 %v1319, %v1319
        %v1621 = vmul.f32 %v874, %v874
        %v1622 = vmul.f32 %v876, %v876
        %v1623 = vmul.f32 %v1323, %v1323
        %v1624 = vmul.f32 %v1325, %v1325
        %v1625 = vmul.f32 %v880, %v880
        %v1626 = vmul.f32 %v882, %v882
        %v1627 = vmul.f32 %v1329, %v1329
        %v1628 = vmul.f32 %v1331, %v1331
        %v1629 = vmul.f32 %v886, %v886
        %v1630 = vmul.f32 %v888, %v888
        %v1631 = vmul.f32 %v1335, %v1335
        %v1632 = vmul.f32 %v1337, %v1337
        %v1633 = vmul.f32 %v892, %v892
        %v1634 = vmul.f32 %v894, %v894
        %v1635 = vmul.f32 %v1341, %v1341
        %v1636 = vmul.f32 %v1343, %v1343
        %v1637 = vmul.f32 %v898, %v898
        %v1638 = vmul.f32 %v900, %v900
        %v1639 = vmul.f32 %v1347, %v1347
        %v1640 = vmul.f32 %v1349, %v1349
        %v1641 = vmul.f32 %v904, %v904
        %v1642 = vmul.f32 %v906, %v906
        %v1643 = vmul.f32 %v1353, %v1353
        %v1644 = vmul.f32 %v1355, %v1355
        %v1645 = vmul.f32 %v910, %v910
        %v1646 = vmul.f32 %v912, %v912
        %v1647 = vmul.f32 %v1359, %v1359
        %v1648 = vmul.f32 %v1361, %v1361
        %v1649 = vmul.f32 %v916, %v916
        %v1650 = vmul.f32 %v918, %v918
        %v1651 = vmul.f32 %v1365, %v1365
        %v1652 = vmul.f32 %v1367, %v1367
        %v1653 = vmul.f32 %v922, %v922
        %v1654 = vmul.f32 %v924, %v924
        %v1655 = vmul.f32 %v1371, %v1371
        %v1656 = vmul.f32 %v1373, %v1373
        %v1657 = vmul.f32 %v928, %v928
        %v1658 = vmul.f32 %v930, %v930
        %v1659 = vmul.f32 %v1377, %v1377
        %v1660 = vmul.f32 %v1379, %v1379
        %v1661 = vmul.f32 %v934, %v934
        %v1662 = vmul.f32 %v936, %v936
        %v1663 = vmul.f32 %v1383, %v1383
        %v1664 = vmul.f32 %v1385, %v1385
        %v1665 = vmul.f32 %v940, %v940
        %v1666 = vmul.f32 %v942, %v942
        %v1667 = vmul.f32 %v1389, %v1389
        %v1668 = vmul.f32 %v1391, %v1391
        %v1669 = vmul.f32 %v946, %v946
        %v1670 = vmul.f32 %v948, %v948
        %v1671 = vmul.f32 %v1395, %v1395
        %v1672 = vmul.f32 %v1397, %v1397
        %v1673 = vmul.f32 %v952, %v952
        %v1674 = vmul.f32 %v954, %v954
        %v1675 = vmul.f32 %v1401, %v1401
        %v1676 = vmul.f32 %v1403, %v1403
        %v1677 = vmul.f32 %v958, %v958
        %v1678 = vmul.f32 %v960, %v960
        %v1679 = vmul.f32 %v1407, %v1407
        %v1680 = vmul.f32 %v1409, %v1409
        %v1681 = vmul.f32 %v964, %v964
        %v1682 = vmul.f32 %v966, %v966
        %v1683 = vmul.f32 %v1413, %v1413
        %v1684 = vmul.f32 %v1415, %v1415
        %v1685 = vmul.f32 %v970, %v970
        %v1686 = vmul.f32 %v972, %v972
        %v1687 = vmul.f32 %v1419, %v1419
        %v1688 = vmul.f32 %v1421, %v1421
        %v1689 = vmul.f32 %v976, %v976
        %v1690 = vmul.f32 %v978, %v978
        %v1691 = vmul.f32 %v1425, %v1425
        %v1692 = vmul.f32 %v1427, %v1427
        %v1693 = vmul.f32 %v982, %v982
        %v1694 = vmul.f32 %v984, %v984
        %v1695 = vmul.f32 %v1431, %v1431
        %v1696 = vmul.f32 %v1433, %v1433
        %v1697 = vmul.f32 %v988, %v988
        %v1698 = vmul.f32 %v990, %v990
        %v1699 = vmul.f32 %v1437, %v1437
        %v1700 = vmul.f32 %v1439, %v1439
        %v1701 = vmul.f32 %v994, %v994
        %v1702 = vmul.f32 %v996, %v996
        %v1703 = vmul.f32 %v1443, %v1443
        %v1704 = vmul.f32 %v1445, %v1445
        %v1705 = vmul.f32 %v1000, %v1000
        %v1706 = vmul.f32 %v1002, %v1002
        %v1707 = vmul.f32 %v1449, %v1449
        %v1708 = vmul.f32 %v1451, %v1451
        %v1709 = vmul.f32 %v1453, 0.035677407
        %v1710 = vmul.f32 %v1454, 0.035677407
        %v1711 = vmul.f32 %v1455, 0.035677407
        %v1712 = vmul.f32 %v1456, 0.035677407
        %v1713 = vmul.f32 %v1457, 0.035677407
        %v1714 = vmul.f32 %v1458, 0.035677407
        %v1715 = vmul.f32 %v1459, 0.035677407
        %v1716 = vmul.f32 %v1460, 0.035677407
        %v1717 = vmul.f32 %v1461, 0.035677407
        %v1718 = vmul.f32 %v1462, 0.035677407
        %v1719 = vmul.f32 %v1463, 0.035677407
        %v1720 = vmul.f32 %v1464, 0.035677407
        %v1721 = vmul.f32 %v1465, 0.035677407
        %v1722 = vmul.f32 %v1466, 0.035677407
        %v1723 = vmul.f32 %v1467, 0.035677407
        %v1724 = vmul.f32 %v1468, 0.035677407
        %v1725 = vmul.f32 %v1469, 0.035677407
        %v1726 = vmul.f32 %v1470, 0.035677407
        %v1727 = vmul.f32 %v1471, 0.035677407
        %v1728 = vmul.f32 %v1472, 0.035677407
        %v1729 = vmul.f32 %v1473, 0.035677407
        %v1730 = vmul.f32 %v1474, 0.035677407
        %v1731 = vmul.f32 %v1475, 0.035677407
        %v1732 = vmul.f32 %v1476, 0.035677407
        %v1733 = vmul.f32 %v1477, 0.035677407
        %v1734 = vmul.f32 %v1478, 0.035677407
        %v1735 = vmul.f32 %v1479, 0.035677407
        %v1736 = vmul.f32 %v1480, 0.035677407
        %v1737 = vmul.f32 %v1481, 0.035677407
        %v1738 = vmul.f32 %v1482, 0.035677407
        %v1739 = vmul.f32 %v1483, 0.035677407
        %v1740 = vmul.f32 %v1484, 0.035677407
        %v1741 = vmul.f32 %v1485, 0.035677407
        %v1742 = vmul.f32 %v1486, 0.035677407
        %v1743 = vmul.f32 %v1487, 0.035677407
        %v1744 = vmul.f32 %v1488, 0.035677407
        %v1745 = vmul.f32 %v1489, 0.035677407
        %v1746 = vmul.f32 %v1490, 0.035677407
        %v1747 = vmul.f32 %v1491, 0.035677407
        %v1748 = vmul.f32 %v1492, 0.035677407
        %v1749 = vmul.f32 %v1493, 0.035677407
        %v1750 = vmul.f32 %v1494, 0.035677407
        %v1751 = vmul.f32 %v1495, 0.035677407
        %v1752 = vmul.f32 %v1496, 0.035677407
        %v1753 = vmul.f32 %v1497, 0.035677407
        %v1754 = vmul.f32 %v1498, 0.035677407
        %v1755 = vmul.f32 %v1499, 0.035677407
        %v1756 = vmul.f32 %v1500, 0.035677407
        %v1757 = vmul.f32 %v1501, 0.035677407
        %v1758 = vmul.f32 %v1502, 0.035677407
        %v1759 = vmul.f32 %v1503, 0.035677407
        %v1760 = vmul.f32 %v1504, 0.035677407
        %v1761 = vmul.f32 %v1505, 0.035677407
        %v1762 = vmul.f32 %v1506, 0.035677407
        %v1763 = vmul.f32 %v1507, 0.035677407
        %v1764 = vmul.f32 %v1508, 0.035677407
        %v1765 = vmul.f32 %v1509, 0.035677407
        %v1766 = vmul.f32 %v1510, 0.035677407
        %v1767 = vmul.f32 %v1511, 0.035677407
        %v1768 = vmul.f32 %v1512, 0.035677407
        %v1769 = vmul.f32 %v1513, 0.035677407
        %v1770 = vmul.f32 %v1514, 0.035677407
        %v1771 = vmul.f32 %v1515, 0.035677407
        %v1772 = vmul.f32 %v1516, 0.035677407
        %v1773 = vmul.f32 %v1517, 0.035677407
        %v1774 = vmul.f32 %v1518, 0.035677407
        %v1775 = vmul.f32 %v1519, 0.035677407
        %v1776 = vmul.f32 %v1520, 0.035677407
        %v1777 = vmul.f32 %v1521, 0.035677407
        %v1778 = vmul.f32 %v1522, 0.035677407
        %v1779 = vmul.f32 %v1523, 0.035677407
        %v1780 = vmul.f32 %v1524, 0.035677407
        %v1781 = vmul.f32 %v1525, 0.035677407
        %v1782 = vmul.f32 %v1526, 0.035677407
        %v1783 = vmul.f32 %v1527, 0.035677407
        %v1784 = vmul.f32 %v1528, 0.035677407
        %v1785 = vmul.f32 %v1529, 0.035677407
        %v1786 = vmul.f32 %v1530, 0.035677407
        %v1787 = vmul.f32 %v1531, 0.035677407
        %v1788 = vmul.f32 %v1532, 0.035677407
        %v1789 = vmul.f32 %v1533, 0.035677407
        %v1790 = vmul.f32 %v1534, 0.035677407
        %v1791 = vmul.f32 %v1535, 0.035677407
        %v1792 = vmul.f32 %v1536, 0.035677407
        %v1793 = vmul.f32 %v1537, 0.035677407
        %v1794 = vmul.f32 %v1538, 0.035677407
        %v1795 = vmul.f32 %v1539, 0.035677407
        %v1796 = vmul.f32 %v1540, 0.035677407
        %v1797 = vmul.f32 %v1541, 0.035677407
        %v1798 = vmul.f32 %v1542, 0.035677407
        %v1799 = vmul.f32 %v1543, 0.035677407
        %v1800 = vmul.f32 %v1544, 0.035677407
        %v1801 = vmul.f32 %v1545, 0.035677407
        %v1802 = vmul.f32 %v1546, 0.035677407
        %v1803 = vmul.f32 %v1547, 0.035677407
        %v1804 = vmul.f32 %v1548, 0.035677407
        %v1805 = vmul.f32 %v1549, 0.035677407
        %v1806 = vmul.f32 %v1550, 0.035677407
        %v1807 = vmul.f32 %v1551, 0.035677407
        %v1808 = vmul.f32 %v1552, 0.035677407
        %v1809 = vmul.f32 %v1553, 0.035677407
        %v1810 = vmul.f32 %v1554, 0.035677407
        %v1811 = vmul.f32 %v1555, 0.035677407
        %v1812 = vmul.f32 %v1556, 0.035677407
        %v1813 = vmul.f32 %v1557, 0.035677407
        %v1814 = vmul.f32 %v1558, 0.035677407
        %v1815 = vmul.f32 %v1559, 0.035677407
        %v1816 = vmul.f32 %v1560, 0.035677407
        %v1817 = vmul.f32 %v1561, 0.035677407
        %v1818 = vmul.f32 %v1562, 0.035677407
        %v1819 = vmul.f32 %v1563, 0.035677407
        %v1820 = vmul.f32 %v1564, 0.035677407
        %v1821 = vmul.f32 %v1565, 0.035677407
        %v1822 = vmul.f32 %v1566, 0.035677407
        %v1823 = vmul.f32 %v1567, 0.035677407
        %v1824 = vmul.f32 %v1568, 0.035677407
        %v1825 = vmul.f32 %v1569, 0.035677407
        %v1826 = vmul.f32 %v1570, 0.035677407
        %v1827 = vmul.f32 %v1571, 0.035677407
        %v1828 = vmul.f32 %v1572, 0.035677407
        %v1829 = vmul.f32 %v1573, 0.035677407
        %v1830 = vmul.f32 %v1574, 0.035677407
        %v1831 = vmul.f32 %v1575, 0.035677407
        %v1832 = vmul.f32 %v1576, 0.035677407
        %v1833 = vmul.f32 %v1577, 0.035677407
        %v1834 = vmul.f32 %v1578, 0.035677407
        %v1835 = vmul.f32 %v1579, 0.035677407
        %v1836 = vmul.f32 %v1580, 0.035677407
        %v1837 = vmul.f32 %v1581, 0.035677407
        %v1838 = vmul.f32 %v1582, 0.035677407
        %v1839 = vmul.f32 %v1583, 0.035677407
        %v1840 = vmul.f32 %v1584, 0.035677407
        %v1841 = vmul.f32 %v1585, 0.035677407
        %v1842 = vmul.f32 %v1586, 0.035677407
        %v1843 = vmul.f32 %v1587, 0.035677407
        %v1844 = vmul.f32 %v1588, 0.035677407
        %v1845 = vmul.f32 %v1589, 0.035677407
        %v1846 = vmul.f32 %v1590, 0.035677407
        %v1847 = vmul.f32 %v1591, 0.035677407
        %v1848 = vmul.f32 %v1592, 0.035677407
        %v1849 = vmul.f32 %v1593, 0.035677407
        %v1850 = vmul.f32 %v1594, 0.035677407
        %v1851 = vmul.f32 %v1595, 0.035677407
        %v1852 = vmul.f32 %v1596, 0.035677407
        %v1853 = vmul.f32 %v1597, 0.035677407
        %v1854 = vmul.f32 %v1598, 0.035677407
        %v1855 = vmul.f32 %v1599, 0.035677407
        %v1856 = vmul.f32 %v1600, 0.035677407
        %v1857 = vmul.f32 %v1601, 0.035677407
        %v1858 = vmul.f32 %v1602, 0.035677407
        %v1859 = vmul.f32 %v1603, 0.035677407
        %v1860 = vmul.f32 %v1604, 0.035677407
        %v1861 = vmul.f32 %v1605, 0.035677407
        %v1862 = vmul.f32 %v1606, 0.035677407
        %v1863 = vmul.f32 %v1607, 0.035677407
        %v1864 = vmul.f32 %v1608, 0.035677407
        %v1865 = vmul.f32 %v1609, 0.035677407
        %v1866 = vmul.f32 %v1610, 0.035677407
        %v1867 = vmul.f32 %v1611, 0.035677407
        %v1868 = vmul.f32 %v1612, 0.035677407
        %v1869 = vmul.f32 %v1613, 0.035677407
        %v1870 = vmul.f32 %v1614, 0.035677407
        %v1871 = vmul.f32 %v1615, 0.035677407
        %v1872 = vmul.f32 %v1616, 0.035677407
        %v1873 = vmul.f32 %v1617, 0.035677407
        %v1874 = vmul.f32 %v1618, 0.035677407
        %v1875 = vmul.f32 %v1619, 0.035677407
        %v1876 = vmul.f32 %v1620, 0.035677407
        %v1877 = vmul.f32 %v1621, 0.035677407
        %v1878 = vmul.f32 %v1622, 0.035677407
        %v1879 = vmul.f32 %v1623, 0.035677407
        %v1880 = vmul.f32 %v1624, 0.035677407
        %v1881 = vmul.f32 %v1625, 0.035677407
        %v1882 = vmul.f32 %v1626, 0.035677407
        %v1883 = vmul.f32 %v1627, 0.035677407
        %v1884 = vmul.f32 %v1628, 0.035677407
        %v1885 = vmul.f32 %v1629, 0.035677407
        %v1886 = vmul.f32 %v1630, 0.035677407
        %v1887 = vmul.f32 %v1631, 0.035677407
        %v1888 = vmul.f32 %v1632, 0.035677407
        %v1889 = vmul.f32 %v1633, 0.035677407
        %v1890 = vmul.f32 %v1634, 0.035677407
        %v1891 = vmul.f32 %v1635, 0.035677407
        %v1892 = vmul.f32 %v1636, 0.035677407
        %v1893 = vmul.f32 %v1637, 0.035677407
        %v1894 = vmul.f32 %v1638, 0.035677407
        %v1895 = vmul.f32 %v1639, 0.035677407
        %v1896 = vmul.f32 %v1640, 0.035677407
        %v1897 = vmul.f32 %v1641, 0.035677407
        %v1898 = vmul.f32 %v1642, 0.035677407
        %v1899 = vmul.f32 %v1643, 0.035677407
        %v1900 = vmul.f32 %v1644, 0.035677407
        %v1901 = vmul.f32 %v1645, 0.035677407
        %v1902 = vmul.f32 %v1646, 0.035677407
        %v1903 = vmul.f32 %v1647, 0.035677407
        %v1904 = vmul.f32 %v1648, 0.035677407
        %v1905 = vmul.f32 %v1649, 0.035677407
        %v1906 = vmul.f32 %v1650, 0.035677407
        %v1907 = vmul.f32 %v1651, 0.035677407
        %v1908 = vmul.f32 %v1652, 0.035677407
        %v1909 = vmul.f32 %v1653, 0.035677407
        %v1910 = vmul.f32 %v1654, 0.035677407
        %v1911 = vmul.f32 %v1655, 0.035677407
        %v1912 = vmul.f32 %v1656, 0.035677407
        %v1913 = vmul.f32 %v1657, 0.035677407
        %v1914 = vmul.f32 %v1658, 0.035677407
        %v1915 = vmul.f32 %v1659, 0.035677407
        %v1916 = vmul.f32 %v1660, 0.035677407
        %v1917 = vmul.f32 %v1661, 0.035677407
        %v1918 = vmul.f32 %v1662, 0.035677407
        %v1919 = vmul.f32 %v1663, 0.035677407
        %v1920 = vmul.f32 %v1664, 0.035677407
        %v1921 = vmul.f32 %v1665, 0.035677407
        %v1922 = vmul.f32 %v1666, 0.035677407
        %v1923 = vmul.f32 %v1667, 0.035677407
        %v1924 = vmul.f32 %v1668, 0.035677407
        %v1925 = vmul.f32 %v1669, 0.035677407
        %v1926 = vmul.f32 %v1670, 0.035677407
        %v1927 = vmul.f32 %v1671, 0.035677407
        %v1928 = vmul.f32 %v1672, 0.035677407
        %v1929 = vmul.f32 %v1673, 0.035677407
        %v1930 = vmul.f32 %v1674, 0.035677407
        %v1931 = vmul.f32 %v1675, 0.035677407
        %v1932 = vmul.f32 %v1676, 0.035677407
        %v1933 = vmul.f32 %v1677, 0.035677407
        %v1934 = vmul.f32 %v1678, 0.035677407
        %v1935 = vmul.f32 %v1679, 0.035677407
        %v1936 = vmul.f32 %v1680, 0.035677407
        %v1937 = vmul.f32 %v1681, 0.035677407
        %v1938 = vmul.f32 %v1682, 0.035677407
        %v1939 = vmul.f32 %v1683, 0.035677407
        %v1940 = vmul.f32 %v1684, 0.035677407
        %v1941 = vmul.f32 %v1685, 0.035677407
        %v1942 = vmul.f32 %v1686, 0.035677407
        %v1943 = vmul.f32 %v1687, 0.035677407
        %v1944 = vmul.f32 %v1688, 0.035677407
        %v1945 = vmul.f32 %v1689, 0.035677407
        %v1946 = vmul.f32 %v1690, 0.035677407
        %v1947 = vmul.f32 %v1691, 0.035677407
        %v1948 = vmul.f32 %v1692, 0.035677407
        %v1949 = vmul.f32 %v1693, 0.035677407
        %v1950 = vmul.f32 %v1694, 0.035677407
        %v1951 = vmul.f32 %v1695, 0.035677407
        %v1952 = vmul.f32 %v1696, 0.035677407
        %v1953 = vmul.f32 %v1697, 0.035677407
        %v1954 = vmul.f32 %v1698, 0.035677407
        %v1955 = vmul.f32 %v1699, 0.035677407
        %v1956 = vmul.f32 %v1700, 0.035677407
        %v1957 = vmul.f32 %v1701, 0.035677407
        %v1958 = vmul.f32 %v1702, 0.035677407
        %v1959 = vmul.f32 %v1703, 0.035677407
        %v1960 = vmul.f32 %v1704, 0.035677407
        %v1961 = vmul.f32 %v1705, 0.035677407
        %v1962 = vmul.f32 %v1706, 0.035677407
        %v1963 = vmul.f32 %v1707, 0.035677407
        %v1964 = vmul.f32 %v1708, 0.035677407
        %v1965 = vadd.f32 %v1709, 0.7978846
        %v1966 = vadd.f32 %v1710, 0.7978846
        %v1967 = vadd.f32 %v1711, 0.7978846
        %v1968 = vadd.f32 %v1712, 0.7978846
        %v1969 = vadd.f32 %v1713, 0.7978846
        %v1970 = vadd.f32 %v1714, 0.7978846
        %v1971 = vadd.f32 %v1715, 0.7978846
        %v1972 = vadd.f32 %v1716, 0.7978846
        %v1973 = vadd.f32 %v1717, 0.7978846
        %v1974 = vadd.f32 %v1718, 0.7978846
        %v1975 = vadd.f32 %v1719, 0.7978846
        %v1976 = vadd.f32 %v1720, 0.7978846
        %v1977 = vadd.f32 %v1721, 0.7978846
        %v1978 = vadd.f32 %v1722, 0.7978846
        %v1979 = vadd.f32 %v1723, 0.7978846
        %v1980 = vadd.f32 %v1724, 0.7978846
        %v1981 = vadd.f32 %v1725, 0.7978846
        %v1982 = vadd.f32 %v1726, 0.7978846
        %v1983 = vadd.f32 %v1727, 0.7978846
        %v1984 = vadd.f32 %v1728, 0.7978846
        %v1985 = vadd.f32 %v1729, 0.7978846
        %v1986 = vadd.f32 %v1730, 0.7978846
        %v1987 = vadd.f32 %v1731, 0.7978846
        %v1988 = vadd.f32 %v1732, 0.7978846
        %v1989 = vadd.f32 %v1733, 0.7978846
        %v1990 = vadd.f32 %v1734, 0.7978846
        %v1991 = vadd.f32 %v1735, 0.7978846
        %v1992 = vadd.f32 %v1736, 0.7978846
        %v1993 = vadd.f32 %v1737, 0.7978846
        %v1994 = vadd.f32 %v1738, 0.7978846
        %v1995 = vadd.f32 %v1739, 0.7978846
        %v1996 = vadd.f32 %v1740, 0.7978846
        %v1997 = vadd.f32 %v1741, 0.7978846
        %v1998 = vadd.f32 %v1742, 0.7978846
        %v1999 = vadd.f32 %v1743, 0.7978846
        %v2000 = vadd.f32 %v1744, 0.7978846
        %v2001 = vadd.f32 %v1745, 0.7978846
        %v2002 = vadd.f32 %v1746, 0.7978846
        %v2003 = vadd.f32 %v1747, 0.7978846
        %v2004 = vadd.f32 %v1748, 0.7978846
        %v2005 = vadd.f32 %v1749, 0.7978846
        %v2006 = vadd.f32 %v1750, 0.7978846
        %v2007 = vadd.f32 %v1751, 0.7978846
        %v2008 = vadd.f32 %v1752, 0.7978846
        %v2009 = vadd.f32 %v1753, 0.7978846
        %v2010 = vadd.f32 %v1754, 0.7978846
        %v2011 = vadd.f32 %v1755, 0.7978846
        %v2012 = vadd.f32 %v1756, 0.7978846
        %v2013 = vadd.f32 %v1757, 0.7978846
        %v2014 = vadd.f32 %v1758, 0.7978846
        %v2015 = vadd.f32 %v1759, 0.7978846
        %v2016 = vadd.f32 %v1760, 0.7978846
        %v2017 = vadd.f32 %v1761, 0.7978846
        %v2018 = vadd.f32 %v1762, 0.7978846
        %v2019 = vadd.f32 %v1763, 0.7978846
        %v2020 = vadd.f32 %v1764, 0.7978846
        %v2021 = vadd.f32 %v1765, 0.7978846
        %v2022 = vadd.f32 %v1766, 0.7978846
        %v2023 = vadd.f32 %v1767, 0.7978846
        %v2024 = vadd.f32 %v1768, 0.7978846
        %v2025 = vadd.f32 %v1769, 0.7978846
        %v2026 = vadd.f32 %v1770, 0.7978846
        %v2027 = vadd.f32 %v1771, 0.7978846
        %v2028 = vadd.f32 %v1772, 0.7978846
        %v2029 = vadd.f32 %v1773, 0.7978846
        %v2030 = vadd.f32 %v1774, 0.7978846
        %v2031 = vadd.f32 %v1775, 0.7978846
        %v2032 = vadd.f32 %v1776, 0.7978846
        %v2033 = vadd.f32 %v1777, 0.7978846
        %v2034 = vadd.f32 %v1778, 0.7978846
        %v2035 = vadd.f32 %v1779, 0.7978846
        %v2036 = vadd.f32 %v1780, 0.7978846
        %v2037 = vadd.f32 %v1781, 0.7978846
        %v2038 = vadd.f32 %v1782, 0.7978846
        %v2039 = vadd.f32 %v1783, 0.7978846
        %v2040 = vadd.f32 %v1784, 0.7978846
        %v2041 = vadd.f32 %v1785, 0.7978846
        %v2042 = vadd.f32 %v1786, 0.7978846
        %v2043 = vadd.f32 %v1787, 0.7978846
        %v2044 = vadd.f32 %v1788, 0.7978846
        %v2045 = vadd.f32 %v1789, 0.7978846
        %v2046 = vadd.f32 %v1790, 0.7978846
        %v2047 = vadd.f32 %v1791, 0.7978846
        %v2048 = vadd.f32 %v1792, 0.7978846
        %v2049 = vadd.f32 %v1793, 0.7978846
        %v2050 = vadd.f32 %v1794, 0.7978846
        %v2051 = vadd.f32 %v1795, 0.7978846
        %v2052 = vadd.f32 %v1796, 0.7978846
        %v2053 = vadd.f32 %v1797, 0.7978846
        %v2054 = vadd.f32 %v1798, 0.7978846
        %v2055 = vadd.f32 %v1799, 0.7978846
        %v2056 = vadd.f32 %v1800, 0.7978846
        %v2057 = vadd.f32 %v1801, 0.7978846
        %v2058 = vadd.f32 %v1802, 0.7978846
        %v2059 = vadd.f32 %v1803, 0.7978846
        %v2060 = vadd.f32 %v1804, 0.7978846
        %v2061 = vadd.f32 %v1805, 0.7978846
        %v2062 = vadd.f32 %v1806, 0.7978846
        %v2063 = vadd.f32 %v1807, 0.7978846
        %v2064 = vadd.f32 %v1808, 0.7978846
        %v2065 = vadd.f32 %v1809, 0.7978846
        %v2066 = vadd.f32 %v1810, 0.7978846
        %v2067 = vadd.f32 %v1811, 0.7978846
        %v2068 = vadd.f32 %v1812, 0.7978846
        %v2069 = vadd.f32 %v1813, 0.7978846
        %v2070 = vadd.f32 %v1814, 0.7978846
        %v2071 = vadd.f32 %v1815, 0.7978846
        %v2072 = vadd.f32 %v1816, 0.7978846
        %v2073 = vadd.f32 %v1817, 0.7978846
        %v2074 = vadd.f32 %v1818, 0.7978846
        %v2075 = vadd.f32 %v1819, 0.7978846
        %v2076 = vadd.f32 %v1820, 0.7978846
        %v2077 = vadd.f32 %v1821, 0.7978846
        %v2078 = vadd.f32 %v1822, 0.7978846
        %v2079 = vadd.f32 %v1823, 0.7978846
        %v2080 = vadd.f32 %v1824, 0.7978846
        %v2081 = vadd.f32 %v1825, 0.7978846
        %v2082 = vadd.f32 %v1826, 0.7978846
        %v2083 = vadd.f32 %v1827, 0.7978846
        %v2084 = vadd.f32 %v1828, 0.7978846
        %v2085 = vadd.f32 %v1829, 0.7978846
        %v2086 = vadd.f32 %v1830, 0.7978846
        %v2087 = vadd.f32 %v1831, 0.7978846
        %v2088 = vadd.f32 %v1832, 0.7978846
        %v2089 = vadd.f32 %v1833, 0.7978846
        %v2090 = vadd.f32 %v1834, 0.7978846
        %v2091 = vadd.f32 %v1835, 0.7978846
        %v2092 = vadd.f32 %v1836, 0.7978846
        %v2093 = vadd.f32 %v1837, 0.7978846
        %v2094 = vadd.f32 %v1838, 0.7978846
        %v2095 = vadd.f32 %v1839, 0.7978846
        %v2096 = vadd.f32 %v1840, 0.7978846
        %v2097 = vadd.f32 %v1841, 0.7978846
        %v2098 = vadd.f32 %v1842, 0.7978846
        %v2099 = vadd.f32 %v1843, 0.7978846
        %v2100 = vadd.f32 %v1844, 0.7978846
        %v2101 = vadd.f32 %v1845, 0.7978846
        %v2102 = vadd.f32 %v1846, 0.7978846
        %v2103 = vadd.f32 %v1847, 0.7978846
        %v2104 = vadd.f32 %v1848, 0.7978846
        %v2105 = vadd.f32 %v1849, 0.7978846
        %v2106 = vadd.f32 %v1850, 0.7978846
        %v2107 = vadd.f32 %v1851, 0.7978846
        %v2108 = vadd.f32 %v1852, 0.7978846
        %v2109 = vadd.f32 %v1853, 0.7978846
        %v2110 = vadd.f32 %v1854, 0.7978846
        %v2111 = vadd.f32 %v1855, 0.7978846
        %v2112 = vadd.f32 %v1856, 0.7978846
        %v2113 = vadd.f32 %v1857, 0.7978846
        %v2114 = vadd.f32 %v1858, 0.7978846
        %v2115 = vadd.f32 %v1859, 0.7978846
        %v2116 = vadd.f32 %v1860, 0.7978846
        %v2117 = vadd.f32 %v1861, 0.7978846
        %v2118 = vadd.f32 %v1862, 0.7978846
        %v2119 = vadd.f32 %v1863, 0.7978846
        %v2120 = vadd.f32 %v1864, 0.7978846
        %v2121 = vadd.f32 %v1865, 0.7978846
        %v2122 = vadd.f32 %v1866, 0.7978846
        %v2123 = vadd.f32 %v1867, 0.7978846
        %v2124 = vadd.f32 %v1868, 0.7978846
        %v2125 = vadd.f32 %v1869, 0.7978846
        %v2126 = vadd.f32 %v1870, 0.7978846
        %v2127 = vadd.f32 %v1871, 0.7978846
        %v2128 = vadd.f32 %v1872, 0.7978846
        %v2129 = vadd.f32 %v1873, 0.7978846
        %v2130 = vadd.f32 %v1874, 0.7978846
        %v2131 = vadd.f32 %v1875, 0.7978846
        %v2132 = vadd.f32 %v1876, 0.7978846
        %v2133 = vadd.f32 %v1877, 0.7978846
        %v2134 = vadd.f32 %v1878, 0.7978846
        %v2135 = vadd.f32 %v1879, 0.7978846
        %v2136 = vadd.f32 %v1880, 0.7978846
        %v2137 = vadd.f32 %v1881, 0.7978846
        %v2138 = vadd.f32 %v1882, 0.7978846
        %v2139 = vadd.f32 %v1883, 0.7978846
        %v2140 = vadd.f32 %v1884, 0.7978846
        %v2141 = vadd.f32 %v1885, 0.7978846
        %v2142 = vadd.f32 %v1886, 0.7978846
        %v2143 = vadd.f32 %v1887, 0.7978846
        %v2144 = vadd.f32 %v1888, 0.7978846
        %v2145 = vadd.f32 %v1889, 0.7978846
        %v2146 = vadd.f32 %v1890, 0.7978846
        %v2147 = vadd.f32 %v1891, 0.7978846
        %v2148 = vadd.f32 %v1892, 0.7978846
        %v2149 = vadd.f32 %v1893, 0.7978846
        %v2150 = vadd.f32 %v1894, 0.7978846
        %v2151 = vadd.f32 %v1895, 0.7978846
        %v2152 = vadd.f32 %v1896, 0.7978846
        %v2153 = vadd.f32 %v1897, 0.7978846
        %v2154 = vadd.f32 %v1898, 0.7978846
        %v2155 = vadd.f32 %v1899, 0.7978846
        %v2156 = vadd.f32 %v1900, 0.7978846
        %v2157 = vadd.f32 %v1901, 0.7978846
        %v2158 = vadd.f32 %v1902, 0.7978846
        %v2159 = vadd.f32 %v1903, 0.7978846
        %v2160 = vadd.f32 %v1904, 0.7978846
        %v2161 = vadd.f32 %v1905, 0.7978846
        %v2162 = vadd.f32 %v1906, 0.7978846
        %v2163 = vadd.f32 %v1907, 0.7978846
        %v2164 = vadd.f32 %v1908, 0.7978846
        %v2165 = vadd.f32 %v1909, 0.7978846
        %v2166 = vadd.f32 %v1910, 0.7978846
        %v2167 = vadd.f32 %v1911, 0.7978846
        %v2168 = vadd.f32 %v1912, 0.7978846
        %v2169 = vadd.f32 %v1913, 0.7978846
        %v2170 = vadd.f32 %v1914, 0.7978846
        %v2171 = vadd.f32 %v1915, 0.7978846
        %v2172 = vadd.f32 %v1916, 0.7978846
        %v2173 = vadd.f32 %v1917, 0.7978846
        %v2174 = vadd.f32 %v1918, 0.7978846
        %v2175 = vadd.f32 %v1919, 0.7978846
        %v2176 = vadd.f32 %v1920, 0.7978846
        %v2177 = vadd.f32 %v1921, 0.7978846
        %v2178 = vadd.f32 %v1922, 0.7978846
        %v2179 = vadd.f32 %v1923, 0.7978846
        %v2180 = vadd.f32 %v1924, 0.7978846
        %v2181 = vadd.f32 %v1925, 0.7978846
        %v2182 = vadd.f32 %v1926, 0.7978846
        %v2183 = vadd.f32 %v1927, 0.7978846
        %v2184 = vadd.f32 %v1928, 0.7978846
        %v2185 = vadd.f32 %v1929, 0.7978846
        %v2186 = vadd.f32 %v1930, 0.7978846
        %v2187 = vadd.f32 %v1931, 0.7978846
        %v2188 = vadd.f32 %v1932, 0.7978846
        %v2189 = vadd.f32 %v1933, 0.7978846
        %v2190 = vadd.f32 %v1934, 0.7978846
        %v2191 = vadd.f32 %v1935, 0.7978846
        %v2192 = vadd.f32 %v1936, 0.7978846
        %v2193 = vadd.f32 %v1937, 0.7978846
        %v2194 = vadd.f32 %v1938, 0.7978846
        %v2195 = vadd.f32 %v1939, 0.7978846
        %v2196 = vadd.f32 %v1940, 0.7978846
        %v2197 = vadd.f32 %v1941, 0.7978846
        %v2198 = vadd.f32 %v1942, 0.7978846
        %v2199 = vadd.f32 %v1943, 0.7978846
        %v2200 = vadd.f32 %v1944, 0.7978846
        %v2201 = vadd.f32 %v1945, 0.7978846
        %v2202 = vadd.f32 %v1946, 0.7978846
        %v2203 = vadd.f32 %v1947, 0.7978846
        %v2204 = vadd.f32 %v1948, 0.7978846
        %v2205 = vadd.f32 %v1949, 0.7978846
        %v2206 = vadd.f32 %v1950, 0.7978846
        %v2207 = vadd.f32 %v1951, 0.7978846
        %v2208 = vadd.f32 %v1952, 0.7978846
        %v2209 = vadd.f32 %v1953, 0.7978846
        %v2210 = vadd.f32 %v1954, 0.7978846
        %v2211 = vadd.f32 %v1955, 0.7978846
        %v2212 = vadd.f32 %v1956, 0.7978846
        %v2213 = vadd.f32 %v1957, 0.7978846
        %v2214 = vadd.f32 %v1958, 0.7978846
        %v2215 = vadd.f32 %v1959, 0.7978846
        %v2216 = vadd.f32 %v1960, 0.7978846
        %v2217 = vadd.f32 %v1961, 0.7978846
        %v2218 = vadd.f32 %v1962, 0.7978846
        %v2219 = vadd.f32 %v1963, 0.7978846
        %v2220 = vadd.f32 %v1964, 0.7978846
        %v2221 = vmul.f32 %v622, %v1965
        %v2222 = vmul.f32 %v624, %v1966
        %v2223 = vmul.f32 %v1071, %v1967
        %v2224 = vmul.f32 %v1073, %v1968
        %v2225 = vmul.f32 %v628, %v1969
        %v2226 = vmul.f32 %v630, %v1970
        %v2227 = vmul.f32 %v1077, %v1971
        %v2228 = vmul.f32 %v1079, %v1972
        %v2229 = vmul.f32 %v634, %v1973
        %v2230 = vmul.f32 %v636, %v1974
        %v2231 = vmul.f32 %v1083, %v1975
        %v2232 = vmul.f32 %v1085, %v1976
        %v2233 = vmul.f32 %v640, %v1977
        %v2234 = vmul.f32 %v642, %v1978
        %v2235 = vmul.f32 %v1089, %v1979
        %v2236 = vmul.f32 %v1091, %v1980
        %v2237 = vmul.f32 %v646, %v1981
        %v2238 = vmul.f32 %v648, %v1982
        %v2239 = vmul.f32 %v1095, %v1983
        %v2240 = vmul.f32 %v1097, %v1984
        %v2241 = vmul.f32 %v652, %v1985
        %v2242 = vmul.f32 %v654, %v1986
        %v2243 = vmul.f32 %v1101, %v1987
        %v2244 = vmul.f32 %v1103, %v1988
        %v2245 = vmul.f32 %v658, %v1989
        %v2246 = vmul.f32 %v660, %v1990
        %v2247 = vmul.f32 %v1107, %v1991
        %v2248 = vmul.f32 %v1109, %v1992
        %v2249 = vmul.f32 %v664, %v1993
        %v2250 = vmul.f32 %v666, %v1994
        %v2251 = vmul.f32 %v1113, %v1995
        %v2252 = vmul.f32 %v1115, %v1996
        %v2253 = vmul.f32 %v670, %v1997
        %v2254 = vmul.f32 %v672, %v1998
        %v2255 = vmul.f32 %v1119, %v1999
        %v2256 = vmul.f32 %v1121, %v2000
        %v2257 = vmul.f32 %v676, %v2001
        %v2258 = vmul.f32 %v678, %v2002
        %v2259 = vmul.f32 %v1125, %v2003
        %v2260 = vmul.f32 %v1127, %v2004
        %v2261 = vmul.f32 %v682, %v2005
        %v2262 = vmul.f32 %v684, %v2006
        %v2263 = vmul.f32 %v1131, %v2007
        %v2264 = vmul.f32 %v1133, %v2008
        %v2265 = vmul.f32 %v688, %v2009
        %v2266 = vmul.f32 %v690, %v2010
        %v2267 = vmul.f32 %v1137, %v2011
        %v2268 = vmul.f32 %v1139, %v2012
        %v2269 = vmul.f32 %v694, %v2013
        %v2270 = vmul.f32 %v696, %v2014
        %v2271 = vmul.f32 %v1143, %v2015
        %v2272 = vmul.f32 %v1145, %v2016
        %v2273 = vmul.f32 %v700, %v2017
        %v2274 = vmul.f32 %v702, %v2018
        %v2275 = vmul.f32 %v1149, %v2019
        %v2276 = vmul.f32 %v1151, %v2020
        %v2277 = vmul.f32 %v706, %v2021
        %v2278 = vmul.f32 %v708, %v2022
        %v2279 = vmul.f32 %v1155, %v2023
        %v2280 = vmul.f32 %v1157, %v2024
        %v2281 = vmul.f32 %v712, %v2025
        %v2282 = vmul.f32 %v714, %v2026
        %v2283 = vmul.f32 %v1161, %v2027
        %v2284 = vmul.f32 %v1163, %v2028
        %v2285 = vmul.f32 %v718, %v2029
        %v2286 = vmul.f32 %v720, %v2030
        %v2287 = vmul.f32 %v1167, %v2031
        %v2288 = vmul.f32 %v1169, %v2032
        %v2289 = vmul.f32 %v724, %v2033
        %v2290 = vmul.f32 %v726, %v2034
        %v2291 = vmul.f32 %v1173, %v2035
        %v2292 = vmul.f32 %v1175, %v2036
        %v2293 = vmul.f32 %v730, %v2037
        %v2294 = vmul.f32 %v732, %v2038
        %v2295 = vmul.f32 %v1179, %v2039
        %v2296 = vmul.f32 %v1181, %v2040
        %v2297 = vmul.f32 %v736, %v2041
        %v2298 = vmul.f32 %v738, %v2042
        %v2299 = vmul.f32 %v1185, %v2043
        %v2300 = vmul.f32 %v1187, %v2044
        %v2301 = vmul.f32 %v742, %v2045
        %v2302 = vmul.f32 %v744, %v2046
        %v2303 = vmul.f32 %v1191, %v2047
        %v2304 = vmul.f32 %v1193, %v2048
        %v2305 = vmul.f32 %v748, %v2049
        %v2306 = vmul.f32 %v750, %v2050
        %v2307 = vmul.f32 %v1197, %v2051
        %v2308 = vmul.f32 %v1199, %v2052
        %v2309 = vmul.f32 %v754, %v2053
        %v2310 = vmul.f32 %v756, %v2054
        %v2311 = vmul.f32 %v1203, %v2055
        %v2312 = vmul.f32 %v1205, %v2056
        %v2313 = vmul.f32 %v760, %v2057
        %v2314 = vmul.f32 %v762, %v2058
        %v2315 = vmul.f32 %v1209, %v2059
        %v2316 = vmul.f32 %v1211, %v2060
        %v2317 = vmul.f32 %v766, %v2061
        %v2318 = vmul.f32 %v768, %v2062
        %v2319 = vmul.f32 %v1215, %v2063
        %v2320 = vmul.f32 %v1217, %v2064
        %v2321 = vmul.f32 %v772, %v2065
        %v2322 = vmul.f32 %v774, %v2066
        %v2323 = vmul.f32 %v1221, %v2067
        %v2324 = vmul.f32 %v1223, %v2068
        %v2325 = vmul.f32 %v778, %v2069
        %v2326 = vmul.f32 %v780, %v2070
        %v2327 = vmul.f32 %v1227, %v2071
        %v2328 = vmul.f32 %v1229, %v2072
        %v2329 = vmul.f32 %v784, %v2073
        %v2330 = vmul.f32 %v786, %v2074
        %v2331 = vmul.f32 %v1233, %v2075
        %v2332 = vmul.f32 %v1235, %v2076
        %v2333 = vmul.f32 %v790, %v2077
        %v2334 = vmul.f32 %v792, %v2078
        %v2335 = vmul.f32 %v1239, %v2079
        %v2336 = vmul.f32 %v1241, %v2080
        %v2337 = vmul.f32 %v796, %v2081
        %v2338 = vmul.f32 %v798, %v2082
        %v2339 = vmul.f32 %v1245, %v2083
        %v2340 = vmul.f32 %v1247, %v2084
        %v2341 = vmul.f32 %v802, %v2085
        %v2342 = vmul.f32 %v804, %v2086
        %v2343 = vmul.f32 %v1251, %v2087
        %v2344 = vmul.f32 %v1253, %v2088
        %v2345 = vmul.f32 %v808, %v2089
        %v2346 = vmul.f32 %v810, %v2090
        %v2347 = vmul.f32 %v1257, %v2091
        %v2348 = vmul.f32 %v1259, %v2092
        %v2349 = vmul.f32 %v814, %v2093
        %v2350 = vmul.f32 %v816, %v2094
        %v2351 = vmul.f32 %v1263, %v2095
        %v2352 = vmul.f32 %v1265, %v2096
        %v2353 = vmul.f32 %v820, %v2097
        %v2354 = vmul.f32 %v822, %v2098
        %v2355 = vmul.f32 %v1269, %v2099
        %v2356 = vmul.f32 %v1271, %v2100
        %v2357 = vmul.f32 %v826, %v2101
        %v2358 = vmul.f32 %v828, %v2102
        %v2359 = vmul.f32 %v1275, %v2103
        %v2360 = vmul.f32 %v1277, %v2104
        %v2361 = vmul.f32 %v832, %v2105
        %v2362 = vmul.f32 %v834, %v2106
        %v2363 = vmul.f32 %v1281, %v2107
        %v2364 = vmul.f32 %v1283, %v2108
        %v2365 = vmul.f32 %v838, %v2109
        %v2366 = vmul.f32 %v840, %v2110
        %v2367 = vmul.f32 %v1287, %v2111
        %v2368 = vmul.f32 %v1289, %v2112
        %v2369 = vmul.f32 %v844, %v2113
        %v2370 = vmul.f32 %v846, %v2114
        %v2371 = vmul.f32 %v1293, %v2115
        %v2372 = vmul.f32 %v1295, %v2116
        %v2373 = vmul.f32 %v850, %v2117
        %v2374 = vmul.f32 %v852, %v2118
        %v2375 = vmul.f32 %v1299, %v2119
        %v2376 = vmul.f32 %v1301, %v2120
        %v2377 = vmul.f32 %v856, %v2121
        %v2378 = vmul.f32 %v858, %v2122
        %v2379 = vmul.f32 %v1305, %v2123
        %v2380 = vmul.f32 %v1307, %v2124
        %v2381 = vmul.f32 %v862, %v2125
        %v2382 = vmul.f32 %v864, %v2126
        %v2383 = vmul.f32 %v1311, %v2127
        %v2384 = vmul.f32 %v1313, %v2128
        %v2385 = vmul.f32 %v868, %v2129
        %v2386 = vmul.f32 %v870, %v2130
        %v2387 = vmul.f32 %v1317, %v2131
        %v2388 = vmul.f32 %v1319, %v2132
        %v2389 = vmul.f32 %v874, %v2133
        %v2390 = vmul.f32 %v876, %v2134
        %v2391 = vmul.f32 %v1323, %v2135
        %v2392 = vmul.f32 %v1325, %v2136
        %v2393 = vmul.f32 %v880, %v2137
        %v2394 = vmul.f32 %v882, %v2138
        %v2395 = vmul.f32 %v1329, %v2139
        %v2396 = vmul.f32 %v1331, %v2140
        %v2397 = vmul.f32 %v886, %v2141
        %v2398 = vmul.f32 %v888, %v2142
        %v2399 = vmul.f32 %v1335, %v2143
        %v2400 = vmul.f32 %v1337, %v2144
        %v2401 = vmul.f32 %v892, %v2145
        %v2402 = vmul.f32 %v894, %v2146
        %v2403 = vmul.f32 %v1341, %v2147
        %v2404 = vmul.f32 %v1343, %v2148
        %v2405 = vmul.f32 %v898, %v2149
        %v2406 = vmul.f32 %v900, %v2150
        %v2407 = vmul.f32 %v1347, %v2151
        %v2408 = vmul.f32 %v1349, %v2152
        %v2409 = vmul.f32 %v904, %v2153
        %v2410 = vmul.f32 %v906, %v2154
        %v2411 = vmul.f32 %v1353, %v2155
        %v2412 = vmul.f32 %v1355, %v2156
        %v2413 = vmul.f32 %v910, %v2157
        %v2414 = vmul.f32 %v912, %v2158
        %v2415 = vmul.f32 %v1359, %v2159
        %v2416 = vmul.f32 %v1361, %v2160
        %v2417 = vmul.f32 %v916, %v2161
        %v2418 = vmul.f32 %v918, %v2162
        %v2419 = vmul.f32 %v1365, %v2163
        %v2420 = vmul.f32 %v1367, %v2164
        %v2421 = vmul.f32 %v922, %v2165
        %v2422 = vmul.f32 %v924, %v2166
        %v2423 = vmul.f32 %v1371, %v2167
        %v2424 = vmul.f32 %v1373, %v2168
        %v2425 = vmul.f32 %v928, %v2169
        %v2426 = vmul.f32 %v930, %v2170
        %v2427 = vmul.f32 %v1377, %v2171
        %v2428 = vmul.f32 %v1379, %v2172
        %v2429 = vmul.f32 %v934, %v2173
        %v2430 = vmul.f32 %v936, %v2174
        %v2431 = vmul.f32 %v1383, %v2175
        %v2432 = vmul.f32 %v1385, %v2176
        %v2433 = vmul.f32 %v940, %v2177
        %v2434 = vmul.f32 %v942, %v2178
        %v2435 = vmul.f32 %v1389, %v2179
        %v2436 = vmul.f32 %v1391, %v2180
        %v2437 = vmul.f32 %v946, %v2181
        %v2438 = vmul.f32 %v948, %v2182
        %v2439 = vmul.f32 %v1395, %v2183
        %v2440 = vmul.f32 %v1397, %v2184
        %v2441 = vmul.f32 %v952, %v2185
        %v2442 = vmul.f32 %v954, %v2186
        %v2443 = vmul.f32 %v1401, %v2187
        %v2444 = vmul.f32 %v1403, %v2188
        %v2445 = vmul.f32 %v958, %v2189
        %v2446 = vmul.f32 %v960, %v2190
        %v2447 = vmul.f32 %v1407, %v2191
        %v2448 = vmul.f32 %v1409, %v2192
        %v2449 = vmul.f32 %v964, %v2193
        %v2450 = vmul.f32 %v966, %v2194
        %v2451 = vmul.f32 %v1413, %v2195
        %v2452 = vmul.f32 %v1415, %v2196
        %v2453 = vmul.f32 %v970, %v2197
        %v2454 = vmul.f32 %v972, %v2198
        %v2455 = vmul.f32 %v1419, %v2199
        %v2456 = vmul.f32 %v1421, %v2200
        %v2457 = vmul.f32 %v976, %v2201
        %v2458 = vmul.f32 %v978, %v2202
        %v2459 = vmul.f32 %v1425, %v2203
        %v2460 = vmul.f32 %v1427, %v2204
        %v2461 = vmul.f32 %v982, %v2205
        %v2462 = vmul.f32 %v984, %v2206
        %v2463 = vmul.f32 %v1431, %v2207
        %v2464 = vmul.f32 %v1433, %v2208
        %v2465 = vmul.f32 %v988, %v2209
        %v2466 = vmul.f32 %v990, %v2210
        %v2467 = vmul.f32 %v1437, %v2211
        %v2468 = vmul.f32 %v1439, %v2212
        %v2469 = vmul.f32 %v994, %v2213
        %v2470 = vmul.f32 %v996, %v2214
        %v2471 = vmul.f32 %v1443, %v2215
        %v2472 = vmul.f32 %v1445, %v2216
        %v2473 = vmul.f32 %v1000, %v2217
        %v2474 = vmul.f32 %v1002, %v2218
        %v2475 = vmul.f32 %v1449, %v2219
        %v2476 = vmul.f32 %v1451, %v2220
        %v2477 = vmul.f32 %v622, 0.5
        %v2478 = vmul.f32 %v624, 0.5
        %v2479 = vmul.f32 %v1071, 0.5
        %v2480 = vmul.f32 %v1073, 0.5
        %v2481 = vmul.f32 %v628, 0.5
        %v2482 = vmul.f32 %v630, 0.5
        %v2483 = vmul.f32 %v1077, 0.5
        %v2484 = vmul.f32 %v1079, 0.5
        %v2485 = vmul.f32 %v634, 0.5
        %v2486 = vmul.f32 %v636, 0.5
        %v2487 = vmul.f32 %v1083, 0.5
        %v2488 = vmul.f32 %v1085, 0.5
        %v2489 = vmul.f32 %v640, 0.5
        %v2490 = vmul.f32 %v642, 0.5
        %v2491 = vmul.f32 %v1089, 0.5
        %v2492 = vmul.f32 %v1091, 0.5
        %v2493 = vmul.f32 %v646, 0.5
        %v2494 = vmul.f32 %v648, 0.5
        %v2495 = vmul.f32 %v1095, 0.5
        %v2496 = vmul.f32 %v1097, 0.5
        %v2497 = vmul.f32 %v652, 0.5
        %v2498 = vmul.f32 %v654, 0.5
        %v2499 = vmul.f32 %v1101, 0.5
        %v2500 = vmul.f32 %v1103, 0.5
        %v2501 = vmul.f32 %v658, 0.5
        %v2502 = vmul.f32 %v660, 0.5
        %v2503 = vmul.f32 %v1107, 0.5
        %v2504 = vmul.f32 %v1109, 0.5
        %v2505 = vmul.f32 %v664, 0.5
        %v2506 = vmul.f32 %v666, 0.5
        %v2507 = vmul.f32 %v1113, 0.5
        %v2508 = vmul.f32 %v1115, 0.5
        %v2509 = vmul.f32 %v670, 0.5
        %v2510 = vmul.f32 %v672, 0.5
        %v2511 = vmul.f32 %v1119, 0.5
        %v2512 = vmul.f32 %v1121, 0.5
        %v2513 = vmul.f32 %v676, 0.5
        %v2514 = vmul.f32 %v678, 0.5
        %v2515 = vmul.f32 %v1125, 0.5
        %v2516 = vmul.f32 %v1127, 0.5
        %v2517 = vmul.f32 %v682, 0.5
        %v2518 = vmul.f32 %v684, 0.5
        %v2519 = vmul.f32 %v1131, 0.5
        %v2520 = vmul.f32 %v1133, 0.5
        %v2521 = vmul.f32 %v688, 0.5
        %v2522 = vmul.f32 %v690, 0.5
        %v2523 = vmul.f32 %v1137, 0.5
        %v2524 = vmul.f32 %v1139, 0.5
        %v2525 = vmul.f32 %v694, 0.5
        %v2526 = vmul.f32 %v696, 0.5
        %v2527 = vmul.f32 %v1143, 0.5
        %v2528 = vmul.f32 %v1145, 0.5
        %v2529 = vmul.f32 %v700, 0.5
        %v2530 = vmul.f32 %v702, 0.5
        %v2531 = vmul.f32 %v1149, 0.5
        %v2532 = vmul.f32 %v1151, 0.5
        %v2533 = vmul.f32 %v706, 0.5
        %v2534 = vmul.f32 %v708, 0.5
        %v2535 = vmul.f32 %v1155, 0.5
        %v2536 = vmul.f32 %v1157, 0.5
        %v2537 = vmul.f32 %v712, 0.5
        %v2538 = vmul.f32 %v714, 0.5
        %v2539 = vmul.f32 %v1161, 0.5
        %v2540 = vmul.f32 %v1163, 0.5
        %v2541 = vmul.f32 %v718, 0.5
        %v2542 = vmul.f32 %v720, 0.5
        %v2543 = vmul.f32 %v1167, 0.5
        %v2544 = vmul.f32 %v1169, 0.5
        %v2545 = vmul.f32 %v724, 0.5
        %v2546 = vmul.f32 %v726, 0.5
        %v2547 = vmul.f32 %v1173, 0.5
        %v2548 = vmul.f32 %v1175, 0.5
        %v2549 = vmul.f32 %v730, 0.5
        %v2550 = vmul.f32 %v732, 0.5
        %v2551 = vmul.f32 %v1179, 0.5
        %v2552 = vmul.f32 %v1181, 0.5
        %v2553 = vmul.f32 %v736, 0.5
        %v2554 = vmul.f32 %v738, 0.5
        %v2555 = vmul.f32 %v1185, 0.5
        %v2556 = vmul.f32 %v1187, 0.5
        %v2557 = vmul.f32 %v742, 0.5
        %v2558 = vmul.f32 %v744, 0.5
        %v2559 = vmul.f32 %v1191, 0.5
        %v2560 = vmul.f32 %v1193, 0.5
        %v2561 = vmul.f32 %v748, 0.5
        %v2562 = vmul.f32 %v750, 0.5
        %v2563 = vmul.f32 %v1197, 0.5
        %v2564 = vmul.f32 %v1199, 0.5
        %v2565 = vmul.f32 %v754, 0.5
        %v2566 = vmul.f32 %v756, 0.5
        %v2567 = vmul.f32 %v1203, 0.5
        %v2568 = vmul.f32 %v1205, 0.5
        %v2569 = vmul.f32 %v760, 0.5
        %v2570 = vmul.f32 %v762, 0.5
        %v2571 = vmul.f32 %v1209, 0.5
        %v2572 = vmul.f32 %v1211, 0.5
        %v2573 = vmul.f32 %v766, 0.5
        %v2574 = vmul.f32 %v768, 0.5
        %v2575 = vmul.f32 %v1215, 0.5
        %v2576 = vmul.f32 %v1217, 0.5
        %v2577 = vmul.f32 %v772, 0.5
        %v2578 = vmul.f32 %v774, 0.5
        %v2579 = vmul.f32 %v1221, 0.5
        %v2580 = vmul.f32 %v1223, 0.5
        %v2581 = vmul.f32 %v778, 0.5
        %v2582 = vmul.f32 %v780, 0.5
        %v2583 = vmul.f32 %v1227, 0.5
        %v2584 = vmul.f32 %v1229, 0.5
        %v2585 = vmul.f32 %v784, 0.5
        %v2586 = vmul.f32 %v786, 0.5
        %v2587 = vmul.f32 %v1233, 0.5
        %v2588 = vmul.f32 %v1235, 0.5
        %v2589 = vmul.f32 %v790, 0.5
        %v2590 = vmul.f32 %v792, 0.5
        %v2591 = vmul.f32 %v1239, 0.5
        %v2592 = vmul.f32 %v1241, 0.5
        %v2593 = vmul.f32 %v796, 0.5
        %v2594 = vmul.f32 %v798, 0.5
        %v2595 = vmul.f32 %v1245, 0.5
        %v2596 = vmul.f32 %v1247, 0.5
        %v2597 = vmul.f32 %v802, 0.5
        %v2598 = vmul.f32 %v804, 0.5
        %v2599 = vmul.f32 %v1251, 0.5
        %v2600 = vmul.f32 %v1253, 0.5
        %v2601 = vmul.f32 %v808, 0.5
        %v2602 = vmul.f32 %v810, 0.5
        %v2603 = vmul.f32 %v1257, 0.5
        %v2604 = vmul.f32 %v1259, 0.5
        %v2605 = vmul.f32 %v814, 0.5
        %v2606 = vmul.f32 %v816, 0.5
        %v2607 = vmul.f32 %v1263, 0.5
        %v2608 = vmul.f32 %v1265, 0.5
        %v2609 = vmul.f32 %v820, 0.5
        %v2610 = vmul.f32 %v822, 0.5
        %v2611 = vmul.f32 %v1269, 0.5
        %v2612 = vmul.f32 %v1271, 0.5
        %v2613 = vmul.f32 %v826, 0.5
        %v2614 = vmul.f32 %v828, 0.5
        %v2615 = vmul.f32 %v1275, 0.5
        %v2616 = vmul.f32 %v1277, 0.5
        %v2617 = vmul.f32 %v832, 0.5
        %v2618 = vmul.f32 %v834, 0.5
        %v2619 = vmul.f32 %v1281, 0.5
        %v2620 = vmul.f32 %v1283, 0.5
        %v2621 = vmul.f32 %v838, 0.5
        %v2622 = vmul.f32 %v840, 0.5
        %v2623 = vmul.f32 %v1287, 0.5
        %v2624 = vmul.f32 %v1289, 0.5
        %v2625 = vmul.f32 %v844, 0.5
        %v2626 = vmul.f32 %v846, 0.5
        %v2627 = vmul.f32 %v1293, 0.5
        %v2628 = vmul.f32 %v1295, 0.5
        %v2629 = vmul.f32 %v850, 0.5
        %v2630 = vmul.f32 %v852, 0.5
        %v2631 = vmul.f32 %v1299, 0.5
        %v2632 = vmul.f32 %v1301, 0.5
        %v2633 = vmul.f32 %v856, 0.5
        %v2634 = vmul.f32 %v858, 0.5
        %v2635 = vmul.f32 %v1305, 0.5
        %v2636 = vmul.f32 %v1307, 0.5
        %v2637 = vmul.f32 %v862, 0.5
        %v2638 = vmul.f32 %v864, 0.5
        %v2639 = vmul.f32 %v1311, 0.5
        %v2640 = vmul.f32 %v1313, 0.5
        %v2641 = vmul.f32 %v868, 0.5
        %v2642 = vmul.f32 %v870, 0.5
        %v2643 = vmul.f32 %v1317, 0.5
        %v2644 = vmul.f32 %v1319, 0.5
        %v2645 = vmul.f32 %v874, 0.5
        %v2646 = vmul.f32 %v876, 0.5
        %v2647 = vmul.f32 %v1323, 0.5
        %v2648 = vmul.f32 %v1325, 0.5
        %v2649 = vmul.f32 %v880, 0.5
        %v2650 = vmul.f32 %v882, 0.5
        %v2651 = vmul.f32 %v1329, 0.5
        %v2652 = vmul.f32 %v1331, 0.5
        %v2653 = vmul.f32 %v886, 0.5
        %v2654 = vmul.f32 %v888, 0.5
        %v2655 = vmul.f32 %v1335, 0.5
        %v2656 = vmul.f32 %v1337, 0.5
        %v2657 = vmul.f32 %v892, 0.5
        %v2658 = vmul.f32 %v894, 0.5
        %v2659 = vmul.f32 %v1341, 0.5
        %v2660 = vmul.f32 %v1343, 0.5
        %v2661 = vmul.f32 %v898, 0.5
        %v2662 = vmul.f32 %v900, 0.5
        %v2663 = vmul.f32 %v1347, 0.5
        %v2664 = vmul.f32 %v1349, 0.5
        %v2665 = vmul.f32 %v904, 0.5
        %v2666 = vmul.f32 %v906, 0.5
        %v2667 = vmul.f32 %v1353, 0.5
        %v2668 = vmul.f32 %v1355, 0.5
        %v2669 = vmul.f32 %v910, 0.5
        %v2670 = vmul.f32 %v912, 0.5
        %v2671 = vmul.f32 %v1359, 0.5
        %v2672 = vmul.f32 %v1361, 0.5
        %v2673 = vmul.f32 %v916, 0.5
        %v2674 = vmul.f32 %v918, 0.5
        %v2675 = vmul.f32 %v1365, 0.5
        %v2676 = vmul.f32 %v1367, 0.5
        %v2677 = vmul.f32 %v922, 0.5
        %v2678 = vmul.f32 %v924, 0.5
        %v2679 = vmul.f32 %v1371, 0.5
        %v2680 = vmul.f32 %v1373, 0.5
        %v2681 = vmul.f32 %v928, 0.5
        %v2682 = vmul.f32 %v930, 0.5
        %v2683 = vmul.f32 %v1377, 0.5
        %v2684 = vmul.f32 %v1379, 0.5
        %v2685 = vmul.f32 %v934, 0.5
        %v2686 = vmul.f32 %v936, 0.5
        %v2687 = vmul.f32 %v1383, 0.5
        %v2688 = vmul.f32 %v1385, 0.5
        %v2689 = vmul.f32 %v940, 0.5
        %v2690 = vmul.f32 %v942, 0.5
        %v2691 = vmul.f32 %v1389, 0.5
        %v2692 = vmul.f32 %v1391, 0.5
        %v2693 = vmul.f32 %v946, 0.5
        %v2694 = vmul.f32 %v948, 0.5
        %v2695 = vmul.f32 %v1395, 0.5
        %v2696 = vmul.f32 %v1397, 0.5
        %v2697 = vmul.f32 %v952, 0.5
        %v2698 = vmul.f32 %v954, 0.5
        %v2699 = vmul.f32 %v1401, 0.5
        %v2700 = vmul.f32 %v1403, 0.5
        %v2701 = vmul.f32 %v958, 0.5
        %v2702 = vmul.f32 %v960, 0.5
        %v2703 = vmul.f32 %v1407, 0.5
        %v2704 = vmul.f32 %v1409, 0.5
        %v2705 = vmul.f32 %v964, 0.5
        %v2706 = vmul.f32 %v966, 0.5
        %v2707 = vmul.f32 %v1413, 0.5
        %v2708 = vmul.f32 %v1415, 0.5
        %v2709 = vmul.f32 %v970, 0.5
        %v2710 = vmul.f32 %v972, 0.5
        %v2711 = vmul.f32 %v1419, 0.5
        %v2712 = vmul.f32 %v1421, 0.5
        %v2713 = vmul.f32 %v976, 0.5
        %v2714 = vmul.f32 %v978, 0.5
        %v2715 = vmul.f32 %v1425, 0.5
        %v2716 = vmul.f32 %v1427, 0.5
        %v2717 = vmul.f32 %v982, 0.5
        %v2718 = vmul.f32 %v984, 0.5
        %v2719 = vmul.f32 %v1431, 0.5
        %v2720 = vmul.f32 %v1433, 0.5
        %v2721 = vmul.f32 %v988, 0.5
        %v2722 = vmul.f32 %v990, 0.5
        %v2723 = vmul.f32 %v1437, 0.5
        %v2724 = vmul.f32 %v1439, 0.5
        %v2725 = vmul.f32 %v994, 0.5
        %v2726 = vmul.f32 %v996, 0.5
        %v2727 = vmul.f32 %v1443, 0.5
        %v2728 = vmul.f32 %v1445, 0.5
        %v2729 = vmul.f32 %v1000, 0.5
        %v2730 = vmul.f32 %v1002, 0.5
        %v2731 = vmul.f32 %v1449, 0.5
        %v2732 = vmul.f32 %v1451, 0.5
        %v2733 = vtanh.pop %v2221
        %v2734 = vtanh.pop %v2222
        %v2735 = vtanh.pop %v2223
        %v2736 = vtanh.pop %v2224
        %v2737 = vtanh.pop %v2225
        %v2738 = vtanh.pop %v2226
        %v2739 = vtanh.pop %v2227
        %v2740 = vtanh.pop %v2228
        %v2741 = vtanh.pop %v2229
        %v2742 = vtanh.pop %v2230
        %v2743 = vtanh.pop %v2231
        %v2744 = vtanh.pop %v2232
        %v2745 = vtanh.pop %v2233
        %v2746 = vtanh.pop %v2234
        %v2747 = vtanh.pop %v2235
        %v2748 = vtanh.pop %v2236
        %v2749 = vtanh.pop %v2237
        %v2750 = vtanh.pop %v2238
        %v2751 = vtanh.pop %v2239
        %v2752 = vtanh.pop %v2240
        %v2753 = vtanh.pop %v2241
        %v2754 = vtanh.pop %v2242
        %v2755 = vtanh.pop %v2243
        %v2756 = vtanh.pop %v2244
        %v2757 = vtanh.pop %v2245
        %v2758 = vtanh.pop %v2246
        %v2759 = vtanh.pop %v2247
        %v2760 = vtanh.pop %v2248
        %v2761 = vtanh.pop %v2249
        %v2762 = vtanh.pop %v2250
        %v2763 = vtanh.pop %v2251
        %v2764 = vtanh.pop %v2252
        %v2765 = vtanh.pop %v2253
        %v2766 = vtanh.pop %v2254
        %v2767 = vtanh.pop %v2255
        %v2768 = vtanh.pop %v2256
        %v2769 = vtanh.pop %v2257
        %v2770 = vtanh.pop %v2258
        %v2771 = vtanh.pop %v2259
        %v2772 = vtanh.pop %v2260
        %v2773 = vtanh.pop %v2261
        %v2774 = vtanh.pop %v2262
        %v2775 = vtanh.pop %v2263
        %v2776 = vtanh.pop %v2264
        %v2777 = vtanh.pop %v2265
        %v2778 = vtanh.pop %v2266
        %v2779 = vtanh.pop %v2267
        %v2780 = vtanh.pop %v2268
        %v2781 = vtanh.pop %v2269
        %v2782 = vtanh.pop %v2270
        %v2783 = vtanh.pop %v2271
        %v2784 = vtanh.pop %v2272
        %v2785 = vtanh.pop %v2273
        %v2786 = vtanh.pop %v2274
        %v2787 = vtanh.pop %v2275
        %v2788 = vtanh.pop %v2276
        %v2789 = vtanh.pop %v2277
        %v2790 = vtanh.pop %v2278
        %v2791 = vtanh.pop %v2279
        %v2792 = vtanh.pop %v2280
        %v2793 = vtanh.pop %v2281
        %v2794 = vtanh.pop %v2282
        %v2795 = vtanh.pop %v2283
        %v2796 = vtanh.pop %v2284
        %v2797 = vtanh.pop %v2285
        %v2798 = vtanh.pop %v2286
        %v2799 = vtanh.pop %v2287
        %v2800 = vtanh.pop %v2288
        %v2801 = vtanh.pop %v2289
        %v2802 = vtanh.pop %v2290
        %v2803 = vtanh.pop %v2291
        %v2804 = vtanh.pop %v2292
        %v2805 = vtanh.pop %v2293
        %v2806 = vtanh.pop %v2294
        %v2807 = vtanh.pop %v2295
        %v2808 = vtanh.pop %v2296
        %v2809 = vtanh.pop %v2297
        %v2810 = vtanh.pop %v2298
        %v2811 = vtanh.pop %v2299
        %v2812 = vtanh.pop %v2300
        %v2813 = vtanh.pop %v2301
        %v2814 = vtanh.pop %v2302
        %v2815 = vtanh.pop %v2303
        %v2816 = vtanh.pop %v2304
        %v2817 = vtanh.pop %v2305
        %v2818 = vtanh.pop %v2306
        %v2819 = vtanh.pop %v2307
        %v2820 = vtanh.pop %v2308
        %v2821 = vtanh.pop %v2309
        %v2822 = vtanh.pop %v2310
        %v2823 = vtanh.pop %v2311
        %v2824 = vtanh.pop %v2312
        %v2825 = vtanh.pop %v2313
        %v2826 = vtanh.pop %v2314
        %v2827 = vtanh.pop %v2315
        %v2828 = vtanh.pop %v2316
        %v2829 = vtanh.pop %v2317
        %v2830 = vtanh.pop %v2318
        %v2831 = vtanh.pop %v2319
        %v2832 = vtanh.pop %v2320
        %v2833 = vtanh.pop %v2321
        %v2834 = vtanh.pop %v2322
        %v2835 = vtanh.pop %v2323
        %v2836 = vtanh.pop %v2324
        %v2837 = vtanh.pop %v2325
        %v2838 = vtanh.pop %v2326
        %v2839 = vtanh.pop %v2327
        %v2840 = vtanh.pop %v2328
        %v2841 = vtanh.pop %v2329
        %v2842 = vtanh.pop %v2330
        %v2843 = vtanh.pop %v2331
        %v2844 = vtanh.pop %v2332
        %v2845 = vtanh.pop %v2333
        %v2846 = vtanh.pop %v2334
        %v2847 = vtanh.pop %v2335
        %v2848 = vtanh.pop %v2336
        %v2849 = vtanh.pop %v2337
        %v2850 = vtanh.pop %v2338
        %v2851 = vtanh.pop %v2339
        %v2852 = vtanh.pop %v2340
        %v2853 = vtanh.pop %v2341
        %v2854 = vtanh.pop %v2342
        %v2855 = vtanh.pop %v2343
        %v2856 = vtanh.pop %v2344
        %v2857 = vtanh.pop %v2345
        %v2858 = vtanh.pop %v2346
        %v2859 = vtanh.pop %v2347
        %v2860 = vtanh.pop %v2348
        %v2861 = vtanh.pop %v2349
        %v2862 = vtanh.pop %v2350
        %v2863 = vtanh.pop %v2351
        %v2864 = vtanh.pop %v2352
        %v2865 = vtanh.pop %v2353
        %v2866 = vtanh.pop %v2354
        %v2867 = vtanh.pop %v2355
        %v2868 = vtanh.pop %v2356
        %v2869 = vtanh.pop %v2357
        %v2870 = vtanh.pop %v2358
        %v2871 = vtanh.pop %v2359
        %v2872 = vtanh.pop %v2360
        %v2873 = vtanh.pop %v2361
        %v2874 = vtanh.pop %v2362
        %v2875 = vtanh.pop %v2363
        %v2876 = vtanh.pop %v2364
        %v2877 = vtanh.pop %v2365
        %v2878 = vtanh.pop %v2366
        %v2879 = vtanh.pop %v2367
        %v2880 = vtanh.pop %v2368
        %v2881 = vtanh.pop %v2369
        %v2882 = vtanh.pop %v2370
        %v2883 = vtanh.pop %v2371
        %v2884 = vtanh.pop %v2372
        %v2885 = vtanh.pop %v2373
        %v2886 = vtanh.pop %v2374
        %v2887 = vtanh.pop %v2375
        %v2888 = vtanh.pop %v2376
        %v2889 = vtanh.pop %v2377
        %v2890 = vtanh.pop %v2378
        %v2891 = vtanh.pop %v2379
        %v2892 = vtanh.pop %v2380
        %v2893 = vtanh.pop %v2381
        %v2894 = vtanh.pop %v2382
        %v2895 = vtanh.pop %v2383
        %v2896 = vtanh.pop %v2384
        %v2897 = vtanh.pop %v2385
        %v2898 = vtanh.pop %v2386
        %v2899 = vtanh.pop %v2387
        %v2900 = vtanh.pop %v2388
        %v2901 = vtanh.pop %v2389
        %v2902 = vtanh.pop %v2390
        %v2903 = vtanh.pop %v2391
        %v2904 = vtanh.pop %v2392
        %v2905 = vtanh.pop %v2393
        %v2906 = vtanh.pop %v2394
        %v2907 = vtanh.pop %v2395
        %v2908 = vtanh.pop %v2396
        %v2909 = vtanh.pop %v2397
        %v2910 = vtanh.pop %v2398
        %v2911 = vtanh.pop %v2399
        %v2912 = vtanh.pop %v2400
        %v2913 = vtanh.pop %v2401
        %v2914 = vtanh.pop %v2402
        %v2915 = vtanh.pop %v2403
        %v2916 = vtanh.pop %v2404
        %v2917 = vtanh.pop %v2405
        %v2918 = vtanh.pop %v2406
        %v2919 = vtanh.pop %v2407
        %v2920 = vtanh.pop %v2408
        %v2921 = vtanh.pop %v2409
        %v2922 = vtanh.pop %v2410
        %v2923 = vtanh.pop %v2411
        %v2924 = vtanh.pop %v2412
        %v2925 = vtanh.pop %v2413
        %v2926 = vtanh.pop %v2414
        %v2927 = vtanh.pop %v2415
        %v2928 = vtanh.pop %v2416
        %v2929 = vtanh.pop %v2417
        %v2930 = vtanh.pop %v2418
        %v2931 = vtanh.pop %v2419
        %v2932 = vtanh.pop %v2420
        %v2933 = vtanh.pop %v2421
        %v2934 = vtanh.pop %v2422
        %v2935 = vtanh.pop %v2423
        %v2936 = vtanh.pop %v2424
        %v2937 = vtanh.pop %v2425
        %v2938 = vtanh.pop %v2426
        %v2939 = vtanh.pop %v2427
        %v2940 = vtanh.pop %v2428
        %v2941 = vtanh.pop %v2429
        %v2942 = vtanh.pop %v2430
        %v2943 = vtanh.pop %v2431
        %v2944 = vtanh.pop %v2432
        %v2945 = vtanh.pop %v2433
        %v2946 = vtanh.pop %v2434
        %v2947 = vtanh.pop %v2435
        %v2948 = vtanh.pop %v2436
        %v2949 = vtanh.pop %v2437
        %v2950 = vtanh.pop %v2438
        %v2951 = vtanh.pop %v2439
        %v2952 = vtanh.pop %v2440
        %v2953 = vtanh.pop %v2441
        %v2954 = vtanh.pop %v2442
        %v2955 = vtanh.pop %v2443
        %v2956 = vtanh.pop %v2444
        %v2957 = vtanh.pop %v2445
        %v2958 = vtanh.pop %v2446
        %v2959 = vtanh.pop %v2447
        %v2960 = vtanh.pop %v2448
        %v2961 = vtanh.pop %v2449
        %v2962 = vtanh.pop %v2450
        %v2963 = vtanh.pop %v2451
        %v2964 = vtanh.pop %v2452
        %v2965 = vtanh.pop %v2453
        %v2966 = vtanh.pop %v2454
        %v2967 = vtanh.pop %v2455
        %v2968 = vtanh.pop %v2456
        %v2969 = vtanh.pop %v2457
        %v2970 = vtanh.pop %v2458
        %v2971 = vtanh.pop %v2459
        %v2972 = vtanh.pop %v2460
        %v2973 = vtanh.pop %v2461
        %v2974 = vtanh.pop %v2462
        %v2975 = vtanh.pop %v2463
        %v2976 = vtanh.pop %v2464
        %v2977 = vtanh.pop %v2465
        %v2978 = vtanh.pop %v2466
        %v2979 = vtanh.pop %v2467
        %v2980 = vtanh.pop %v2468
        %v2981 = vtanh.pop %v2469
        %v2982 = vtanh.pop %v2470
        %v2983 = vtanh.pop %v2471
        %v2984 = vtanh.pop %v2472
        %v2985 = vtanh.pop %v2473
        %v2986 = vtanh.pop %v2474
        %v2987 = vtanh.pop %v2475
        %v2988 = vtanh.pop %v2476
        %v2989 = vadd.f32 %v2733, 1.0
        %v2990 = vadd.f32 %v2734, 1.0
        %v2991 = vadd.f32 %v2735, 1.0
        %v2992 = vadd.f32 %v2736, 1.0
        %v2993 = vadd.f32 %v2737, 1.0
        %v2994 = vadd.f32 %v2738, 1.0
        %v2995 = vadd.f32 %v2739, 1.0
        %v2996 = vadd.f32 %v2740, 1.0
        %v2997 = vadd.f32 %v2741, 1.0
        %v2998 = vadd.f32 %v2742, 1.0
        %v2999 = vadd.f32 %v2743, 1.0
        %v3000 = vadd.f32 %v2744, 1.0
        %v3001 = vadd.f32 %v2745, 1.0
        %v3002 = vadd.f32 %v2746, 1.0
        %v3003 = vadd.f32 %v2747, 1.0
        %v3004 = vadd.f32 %v2748, 1.0
        %v3005 = vadd.f32 %v2749, 1.0
        %v3006 = vadd.f32 %v2750, 1.0
        %v3007 = vadd.f32 %v2751, 1.0
        %v3008 = vadd.f32 %v2752, 1.0
        %v3009 = vadd.f32 %v2753, 1.0
        %v3010 = vadd.f32 %v2754, 1.0
        %v3011 = vadd.f32 %v2755, 1.0
        %v3012 = vadd.f32 %v2756, 1.0
        %v3013 = vadd.f32 %v2757, 1.0
        %v3014 = vadd.f32 %v2758, 1.0
        %v3015 = vadd.f32 %v2759, 1.0
        %v3016 = vadd.f32 %v2760, 1.0
        %v3017 = vadd.f32 %v2761, 1.0
        %v3018 = vadd.f32 %v2762, 1.0
        %v3019 = vadd.f32 %v2763, 1.0
        %v3020 = vadd.f32 %v2764, 1.0
        %v3021 = vadd.f32 %v2765, 1.0
        %v3022 = vadd.f32 %v2766, 1.0
        %v3023 = vadd.f32 %v2767, 1.0
        %v3024 = vadd.f32 %v2768, 1.0
        %v3025 = vadd.f32 %v2769, 1.0
        %v3026 = vadd.f32 %v2770, 1.0
        %v3027 = vadd.f32 %v2771, 1.0
        %v3028 = vadd.f32 %v2772, 1.0
        %v3029 = vadd.f32 %v2773, 1.0
        %v3030 = vadd.f32 %v2774, 1.0
        %v3031 = vadd.f32 %v2775, 1.0
        %v3032 = vadd.f32 %v2776, 1.0
        %v3033 = vadd.f32 %v2777, 1.0
        %v3034 = vadd.f32 %v2778, 1.0
        %v3035 = vadd.f32 %v2779, 1.0
        %v3036 = vadd.f32 %v2780, 1.0
        %v3037 = vadd.f32 %v2781, 1.0
        %v3038 = vadd.f32 %v2782, 1.0
        %v3039 = vadd.f32 %v2783, 1.0
        %v3040 = vadd.f32 %v2784, 1.0
        %v3041 = vadd.f32 %v2785, 1.0
        %v3042 = vadd.f32 %v2786, 1.0
        %v3043 = vadd.f32 %v2787, 1.0
        %v3044 = vadd.f32 %v2788, 1.0
        %v3045 = vadd.f32 %v2789, 1.0
        %v3046 = vadd.f32 %v2790, 1.0
        %v3047 = vadd.f32 %v2791, 1.0
        %v3048 = vadd.f32 %v2792, 1.0
        %v3049 = vadd.f32 %v2793, 1.0
        %v3050 = vadd.f32 %v2794, 1.0
        %v3051 = vadd.f32 %v2795, 1.0
        %v3052 = vadd.f32 %v2796, 1.0
        %v3053 = vadd.f32 %v2797, 1.0
        %v3054 = vadd.f32 %v2798, 1.0
        %v3055 = vadd.f32 %v2799, 1.0
        %v3056 = vadd.f32 %v2800, 1.0
        %v3057 = vadd.f32 %v2801, 1.0
        %v3058 = vadd.f32 %v2802, 1.0
        %v3059 = vadd.f32 %v2803, 1.0
        %v3060 = vadd.f32 %v2804, 1.0
        %v3061 = vadd.f32 %v2805, 1.0
        %v3062 = vadd.f32 %v2806, 1.0
        %v3063 = vadd.f32 %v2807, 1.0
        %v3064 = vadd.f32 %v2808, 1.0
        %v3065 = vadd.f32 %v2809, 1.0
        %v3066 = vadd.f32 %v2810, 1.0
        %v3067 = vadd.f32 %v2811, 1.0
        %v3068 = vadd.f32 %v2812, 1.0
        %v3069 = vadd.f32 %v2813, 1.0
        %v3070 = vadd.f32 %v2814, 1.0
        %v3071 = vadd.f32 %v2815, 1.0
        %v3072 = vadd.f32 %v2816, 1.0
        %v3073 = vadd.f32 %v2817, 1.0
        %v3074 = vadd.f32 %v2818, 1.0
        %v3075 = vadd.f32 %v2819, 1.0
        %v3076 = vadd.f32 %v2820, 1.0
        %v3077 = vadd.f32 %v2821, 1.0
        %v3078 = vadd.f32 %v2822, 1.0
        %v3079 = vadd.f32 %v2823, 1.0
        %v3080 = vadd.f32 %v2824, 1.0
        %v3081 = vadd.f32 %v2825, 1.0
        %v3082 = vadd.f32 %v2826, 1.0
        %v3083 = vadd.f32 %v2827, 1.0
        %v3084 = vadd.f32 %v2828, 1.0
        %v3085 = vadd.f32 %v2829, 1.0
        %v3086 = vadd.f32 %v2830, 1.0
        %v3087 = vadd.f32 %v2831, 1.0
        %v3088 = vadd.f32 %v2832, 1.0
        %v3089 = vadd.f32 %v2833, 1.0
        %v3090 = vadd.f32 %v2834, 1.0
        %v3091 = vadd.f32 %v2835, 1.0
        %v3092 = vadd.f32 %v2836, 1.0
        %v3093 = vadd.f32 %v2837, 1.0
        %v3094 = vadd.f32 %v2838, 1.0
        %v3095 = vadd.f32 %v2839, 1.0
        %v3096 = vadd.f32 %v2840, 1.0
        %v3097 = vadd.f32 %v2841, 1.0
        %v3098 = vadd.f32 %v2842, 1.0
        %v3099 = vadd.f32 %v2843, 1.0
        %v3100 = vadd.f32 %v2844, 1.0
        %v3101 = vadd.f32 %v2845, 1.0
        %v3102 = vadd.f32 %v2846, 1.0
        %v3103 = vadd.f32 %v2847, 1.0
        %v3104 = vadd.f32 %v2848, 1.0
        %v3105 = vadd.f32 %v2849, 1.0
        %v3106 = vadd.f32 %v2850, 1.0
        %v3107 = vadd.f32 %v2851, 1.0
        %v3108 = vadd.f32 %v2852, 1.0
        %v3109 = vadd.f32 %v2853, 1.0
        %v3110 = vadd.f32 %v2854, 1.0
        %v3111 = vadd.f32 %v2855, 1.0
        %v3112 = vadd.f32 %v2856, 1.0
        %v3113 = vadd.f32 %v2857, 1.0
        %v3114 = vadd.f32 %v2858, 1.0
        %v3115 = vadd.f32 %v2859, 1.0
        %v3116 = vadd.f32 %v2860, 1.0
        %v3117 = vadd.f32 %v2861, 1.0
        %v3118 = vadd.f32 %v2862, 1.0
        %v3119 = vadd.f32 %v2863, 1.0
        %v3120 = vadd.f32 %v2864, 1.0
        %v3121 = vadd.f32 %v2865, 1.0
        %v3122 = vadd.f32 %v2866, 1.0
        %v3123 = vadd.f32 %v2867, 1.0
        %v3124 = vadd.f32 %v2868, 1.0
        %v3125 = vadd.f32 %v2869, 1.0
        %v3126 = vadd.f32 %v2870, 1.0
        %v3127 = vadd.f32 %v2871, 1.0
        %v3128 = vadd.f32 %v2872, 1.0
        %v3129 = vadd.f32 %v2873, 1.0
        %v3130 = vadd.f32 %v2874, 1.0
        %v3131 = vadd.f32 %v2875, 1.0
        %v3132 = vadd.f32 %v2876, 1.0
        %v3133 = vadd.f32 %v2877, 1.0
        %v3134 = vadd.f32 %v2878, 1.0
        %v3135 = vadd.f32 %v2879, 1.0
        %v3136 = vadd.f32 %v2880, 1.0
        %v3137 = vadd.f32 %v2881, 1.0
        %v3138 = vadd.f32 %v2882, 1.0
        %v3139 = vadd.f32 %v2883, 1.0
        %v3140 = vadd.f32 %v2884, 1.0
        %v3141 = vadd.f32 %v2885, 1.0
        %v3142 = vadd.f32 %v2886, 1.0
        %v3143 = vadd.f32 %v2887, 1.0
        %v3144 = vadd.f32 %v2888, 1.0
        %v3145 = vadd.f32 %v2889, 1.0
        %v3146 = vadd.f32 %v2890, 1.0
        %v3147 = vadd.f32 %v2891, 1.0
        %v3148 = vadd.f32 %v2892, 1.0
        %v3149 = vadd.f32 %v2893, 1.0
        %v3150 = vadd.f32 %v2894, 1.0
        %v3151 = vadd.f32 %v2895, 1.0
        %v3152 = vadd.f32 %v2896, 1.0
        %v3153 = vadd.f32 %v2897, 1.0
        %v3154 = vadd.f32 %v2898, 1.0
        %v3155 = vadd.f32 %v2899, 1.0
        %v3156 = vadd.f32 %v2900, 1.0
        %v3157 = vadd.f32 %v2901, 1.0
        %v3158 = vadd.f32 %v2902, 1.0
        %v3159 = vadd.f32 %v2903, 1.0
        %v3160 = vadd.f32 %v2904, 1.0
        %v3161 = vadd.f32 %v2905, 1.0
        %v3162 = vadd.f32 %v2906, 1.0
        %v3163 = vadd.f32 %v2907, 1.0
        %v3164 = vadd.f32 %v2908, 1.0
        %v3165 = vadd.f32 %v2909, 1.0
        %v3166 = vadd.f32 %v2910, 1.0
        %v3167 = vadd.f32 %v2911, 1.0
        %v3168 = vadd.f32 %v2912, 1.0
        %v3169 = vadd.f32 %v2913, 1.0
        %v3170 = vadd.f32 %v2914, 1.0
        %v3171 = vadd.f32 %v2915, 1.0
        %v3172 = vadd.f32 %v2916, 1.0
        %v3173 = vadd.f32 %v2917, 1.0
        %v3174 = vadd.f32 %v2918, 1.0
        %v3175 = vadd.f32 %v2919, 1.0
        %v3176 = vadd.f32 %v2920, 1.0
        %v3177 = vadd.f32 %v2921, 1.0
        %v3178 = vadd.f32 %v2922, 1.0
        %v3179 = vadd.f32 %v2923, 1.0
        %v3180 = vadd.f32 %v2924, 1.0
        %v3181 = vadd.f32 %v2925, 1.0
        %v3182 = vadd.f32 %v2926, 1.0
        %v3183 = vadd.f32 %v2927, 1.0
        %v3184 = vadd.f32 %v2928, 1.0
        %v3185 = vadd.f32 %v2929, 1.0
        %v3186 = vadd.f32 %v2930, 1.0
        %v3187 = vadd.f32 %v2931, 1.0
        %v3188 = vadd.f32 %v2932, 1.0
        %v3189 = vadd.f32 %v2933, 1.0
        %v3190 = vadd.f32 %v2934, 1.0
        %v3191 = vadd.f32 %v2935, 1.0
        %v3192 = vadd.f32 %v2936, 1.0
        %v3193 = vadd.f32 %v2937, 1.0
        %v3194 = vadd.f32 %v2938, 1.0
        %v3195 = vadd.f32 %v2939, 1.0
        %v3196 = vadd.f32 %v2940, 1.0
        %v3197 = vadd.f32 %v2941, 1.0
        %v3198 = vadd.f32 %v2942, 1.0
        %v3199 = vadd.f32 %v2943, 1.0
        %v3200 = vadd.f32 %v2944, 1.0
        %v3201 = vadd.f32 %v2945, 1.0
        %v3202 = vadd.f32 %v2946, 1.0
        %v3203 = vadd.f32 %v2947, 1.0
        %v3204 = vadd.f32 %v2948, 1.0
        %v3205 = vadd.f32 %v2949, 1.0
        %v3206 = vadd.f32 %v2950, 1.0
        %v3207 = vadd.f32 %v2951, 1.0
        %v3208 = vadd.f32 %v2952, 1.0
        %v3209 = vadd.f32 %v2953, 1.0
        %v3210 = vadd.f32 %v2954, 1.0
        %v3211 = vadd.f32 %v2955, 1.0
        %v3212 = vadd.f32 %v2956, 1.0
        %v3213 = vadd.f32 %v2957, 1.0
        %v3214 = vadd.f32 %v2958, 1.0
        %v3215 = vadd.f32 %v2959, 1.0
        %v3216 = vadd.f32 %v2960, 1.0
        %v3217 = vadd.f32 %v2961, 1.0
        %v3218 = vadd.f32 %v2962, 1.0
        %v3219 = vadd.f32 %v2963, 1.0
        %v3220 = vadd.f32 %v2964, 1.0
        %v3221 = vadd.f32 %v2965, 1.0
        %v3222 = vadd.f32 %v2966, 1.0
        %v3223 = vadd.f32 %v2967, 1.0
        %v3224 = vadd.f32 %v2968, 1.0
        %v3225 = vadd.f32 %v2969, 1.0
        %v3226 = vadd.f32 %v2970, 1.0
        %v3227 = vadd.f32 %v2971, 1.0
        %v3228 = vadd.f32 %v2972, 1.0
        %v3229 = vadd.f32 %v2973, 1.0
        %v3230 = vadd.f32 %v2974, 1.0
        %v3231 = vadd.f32 %v2975, 1.0
        %v3232 = vadd.f32 %v2976, 1.0
        %v3233 = vadd.f32 %v2977, 1.0
        %v3234 = vadd.f32 %v2978, 1.0
        %v3235 = vadd.f32 %v2979, 1.0
        %v3236 = vadd.f32 %v2980, 1.0
        %v3237 = vadd.f32 %v2981, 1.0
        %v3238 = vadd.f32 %v2982, 1.0
        %v3239 = vadd.f32 %v2983, 1.0
        %v3240 = vadd.f32 %v2984, 1.0
        %v3241 = vadd.f32 %v2985, 1.0
        %v3242 = vadd.f32 %v2986, 1.0
        %v3243 = vadd.f32 %v2987, 1.0
        %v3244 = vadd.f32 %v2988, 1.0
        %v3245 = vmul.f32 %v2477, %v2989
        %v3246 = vmul.f32 %v2478, %v2990
        %v3247 = vmul.f32 %v2479, %v2991
        %v3248 = vmul.f32 %v2480, %v2992
        %v3249 = vmul.f32 %v2481, %v2993
        %v3250 = vmul.f32 %v2482, %v2994
        %v3251 = vmul.f32 %v2483, %v2995
        %v3252 = vmul.f32 %v2484, %v2996
        %v3253 = vmul.f32 %v2485, %v2997
        %v3254 = vmul.f32 %v2486, %v2998
        %v3255 = vmul.f32 %v2487, %v2999
        %v3256 = vmul.f32 %v2488, %v3000
        %v3257 = vmul.f32 %v2489, %v3001
        %v3258 = vmul.f32 %v2490, %v3002
        %v3259 = vmul.f32 %v2491, %v3003
        %v3260 = vmul.f32 %v2492, %v3004
        %v3261 = vmul.f32 %v2493, %v3005
        %v3262 = vmul.f32 %v2494, %v3006
        %v3263 = vmul.f32 %v2495, %v3007
        %v3264 = vmul.f32 %v2496, %v3008
        %v3265 = vmul.f32 %v2497, %v3009
        %v3266 = vmul.f32 %v2498, %v3010
        %v3267 = vmul.f32 %v2499, %v3011
        %v3268 = vmul.f32 %v2500, %v3012
        %v3269 = vmul.f32 %v2501, %v3013
        %v3270 = vmul.f32 %v2502, %v3014
        %v3271 = vmul.f32 %v2503, %v3015
        %v3272 = vmul.f32 %v2504, %v3016
        %v3273 = vmul.f32 %v2505, %v3017
        %v3274 = vmul.f32 %v2506, %v3018
        %v3275 = vmul.f32 %v2507, %v3019
        %v3276 = vmul.f32 %v2508, %v3020
        %v3277 = vmul.f32 %v2509, %v3021
        %v3278 = vmul.f32 %v2510, %v3022
        %v3279 = vmul.f32 %v2511, %v3023
        %v3280 = vmul.f32 %v2512, %v3024
        %v3281 = vmul.f32 %v2513, %v3025
        %v3282 = vmul.f32 %v2514, %v3026
        %v3283 = vmul.f32 %v2515, %v3027
        %v3284 = vmul.f32 %v2516, %v3028
        %v3285 = vmul.f32 %v2517, %v3029
        %v3286 = vmul.f32 %v2518, %v3030
        %v3287 = vmul.f32 %v2519, %v3031
        %v3288 = vmul.f32 %v2520, %v3032
        %v3289 = vmul.f32 %v2521, %v3033
        %v3290 = vmul.f32 %v2522, %v3034
        %v3291 = vmul.f32 %v2523, %v3035
        %v3292 = vmul.f32 %v2524, %v3036
        %v3293 = vmul.f32 %v2525, %v3037
        %v3294 = vmul.f32 %v2526, %v3038
        %v3295 = vmul.f32 %v2527, %v3039
        %v3296 = vmul.f32 %v2528, %v3040
        %v3297 = vmul.f32 %v2529, %v3041
        %v3298 = vmul.f32 %v2530, %v3042
        %v3299 = vmul.f32 %v2531, %v3043
        %v3300 = vmul.f32 %v2532, %v3044
        %v3301 = vmul.f32 %v2533, %v3045
        %v3302 = vmul.f32 %v2534, %v3046
        %v3303 = vmul.f32 %v2535, %v3047
        %v3304 = vmul.f32 %v2536, %v3048
        %v3305 = vmul.f32 %v2537, %v3049
        %v3306 = vmul.f32 %v2538, %v3050
        %v3307 = vmul.f32 %v2539, %v3051
        %v3308 = vmul.f32 %v2540, %v3052
        %v3309 = vmul.f32 %v2541, %v3053
        %v3310 = vmul.f32 %v2542, %v3054
        %v3311 = vmul.f32 %v2543, %v3055
        %v3312 = vmul.f32 %v2544, %v3056
        %v3313 = vmul.f32 %v2545, %v3057
        %v3314 = vmul.f32 %v2546, %v3058
        %v3315 = vmul.f32 %v2547, %v3059
        %v3316 = vmul.f32 %v2548, %v3060
        %v3317 = vmul.f32 %v2549, %v3061
        %v3318 = vmul.f32 %v2550, %v3062
        %v3319 = vmul.f32 %v2551, %v3063
        %v3320 = vmul.f32 %v2552, %v3064
        %v3321 = vmul.f32 %v2553, %v3065
        %v3322 = vmul.f32 %v2554, %v3066
        %v3323 = vmul.f32 %v2555, %v3067
        %v3324 = vmul.f32 %v2556, %v3068
        %v3325 = vmul.f32 %v2557, %v3069
        %v3326 = vmul.f32 %v2558, %v3070
        %v3327 = vmul.f32 %v2559, %v3071
        %v3328 = vmul.f32 %v2560, %v3072
        %v3329 = vmul.f32 %v2561, %v3073
        %v3330 = vmul.f32 %v2562, %v3074
        %v3331 = vmul.f32 %v2563, %v3075
        %v3332 = vmul.f32 %v2564, %v3076
        %v3333 = vmul.f32 %v2565, %v3077
        %v3334 = vmul.f32 %v2566, %v3078
        %v3335 = vmul.f32 %v2567, %v3079
        %v3336 = vmul.f32 %v2568, %v3080
        %v3337 = vmul.f32 %v2569, %v3081
        %v3338 = vmul.f32 %v2570, %v3082
        %v3339 = vmul.f32 %v2571, %v3083
        %v3340 = vmul.f32 %v2572, %v3084
        %v3341 = vmul.f32 %v2573, %v3085
        %v3342 = vmul.f32 %v2574, %v3086
        %v3343 = vmul.f32 %v2575, %v3087
        %v3344 = vmul.f32 %v2576, %v3088
        %v3345 = vmul.f32 %v2577, %v3089
        %v3346 = vmul.f32 %v2578, %v3090
        %v3347 = vmul.f32 %v2579, %v3091
        %v3348 = vmul.f32 %v2580, %v3092
        %v3349 = vmul.f32 %v2581, %v3093
        %v3350 = vmul.f32 %v2582, %v3094
        %v3351 = vmul.f32 %v2583, %v3095
        %v3352 = vmul.f32 %v2584, %v3096
        %v3353 = vmul.f32 %v2585, %v3097
        %v3354 = vmul.f32 %v2586, %v3098
        %v3355 = vmul.f32 %v2587, %v3099
        %v3356 = vmul.f32 %v2588, %v3100
        %v3357 = vmul.f32 %v2589, %v3101
        %v3358 = vmul.f32 %v2590, %v3102
        %v3359 = vmul.f32 %v2591, %v3103
        %v3360 = vmul.f32 %v2592, %v3104
        %v3361 = vmul.f32 %v2593, %v3105
        %v3362 = vmul.f32 %v2594, %v3106
        %v3363 = vmul.f32 %v2595, %v3107
        %v3364 = vmul.f32 %v2596, %v3108
        %v3365 = vmul.f32 %v2597, %v3109
        %v3366 = vmul.f32 %v2598, %v3110
        %v3367 = vmul.f32 %v2599, %v3111
        %v3368 = vmul.f32 %v2600, %v3112
        %v3369 = vmul.f32 %v2601, %v3113
        %v3370 = vmul.f32 %v2602, %v3114
        %v3371 = vmul.f32 %v2603, %v3115
        %v3372 = vmul.f32 %v2604, %v3116
        %v3373 = vmul.f32 %v2605, %v3117
        %v3374 = vmul.f32 %v2606, %v3118
        %v3375 = vmul.f32 %v2607, %v3119
        %v3376 = vmul.f32 %v2608, %v3120
        %v3377 = vmul.f32 %v2609, %v3121
        %v3378 = vmul.f32 %v2610, %v3122
        %v3379 = vmul.f32 %v2611, %v3123
        %v3380 = vmul.f32 %v2612, %v3124
        %v3381 = vmul.f32 %v2613, %v3125
        %v3382 = vmul.f32 %v2614, %v3126
        %v3383 = vmul.f32 %v2615, %v3127
        %v3384 = vmul.f32 %v2616, %v3128
        %v3385 = vmul.f32 %v2617, %v3129
        %v3386 = vmul.f32 %v2618, %v3130
        %v3387 = vmul.f32 %v2619, %v3131
        %v3388 = vmul.f32 %v2620, %v3132
        %v3389 = vmul.f32 %v2621, %v3133
        %v3390 = vmul.f32 %v2622, %v3134
        %v3391 = vmul.f32 %v2623, %v3135
        %v3392 = vmul.f32 %v2624, %v3136
        %v3393 = vmul.f32 %v2625, %v3137
        %v3394 = vmul.f32 %v2626, %v3138
        %v3395 = vmul.f32 %v2627, %v3139
        %v3396 = vmul.f32 %v2628, %v3140
        %v3397 = vmul.f32 %v2629, %v3141
        %v3398 = vmul.f32 %v2630, %v3142
        %v3399 = vmul.f32 %v2631, %v3143
        %v3400 = vmul.f32 %v2632, %v3144
        %v3401 = vmul.f32 %v2633, %v3145
        %v3402 = vmul.f32 %v2634, %v3146
        %v3403 = vmul.f32 %v2635, %v3147
        %v3404 = vmul.f32 %v2636, %v3148
        %v3405 = vmul.f32 %v2637, %v3149
        %v3406 = vmul.f32 %v2638, %v3150
        %v3407 = vmul.f32 %v2639, %v3151
        %v3408 = vmul.f32 %v2640, %v3152
        %v3409 = vmul.f32 %v2641, %v3153
        %v3410 = vmul.f32 %v2642, %v3154
        %v3411 = vmul.f32 %v2643, %v3155
        %v3412 = vmul.f32 %v2644, %v3156
        %v3413 = vmul.f32 %v2645, %v3157
        %v3414 = vmul.f32 %v2646, %v3158
        %v3415 = vmul.f32 %v2647, %v3159
        %v3416 = vmul.f32 %v2648, %v3160
        %v3417 = vmul.f32 %v2649, %v3161
        %v3418 = vmul.f32 %v2650, %v3162
        %v3419 = vmul.f32 %v2651, %v3163
        %v3420 = vmul.f32 %v2652, %v3164
        %v3421 = vmul.f32 %v2653, %v3165
        %v3422 = vmul.f32 %v2654, %v3166
        %v3423 = vmul.f32 %v2655, %v3167
        %v3424 = vmul.f32 %v2656, %v3168
        %v3425 = vmul.f32 %v2657, %v3169
        %v3426 = vmul.f32 %v2658, %v3170
        %v3427 = vmul.f32 %v2659, %v3171
        %v3428 = vmul.f32 %v2660, %v3172
        %v3429 = vmul.f32 %v2661, %v3173
        %v3430 = vmul.f32 %v2662, %v3174
        %v3431 = vmul.f32 %v2663, %v3175
        %v3432 = vmul.f32 %v2664, %v3176
        %v3433 = vmul.f32 %v2665, %v3177
        %v3434 = vmul.f32 %v2666, %v3178
        %v3435 = vmul.f32 %v2667, %v3179
        %v3436 = vmul.f32 %v2668, %v3180
        %v3437 = vmul.f32 %v2669, %v3181
        %v3438 = vmul.f32 %v2670, %v3182
        %v3439 = vmul.f32 %v2671, %v3183
        %v3440 = vmul.f32 %v2672, %v3184
        %v3441 = vmul.f32 %v2673, %v3185
        %v3442 = vmul.f32 %v2674, %v3186
        %v3443 = vmul.f32 %v2675, %v3187
        %v3444 = vmul.f32 %v2676, %v3188
        %v3445 = vmul.f32 %v2677, %v3189
        %v3446 = vmul.f32 %v2678, %v3190
        %v3447 = vmul.f32 %v2679, %v3191
        %v3448 = vmul.f32 %v2680, %v3192
        %v3449 = vmul.f32 %v2681, %v3193
        %v3450 = vmul.f32 %v2682, %v3194
        %v3451 = vmul.f32 %v2683, %v3195
        %v3452 = vmul.f32 %v2684, %v3196
        %v3453 = vmul.f32 %v2685, %v3197
        %v3454 = vmul.f32 %v2686, %v3198
        %v3455 = vmul.f32 %v2687, %v3199
        %v3456 = vmul.f32 %v2688, %v3200
        %v3457 = vmul.f32 %v2689, %v3201
        %v3458 = vmul.f32 %v2690, %v3202
        %v3459 = vmul.f32 %v2691, %v3203
        %v3460 = vmul.f32 %v2692, %v3204
        %v3461 = vmul.f32 %v2693, %v3205
        %v3462 = vmul.f32 %v2694, %v3206
        %v3463 = vmul.f32 %v2695, %v3207
        %v3464 = vmul.f32 %v2696, %v3208
        %v3465 = vmul.f32 %v2697, %v3209
        %v3466 = vmul.f32 %v2698, %v3210
        %v3467 = vmul.f32 %v2699, %v3211
        %v3468 = vmul.f32 %v2700, %v3212
        %v3469 = vmul.f32 %v2701, %v3213
        %v3470 = vmul.f32 %v2702, %v3214
        %v3471 = vmul.f32 %v2703, %v3215
        %v3472 = vmul.f32 %v2704, %v3216
        %v3473 = vmul.f32 %v2705, %v3217
        %v3474 = vmul.f32 %v2706, %v3218
        %v3475 = vmul.f32 %v2707, %v3219
        %v3476 = vmul.f32 %v2708, %v3220
        %v3477 = vmul.f32 %v2709, %v3221
        %v3478 = vmul.f32 %v2710, %v3222
        %v3479 = vmul.f32 %v2711, %v3223
        %v3480 = vmul.f32 %v2712, %v3224
        %v3481 = vmul.f32 %v2713, %v3225
        %v3482 = vmul.f32 %v2714, %v3226
        %v3483 = vmul.f32 %v2715, %v3227
        %v3484 = vmul.f32 %v2716, %v3228
        %v3485 = vmul.f32 %v2717, %v3229
        %v3486 = vmul.f32 %v2718, %v3230
        %v3487 = vmul.f32 %v2719, %v3231
        %v3488 = vmul.f32 %v2720, %v3232
        %v3489 = vmul.f32 %v2721, %v3233
        %v3490 = vmul.f32 %v2722, %v3234
        %v3491 = vmul.f32 %v2723, %v3235
        %v3492 = vmul.f32 %v2724, %v3236
        %v3493 = vmul.f32 %v2725, %v3237
        %v3494 = vmul.f32 %v2726, %v3238
        %v3495 = vmul.f32 %v2727, %v3239
        %v3496 = vmul.f32 %v2728, %v3240
        %v3497 = vmul.f32 %v2729, %v3241
        %v3498 = vmul.f32 %v2730, %v3242
        %v3499 = vmul.f32 %v2731, %v3243
        %v3500 = vmul.f32 %v2732, %v3244
        %v3501 = vld [vmem:[#allocation2] sm:$0xff]
        %v3502 = vld [vmem:[#allocation2 + $0x8] sm:$0xff]
        %v3503 = vld [vmem:[#allocation2 + $0x10] sm:$0xff]
        %v3504 = vld [vmem:[#allocation2 + $0x18] sm:$0xff]
        %v3505 = vld [vmem:[#allocation2 + $0x20] sm:$0xff]
        %v3506 = vld [vmem:[#allocation2 + $0x28] sm:$0xff]
        %v3507 = vld [vmem:[#allocation2 + $0x30] sm:$0xff]
        %v3508 = vld [vmem:[#allocation2 + $0x38] sm:$0xff]
        %v3509 = vld [vmem:[#allocation2 + $0x40] sm:$0xff]
        %v3510 = vld [vmem:[#allocation2 + $0x48] sm:$0xff]
        %v3511 = vld [vmem:[#allocation2 + $0x50] sm:$0xff]
        %v3512 = vld [vmem:[#allocation2 + $0x58] sm:$0xff]
        %v3513 = vld [vmem:[#allocation2 + $0x60] sm:$0xff]
        %v3514 = vld [vmem:[#allocation2 + $0x68] sm:$0xff]
        %v3515 = vld [vmem:[#allocation2 + $0x70] sm:$0xff]
        %v3516 = vld [vmem:[#allocation2 + $0x78] sm:$0xff]
        %v3517 = vld [vmem:[#allocation2 + $0x80] sm:$0xff]
        %v3518 = vld [vmem:[#allocation2 + $0x88] sm:$0xff]
        %v3519 = vld [vmem:[#allocation2 + $0x90] sm:$0xff]
        %v3520 = vld [vmem:[#allocation2 + $0x98] sm:$0xff]
        %v3521 = vld [vmem:[#allocation2 + $0xa0] sm:$0xff]
        %v3522 = vld [vmem:[#allocation2 + $0xa8] sm:$0xff]
        %v3523 = vld [vmem:[#allocation2 + $0xb0] sm:$0xff]
        %v3524 = vld [vmem:[#allocation2 + $0xb8] sm:$0xff]
        %v3525 = vld [vmem:[#allocation2 + $0xc0] sm:$0xff]
        %v3526 = vld [vmem:[#allocation2 + $0xc8] sm:$0xff]
        %v3527 = vld [vmem:[#allocation2 + $0xd0] sm:$0xff]
        %v3528 = vld [vmem:[#allocation2 + $0xd8] sm:$0xff]
        %v3529 = vld [vmem:[#allocation2 + $0xe0] sm:$0xff]
        %v3530 = vld [vmem:[#allocation2 + $0xe8] sm:$0xff]
        %v3531 = vld [vmem:[#allocation2 + $0xf0] sm:$0xff]
        %v3532 = vld [vmem:[#allocation2 + $0xf8] sm:$0xff]
        %v3533 = vld [vmem:[#allocation2 + $0x100] sm:$0xff]
        %v3534 = vld [vmem:[#allocation2 + $0x108] sm:$0xff]
        %v3535 = vld [vmem:[#allocation2 + $0x110] sm:$0xff]
        %v3536 = vld [vmem:[#allocation2 + $0x118] sm:$0xff]
        %v3537 = vld [vmem:[#allocation2 + $0x120] sm:$0xff]
        %v3538 = vld [vmem:[#allocation2 + $0x128] sm:$0xff]
        %v3539 = vld [vmem:[#allocation2 + $0x130] sm:$0xff]
        %v3540 = vld [vmem:[#allocation2 + $0x138] sm:$0xff]
        %v3541 = vld [vmem:[#allocation2 + $0x140] sm:$0xff]
        %v3542 = vld [vmem:[#allocation2 + $0x148] sm:$0xff]
        %v3543 = vld [vmem:[#allocation2 + $0x150] sm:$0xff]
        %v3544 = vld [vmem:[#allocation2 + $0x158] sm:$0xff]
        %v3545 = vld [vmem:[#allocation2 + $0x160] sm:$0xff]
        %v3546 = vld [vmem:[#allocation2 + $0x168] sm:$0xff]
        %v3547 = vld [vmem:[#allocation2 + $0x170] sm:$0xff]
        %v3548 = vld [vmem:[#allocation2 + $0x178] sm:$0xff]
        %v3549 = vld [vmem:[#allocation2 + $0x180] sm:$0xff]
        %v3550 = vld [vmem:[#allocation2 + $0x188] sm:$0xff]
        %v3551 = vld [vmem:[#allocation2 + $0x190] sm:$0xff]
        %v3552 = vld [vmem:[#allocation2 + $0x198] sm:$0xff]
        %v3553 = vld [vmem:[#allocation2 + $0x1a0] sm:$0xff]
        %v3554 = vld [vmem:[#allocation2 + $0x1a8] sm:$0xff]
        %v3555 = vld [vmem:[#allocation2 + $0x1b0] sm:$0xff]
        %v3556 = vld [vmem:[#allocation2 + $0x1b8] sm:$0xff]
        %v3557 = vld [vmem:[#allocation2 + $0x1c0] sm:$0xff]
        %v3558 = vld [vmem:[#allocation2 + $0x1c8] sm:$0xff]
        %v3559 = vld [vmem:[#allocation2 + $0x1d0] sm:$0xff]
        %v3560 = vld [vmem:[#allocation2 + $0x1d8] sm:$0xff]
        %v3561 = vld [vmem:[#allocation2 + $0x1e0] sm:$0xff]
        %v3562 = vld [vmem:[#allocation2 + $0x1e8] sm:$0xff]
        %v3563 = vld [vmem:[#allocation2 + $0x1f0] sm:$0xff]
        %v3564 = vld [vmem:[#allocation2 + $0x1f8] sm:$0xff]
        %v3565 = vld [vmem:[#allocation8] sm:$0xff]
        %v3566 = vld [vmem:[#allocation8 + $0x8] sm:$0xff]
        %v3567 = vld [vmem:[#allocation8 + $0x10] sm:$0xff]
        %v3568 = vld [vmem:[#allocation8 + $0x18] sm:$0xff]
        %v3569 = vld [vmem:[#allocation8 + $0x20] sm:$0xff]
        %v3570 = vld [vmem:[#allocation8 + $0x28] sm:$0xff]
        %v3571 = vld [vmem:[#allocation8 + $0x30] sm:$0xff]
        %v3572 = vld [vmem:[#allocation8 + $0x38] sm:$0xff]
        %v3573 = vld [vmem:[#allocation8 + $0x40] sm:$0xff]
        %v3574 = vld [vmem:[#allocation8 + $0x48] sm:$0xff]
        %v3575 = vld [vmem:[#allocation8 + $0x50] sm:$0xff]
        %v3576 = vld [vmem:[#allocation8 + $0x58] sm:$0xff]
        %v3577 = vld [vmem:[#allocation8 + $0x60] sm:$0xff]
        %v3578 = vld [vmem:[#allocation8 + $0x68] sm:$0xff]
        %v3579 = vld [vmem:[#allocation8 + $0x70] sm:$0xff]
        %v3580 = vld [vmem:[#allocation8 + $0x78] sm:$0xff]
        %v3581 = vld [vmem:[#allocation8 + $0x80] sm:$0xff]
        %v3582 = vld [vmem:[#allocation8 + $0x88] sm:$0xff]
        %v3583 = vld [vmem:[#allocation8 + $0x90] sm:$0xff]
        %v3584 = vld [vmem:[#allocation8 + $0x98] sm:$0xff]
        %v3585 = vld [vmem:[#allocation8 + $0xa0] sm:$0xff]
        %v3586 = vld [vmem:[#allocation8 + $0xa8] sm:$0xff]
        %v3587 = vld [vmem:[#allocation8 + $0xb0] sm:$0xff]
        %v3588 = vld [vmem:[#allocation8 + $0xb8] sm:$0xff]
        %v3589 = vld [vmem:[#allocation8 + $0xc0] sm:$0xff]
        %v3590 = vld [vmem:[#allocation8 + $0xc8] sm:$0xff]
        %v3591 = vld [vmem:[#allocation8 + $0xd0] sm:$0xff]
        %v3592 = vld [vmem:[#allocation8 + $0xd8] sm:$0xff]
        %v3593 = vld [vmem:[#allocation8 + $0xe0] sm:$0xff]
        %v3594 = vld [vmem:[#allocation8 + $0xe8] sm:$0xff]
        %v3595 = vld [vmem:[#allocation8 + $0xf0] sm:$0xff]
        %v3596 = vld [vmem:[#allocation8 + $0xf8] sm:$0xff]
        %v3597 = vld [vmem:[#allocation8 + $0x100] sm:$0xff]
        %v3598 = vld [vmem:[#allocation8 + $0x108] sm:$0xff]
        %v3599 = vld [vmem:[#allocation8 + $0x110] sm:$0xff]
        %v3600 = vld [vmem:[#allocation8 + $0x118] sm:$0xff]
        %v3601 = vld [vmem:[#allocation8 + $0x120] sm:$0xff]
        %v3602 = vld [vmem:[#allocation8 + $0x128] sm:$0xff]
        %v3603 = vld [vmem:[#allocation8 + $0x130] sm:$0xff]
        %v3604 = vld [vmem:[#allocation8 + $0x138] sm:$0xff]
        %v3605 = vld [vmem:[#allocation8 + $0x140] sm:$0xff]
        %v3606 = vld [vmem:[#allocation8 + $0x148] sm:$0xff]
        %v3607 = vld [vmem:[#allocation8 + $0x150] sm:$0xff]
        %v3608 = vld [vmem:[#allocation8 + $0x158] sm:$0xff]
        %v3609 = vld [vmem:[#allocation8 + $0x160] sm:$0xff]
        %v3610 = vld [vmem:[#allocation8 + $0x168] sm:$0xff]
        %v3611 = vld [vmem:[#allocation8 + $0x170] sm:$0xff]
        %v3612 = vld [vmem:[#allocation8 + $0x178] sm:$0xff]
        %v3613 = vld [vmem:[#allocation8 + $0x180] sm:$0xff]
        %v3614 = vld [vmem:[#allocation8 + $0x188] sm:$0xff]
        %v3615 = vld [vmem:[#allocation8 + $0x190] sm:$0xff]
        %v3616 = vld [vmem:[#allocation8 + $0x198] sm:$0xff]
        %v3617 = vld [vmem:[#allocation8 + $0x1a0] sm:$0xff]
        %v3618 = vld [vmem:[#allocation8 + $0x1a8] sm:$0xff]
        %v3619 = vld [vmem:[#allocation8 + $0x1b0] sm:$0xff]
        %v3620 = vld [vmem:[#allocation8 + $0x1b8] sm:$0xff]
        %v3621 = vld [vmem:[#allocation8 + $0x1c0] sm:$0xff]
        %v3622 = vld [vmem:[#allocation8 + $0x1c8] sm:$0xff]
        %v3623 = vld [vmem:[#allocation8 + $0x1d0] sm:$0xff]
        %v3624 = vld [vmem:[#allocation8 + $0x1d8] sm:$0xff]
        %v3625 = vld [vmem:[#allocation8 + $0x1e0] sm:$0xff]
        %v3626 = vld [vmem:[#allocation8 + $0x1e8] sm:$0xff]
        %v3627 = vld [vmem:[#allocation8 + $0x1f0] sm:$0xff]
        %v3628 = vld [vmem:[#allocation8 + $0x1f8] sm:$0xff]
        %3629 = vmatprep.subr.mxu0 0.0
        %3630 = vmatpush1.msra.mxu0 %v3565
        %3631 = vmatprep.subr.mxu0 0.0
        %3632 = vmatpush1.msra.mxu0 %v3566
        %3633 = vmatprep.subr.mxu0 0.0
        %3634 = vmatpush1.msra.mxu0 %v3567
        %3635 = vmatprep.subr.mxu0 0.0
        %3636 = vmatpush1.msra.mxu0 %v3568
        %3637 = vmatprep.subr.mxu0 0.0
        %3638 = vmatpush1.msra.mxu0 %v3569
        %3639 = vmatprep.subr.mxu0 0.0
        %3640 = vmatpush1.msra.mxu0 %v3570
        %3641 = vmatprep.subr.mxu0 0.0
        %3642 = vmatpush1.msra.mxu0 %v3571
        %3643 = vmatprep.subr.mxu0 0.0
        %3644 = vmatpush1.msra.mxu0 %v3572
        %3645 = vmatprep.subr.mxu0 0.0
        %3646 = vmatpush1.msra.mxu0 %v3573
        %3647 = vmatprep.subr.mxu0 0.0
        %3648 = vmatpush1.msra.mxu0 %v3574
        %3649 = vmatprep.subr.mxu0 0.0
        %3650 = vmatpush1.msra.mxu0 %v3575
        %3651 = vmatprep.subr.mxu0 0.0
        %3652 = vmatpush1.msra.mxu0 %v3576
        %3653 = vmatprep.subr.mxu0 0.0
        %3654 = vmatpush1.msra.mxu0 %v3577
        %3655 = vmatprep.subr.mxu0 0.0
        %3656 = vmatpush1.msra.mxu0 %v3578
        %3657 = vmatprep.subr.mxu0 0.0
        %3658 = vmatpush1.msra.mxu0 %v3579
        %3659 = vmatprep.subr.mxu0 0.0
        %3660 = vmatpush1.msra.mxu0 %v3580
        %3661 = vmatprep.subr.mxu0 0.0
        %3662 = vmatpush1.msra.mxu0 %v3581
        %3663 = vmatprep.subr.mxu0 0.0
        %3664 = vmatpush1.msra.mxu0 %v3582
        %3665 = vmatprep.subr.mxu0 0.0
        %3666 = vmatpush1.msra.mxu0 %v3583
        %3667 = vmatprep.subr.mxu0 0.0
        %3668 = vmatpush1.msra.mxu0 %v3584
        %3669 = vmatprep.subr.mxu0 0.0
        %3670 = vmatpush1.msra.mxu0 %v3585
        %3671 = vmatprep.subr.mxu0 0.0
        %3672 = vmatpush1.msra.mxu0 %v3586
        %3673 = vmatprep.subr.mxu0 0.0
        %3674 = vmatpush1.msra.mxu0 %v3587
        %3675 = vmatprep.subr.mxu0 0.0
        %3676 = vmatpush1.msra.mxu0 %v3588
        %3677 = vmatprep.subr.mxu0 0.0
        %3678 = vmatpush1.msra.mxu0 %v3589
        %3679 = vmatprep.subr.mxu0 0.0
        %3680 = vmatpush1.msra.mxu0 %v3590
        %3681 = vmatprep.subr.mxu0 0.0
        %3682 = vmatpush1.msra.mxu0 %v3591
        %3683 = vmatprep.subr.mxu0 0.0
        %3684 = vmatpush1.msra.mxu0 %v3592
        %3685 = vmatprep.subr.mxu0 0.0
        %3686 = vmatpush1.msra.mxu0 %v3593
        %3687 = vmatprep.subr.mxu0 0.0
        %3688 = vmatpush1.msra.mxu0 %v3594
        %3689 = vmatprep.subr.mxu0 0.0
        %3690 = vmatpush1.msra.mxu0 %v3595
        %3691 = vmatprep.subr.mxu0 0.0
        %3692 = vmatpush1.msra.mxu0 %v3596
        %3693 = vmatprep.mubr.f32.mxu0 %v3246
        %3694 = vmatmul.mubr.f32.gmra.mrb[0].mxu0 %v3245
        %v3695 = vpop.f32.mrb[0].mxu0
        %v3696 = vadd.f32 0.0, %v3695
        %v3697 = vpop.f32.mrb[0].mxu0
        %3698 = vmatprep.mubr.f32.mxu0 %v3250
        %3699 = vmatmul.mubr.f32.gmra.mrb[0].mxu0 %v3249
        %v3700 = vpop.f32.mrb[0].mxu0
        %v3701 = vadd.f32 0.0, %v3700
        %v3702 = vpop.f32.mrb[0].mxu0
        %3703 = vmatprep.mubr.f32.mxu0 %v3254
        %3704 = vmatmul.mubr.f32.gmra.mrb[0].mxu0 %v3253
        %v3705 = vpop.f32.mrb[0].mxu0
        %v3706 = vadd.f32 0.0, %v3705
        %v3707 = vpop.f32.mrb[0].mxu0
        %3708 = vmatprep.mubr.f32.mxu0 %v3258
        %3709 = vmatmul.mubr.f32.gmra.mrb[0].mxu0 %v3257
        %v3710 = vpop.f32.mrb[0].mxu0
        %v3711 = vadd.f32 0.0, %v3710
        %v3712 = vpop.f32.mrb[0].mxu0
        %3713 = vmatprep.mubr.f32.mxu0 %v3262
        %3714 = vmatmul.mubr.f32.gmra.mrb[0].mxu0 %v3261
        %v3715 = vpop.f32.mrb[0].mxu0
        %v3716 = vadd.f32 0.0, %v3715
        %v3717 = vpop.f32.mrb[0].mxu0
        %3718 = vmatprep.mubr.f32.mxu0 %v3266
        %3719 = vmatmul.mubr.f32.gmra.mrb[0].mxu0 %v3265
        %v3720 = vpop.f32.mrb[0].mxu0
        %v3721 = vadd.f32 0.0, %v3720
        %v3722 = vpop.f32.mrb[0].mxu0
        %3723 = vmatprep.mubr.f32.mxu0 %v3270
        %3724 = vmatmul.mubr.f32.gmra.mrb[0].mxu0 %v3269
        %v3725 = vpop.f32.mrb[0].mxu0
        %v3726 = vadd.f32 0.0, %v3725
        %v3727 = vpop.f32.mrb[0].mxu0
        %3728 = vmatprep.mubr.f32.mxu0 %v3274
        %3729 = vmatmul.mubr.f32.gmra.mrb[0].mxu0 %v3273
        %v3730 = vpop.f32.mrb[0].mxu0
        %v3731 = vadd.f32 0.0, %v3730
        %v3732 = vpop.f32.mrb[0].mxu0
        %3733 = vmatprep.mubr.f32.mxu0 %v3278
        %3734 = vmatmul.mubr.f32.gmra.mrb[0].mxu0 %v3277
        %v3735 = vpop.f32.mrb[0].mxu0
        %v3736 = vadd.f32 0.0, %v3735
        %v3737 = vpop.f32.mrb[0].mxu0
        %3738 = vmatprep.mubr.f32.mxu0 %v3282
        %3739 = vmatmul.mubr.f32.gmra.mrb[0].mxu0 %v3281
        %v3740 = vpop.f32.mrb[0].mxu0
        %v3741 = vadd.f32 0.0, %v3740
        %v3742 = vpop.f32.mrb[0].mxu0
        %3743 = vmatprep.mubr.f32.mxu0 %v3286
        %3744 = vmatmul.mubr.f32.gmra.mrb[0].mxu0 %v3285
        %v3745 = vpop.f32.mrb[0].mxu0
        %v3746 = vadd.f32 0.0, %v3745
        %v3747 = vpop.f32.mrb[0].mxu0
        %3748 = vmatprep.mubr.f32.mxu0 %v3290
        %3749 = vmatmul.mubr.f32.gmra.mrb[0].mxu0 %v3289
        %v3750 = vpop.f32.mrb[0].mxu0
        %v3751 = vadd.f32 0.0, %v3750
        %v3752 = vpop.f32.mrb[0].mxu0
        %3753 = vmatprep.mubr.f32.mxu0 %v3294
        %3754 = vmatmul.mubr.f32.gmra.mrb[0].mxu0 %v3293
        %v3755 = vpop.f32.mrb[0].mxu0
        %v3756 = vadd.f32 0.0, %v3755
        %v3757 = vpop.f32.mrb[0].mxu0
        %3758 = vmatprep.mubr.f32.mxu0 %v3298
        %3759 = vmatmul.mubr.f32.gmra.mrb[0].mxu0 %v3297
        %v3760 = vpop.f32.mrb[0].mxu0
        %v3761 = vadd.f32 0.0, %v3760
        %v3762 = vpop.f32.mrb[0].mxu0
        %3763 = vmatprep.mubr.f32.mxu0 %v3302
        %3764 = vmatmul.mubr.f32.gmra.mrb[0].mxu0 %v3301
        %v3765 = vpop.f32.mrb[0].mxu0
        %v3766 = vadd.f32 0.0, %v3765
        %v3767 = vpop.f32.mrb[0].mxu0
        %3768 = vmatprep.mubr.f32.mxu0 %v3306
        %3769 = vmatmul.mubr.f32.gmra.mrb[0].mxu0 %v3305
        %v3770 = vpop.f32.mrb[0].mxu0
        %v3771 = vadd.f32 0.0, %v3770
        %v3772 = vpop.f32.mrb[0].mxu0
        %3773 = vmatprep.mubr.f32.mxu0 %v3310
        %3774 = vmatmul.mubr.f32.gmra.mrb[0].mxu0 %v3309
        %v3775 = vpop.f32.mrb[0].mxu0
        %v3776 = vadd.f32 0.0, %v3775
        %v3777 = vpop.f32.mrb[0].mxu0
        %3778 = vmatprep.mubr.f32.mxu0 %v3314
        %3779 = vmatmul.mubr.f32.gmra.mrb[0].mxu0 %v3313
        %v3780 = vpop.f32.mrb[0].mxu0
        %v3781 = vadd.f32 0.0, %v3780
        %v3782 = vpop.f32.mrb[0].mxu0
        %3783 = vmatprep.mubr.f32.mxu0 %v3318
        %3784 = vmatmul.mubr.f32.gmra.mrb[0].mxu0 %v3317
        %v3785 = vpop.f32.mrb[0].mxu0
        %v3786 = vadd.f32 0.0, %v3785
        %v3787 = vpop.f32.mrb[0].mxu0
        %3788 = vmatprep.mubr.f32.mxu0 %v3322
        %3789 = vmatmul.mubr.f32.gmra.mrb[0].mxu0 %v3321
        %v3790 = vpop.f32.mrb[0].mxu0
        %v3791 = vadd.f32 0.0, %v3790
        %v3792 = vpop.f32.mrb[0].mxu0
        %3793 = vmatprep.mubr.f32.mxu0 %v3326
        %3794 = vmatmul.mubr.f32.gmra.mrb[0].mxu0 %v3325
        %v3795 = vpop.f32.mrb[0].mxu0
        %v3796 = vadd.f32 0.0, %v3795
        %v3797 = vpop.f32.mrb[0].mxu0
        %3798 = vmatprep.mubr.f32.mxu0 %v3330
        %3799 = vmatmul.mubr.f32.gmra.mrb[0].mxu0 %v3329
        %v3800 = vpop.f32.mrb[0].mxu0
        %v3801 = vadd.f32 0.0, %v3800
        %v3802 = vpop.f32.mrb[0].mxu0
        %3803 = vmatprep.mubr.f32.mxu0 %v3334
        %3804 = vmatmul.mubr.f32.gmra.mrb[0].mxu0 %v3333
        %v3805 = vpop.f32.mrb[0].mxu0
        %v3806 = vadd.f32 0.0, %v3805
        %v3807 = vpop.f32.mrb[0].mxu0
        %3808 = vmatprep.mubr.f32.mxu0 %v3338
        %3809 = vmatmul.mubr.f32.gmra.mrb[0].mxu0 %v3337
        %v3810 = vpop.f32.mrb[0].mxu0
        %v3811 = vadd.f32 0.0, %v3810
        %v3812 = vpop.f32.mrb[0].mxu0
        %3813 = vmatprep.mubr.f32.mxu0 %v3342
        %3814 = vmatmul.mubr.f32.gmra.mrb[0].mxu0 %v3341
        %v3815 = vpop.f32.mrb[0].mxu0
        %v3816 = vadd.f32 0.0, %v3815
        %v3817 = vpop.f32.mrb[0].mxu0
        %3818 = vmatprep.mubr.f32.mxu0 %v3346
        %3819 = vmatmul.mubr.f32.gmra.mrb[0].mxu0 %v3345
        %v3820 = vpop.f32.mrb[0].mxu0
        %v3821 = vadd.f32 0.0, %v3820
        %v3822 = vpop.f32.mrb[0].mxu0
        %3823 = vmatprep.mubr.f32.mxu0 %v3350
        %3824 = vmatmul.mubr.f32.gmra.mrb[0].mxu0 %v3349
        %v3825 = vpop.f32.mrb[0].mxu0
        %v3826 = vadd.f32 0.0, %v3825
        %v3827 = vpop.f32.mrb[0].mxu0
        %3828 = vmatprep.mubr.f32.mxu0 %v3354
        %3829 = vmatmul.mubr.f32.gmra.mrb[0].mxu0 %v3353
        %v3830 = vpop.f32.mrb[0].mxu0
        %v3831 = vadd.f32 0.0, %v3830
        %v3832 = vpop.f32.mrb[0].mxu0
        %3833 = vmatprep.mubr.f32.mxu0 %v3358
        %3834 = vmatmul.mubr.f32.gmra.mrb[0].mxu0 %v3357
        %v3835 = vpop.f32.mrb[0].mxu0
        %v3836 = vadd.f32 0.0, %v3835
        %v3837 = vpop.f32.mrb[0].mxu0
        %3838 = vmatprep.mubr.f32.mxu0 %v3362
        %3839 = vmatmul.mubr.f32.gmra.mrb[0].mxu0 %v3361
        %v3840 = vpop.f32.mrb[0].mxu0
        %v3841 = vadd.f32 0.0, %v3840
        %v3842 = vpop.f32.mrb[0].mxu0
        %3843 = vmatprep.mubr.f32.mxu0 %v3366
        %3844 = vmatmul.mubr.f32.gmra.mrb[0].mxu0 %v3365
        %v3845 = vpop.f32.mrb[0].mxu0
        %v3846 = vadd.f32 0.0, %v3845
        %v3847 = vpop.f32.mrb[0].mxu0
        %3848 = vmatprep.mubr.f32.mxu0 %v3370
        %3849 = vmatmul.mubr.f32.gmra.mrb[0].mxu0 %v3369
        %v3850 = vpop.f32.mrb[0].mxu0
        %v3851 = vadd.f32 0.0, %v3850
        %v3852 = vpop.f32.mrb[0].mxu0
        %3853 = vmatprep.mubr.f32.mxu0 %v3374
        %3854 = vmatmul.mubr.f32.gmra.mrb[0].mxu0 %v3373
        %v3855 = vpop.f32.mrb[0].mxu0
        %v3856 = vadd.f32 0.0, %v3855
        %v3857 = vpop.f32.mrb[0].mxu0
        %3858 = vmatprep.mubr.f32.mxu0 %v3378
        %3859 = vmatmul.mubr.f32.gmra.mrb[0].mxu0 %v3377
        %v3860 = vpop.f32.mrb[0].mxu0
        %v3861 = vadd.f32 0.0, %v3860
        %v3862 = vpop.f32.mrb[0].mxu0
        %3863 = vmatprep.mubr.f32.mxu0 %v3382
        %3864 = vmatmul.mubr.f32.gmra.mrb[0].mxu0 %v3381
        %v3865 = vpop.f32.mrb[0].mxu0
        %v3866 = vadd.f32 0.0, %v3865
        %v3867 = vpop.f32.mrb[0].mxu0
        %3868 = vmatprep.mubr.f32.mxu0 %v3386
        %3869 = vmatmul.mubr.f32.gmra.mrb[0].mxu0 %v3385
        %v3870 = vpop.f32.mrb[0].mxu0
        %v3871 = vadd.f32 0.0, %v3870
        %v3872 = vpop.f32.mrb[0].mxu0
        %3873 = vmatprep.mubr.f32.mxu0 %v3390
        %3874 = vmatmul.mubr.f32.gmra.mrb[0].mxu0 %v3389
        %v3875 = vpop.f32.mrb[0].mxu0
        %v3876 = vadd.f32 0.0, %v3875
        %v3877 = vpop.f32.mrb[0].mxu0
        %3878 = vmatprep.mubr.f32.mxu0 %v3394
        %3879 = vmatmul.mubr.f32.gmra.mrb[0].mxu0 %v3393
        %v3880 = vpop.f32.mrb[0].mxu0
        %v3881 = vadd.f32 0.0, %v3880
        %v3882 = vpop.f32.mrb[0].mxu0
        %3883 = vmatprep.mubr.f32.mxu0 %v3398
        %3884 = vmatmul.mubr.f32.gmra.mrb[0].mxu0 %v3397
        %v3885 = vpop.f32.mrb[0].mxu0
        %v3886 = vadd.f32 0.0, %v3885
        %v3887 = vpop.f32.mrb[0].mxu0
        %3888 = vmatprep.mubr.f32.mxu0 %v3402
        %3889 = vmatmul.mubr.f32.gmra.mrb[0].mxu0 %v3401
        %v3890 = vpop.f32.mrb[0].mxu0
        %v3891 = vadd.f32 0.0, %v3890
        %v3892 = vpop.f32.mrb[0].mxu0
        %3893 = vmatprep.mubr.f32.mxu0 %v3406
        %3894 = vmatmul.mubr.f32.gmra.mrb[0].mxu0 %v3405
        %v3895 = vpop.f32.mrb[0].mxu0
        %v3896 = vadd.f32 0.0, %v3895
        %v3897 = vpop.f32.mrb[0].mxu0
        %3898 = vmatprep.mubr.f32.mxu0 %v3410
        %3899 = vmatmul.mubr.f32.gmra.mrb[0].mxu0 %v3409
        %v3900 = vpop.f32.mrb[0].mxu0
        %v3901 = vadd.f32 0.0, %v3900
        %v3902 = vpop.f32.mrb[0].mxu0
        %3903 = vmatprep.mubr.f32.mxu0 %v3414
        %3904 = vmatmul.mubr.f32.gmra.mrb[0].mxu0 %v3413
        %v3905 = vpop.f32.mrb[0].mxu0
        %v3906 = vadd.f32 0.0, %v3905
        %v3907 = vpop.f32.mrb[0].mxu0
        %3908 = vmatprep.mubr.f32.mxu0 %v3418
        %3909 = vmatmul.mubr.f32.gmra.mrb[0].mxu0 %v3417
        %v3910 = vpop.f32.mrb[0].mxu0
        %v3911 = vadd.f32 0.0, %v3910
        %v3912 = vpop.f32.mrb[0].mxu0
        %3913 = vmatprep.mubr.f32.mxu0 %v3422
        %3914 = vmatmul.mubr.f32.gmra.mrb[0].mxu0 %v3421
        %v3915 = vpop.f32.mrb[0].mxu0
        %v3916 = vadd.f32 0.0, %v3915
        %v3917 = vpop.f32.mrb[0].mxu0
        %3918 = vmatprep.mubr.f32.mxu0 %v3426
        %3919 = vmatmul.mubr.f32.gmra.mrb[0].mxu0 %v3425
        %v3920 = vpop.f32.mrb[0].mxu0
        %v3921 = vadd.f32 0.0, %v3920
        %v3922 = vpop.f32.mrb[0].mxu0
        %3923 = vmatprep.mubr.f32.mxu0 %v3430
        %3924 = vmatmul.mubr.f32.gmra.mrb[0].mxu0 %v3429
        %v3925 = vpop.f32.mrb[0].mxu0
        %v3926 = vadd.f32 0.0, %v3925
        %v3927 = vpop.f32.mrb[0].mxu0
        %3928 = vmatprep.mubr.f32.mxu0 %v3434
        %3929 = vmatmul.mubr.f32.gmra.mrb[0].mxu0 %v3433
        %v3930 = vpop.f32.mrb[0].mxu0
        %v3931 = vadd.f32 0.0, %v3930
        %v3932 = vpop.f32.mrb[0].mxu0
        %3933 = vmatprep.mubr.f32.mxu0 %v3438
        %3934 = vmatmul.mubr.f32.gmra.mrb[0].mxu0 %v3437
        %v3935 = vpop.f32.mrb[0].mxu0
        %v3936 = vadd.f32 0.0, %v3935
        %v3937 = vpop.f32.mrb[0].mxu0
        %3938 = vmatprep.mubr.f32.mxu0 %v3442
        %3939 = vmatmul.mubr.f32.gmra.mrb[0].mxu0 %v3441
        %v3940 = vpop.f32.mrb[0].mxu0
        %v3941 = vadd.f32 0.0, %v3940
        %v3942 = vpop.f32.mrb[0].mxu0
        %3943 = vmatprep.mubr.f32.mxu0 %v3446
        %3944 = vmatmul.mubr.f32.gmra.mrb[0].mxu0 %v3445
        %v3945 = vpop.f32.mrb[0].mxu0
        %v3946 = vadd.f32 0.0, %v3945
        %v3947 = vpop.f32.mrb[0].mxu0
        %3948 = vmatprep.mubr.f32.mxu0 %v3450
        %3949 = vmatmul.mubr.f32.gmra.mrb[0].mxu0 %v3449
        %v3950 = vpop.f32.mrb[0].mxu0
        %v3951 = vadd.f32 0.0, %v3950
        %v3952 = vpop.f32.mrb[0].mxu0
        %3953 = vmatprep.mubr.f32.mxu0 %v3454
        %3954 = vmatmul.mubr.f32.gmra.mrb[0].mxu0 %v3453
        %v3955 = vpop.f32.mrb[0].mxu0
        %v3956 = vadd.f32 0.0, %v3955
        %v3957 = vpop.f32.mrb[0].mxu0
        %3958 = vmatprep.mubr.f32.mxu0 %v3458
        %3959 = vmatmul.mubr.f32.gmra.mrb[0].mxu0 %v3457
        %v3960 = vpop.f32.mrb[0].mxu0
        %v3961 = vadd.f32 0.0, %v3960
        %v3962 = vpop.f32.mrb[0].mxu0
        %3963 = vmatprep.mubr.f32.mxu0 %v3462
        %3964 = vmatmul.mubr.f32.gmra.mrb[0].mxu0 %v3461
        %v3965 = vpop.f32.mrb[0].mxu0
        %v3966 = vadd.f32 0.0, %v3965
        %v3967 = vpop.f32.mrb[0].mxu0
        %3968 = vmatprep.mubr.f32.mxu0 %v3466
        %3969 = vmatmul.mubr.f32.gmra.mrb[0].mxu0 %v3465
        %v3970 = vpop.f32.mrb[0].mxu0
        %v3971 = vadd.f32 0.0, %v3970
        %v3972 = vpop.f32.mrb[0].mxu0
        %3973 = vmatprep.mubr.f32.mxu0 %v3470
        %3974 = vmatmul.mubr.f32.gmra.mrb[0].mxu0 %v3469
        %v3975 = vpop.f32.mrb[0].mxu0
        %v3976 = vadd.f32 0.0, %v3975
        %v3977 = vpop.f32.mrb[0].mxu0
        %3978 = vmatprep.mubr.f32.mxu0 %v3474
        %3979 = vmatmul.mubr.f32.gmra.mrb[0].mxu0 %v3473
        %v3980 = vpop.f32.mrb[0].mxu0
        %v3981 = vadd.f32 0.0, %v3980
        %v3982 = vpop.f32.mrb[0].mxu0
        %3983 = vmatprep.mubr.f32.mxu0 %v3478
        %3984 = vmatmul.mubr.f32.gmra.mrb[0].mxu0 %v3477
        %v3985 = vpop.f32.mrb[0].mxu0
        %v3986 = vadd.f32 0.0, %v3985
        %v3987 = vpop.f32.mrb[0].mxu0
        %3988 = vmatprep.mubr.f32.mxu0 %v3482
        %3989 = vmatmul.mubr.f32.gmra.mrb[0].mxu0 %v3481
        %v3990 = vpop.f32.mrb[0].mxu0
        %v3991 = vadd.f32 0.0, %v3990
        %v3992 = vpop.f32.mrb[0].mxu0
        %3993 = vmatprep.mubr.f32.mxu0 %v3486
        %3994 = vmatmul.mubr.f32.gmra.mrb[0].mxu0 %v3485
        %v3995 = vpop.f32.mrb[0].mxu0
        %v3996 = vadd.f32 0.0, %v3995
        %v3997 = vpop.f32.mrb[0].mxu0
        %3998 = vmatprep.mubr.f32.mxu0 %v3490
        %3999 = vmatmul.mubr.f32.gmra.mrb[0].mxu0 %v3489
        %v4000 = vpop.f32.mrb[0].mxu0
        %v4001 = vadd.f32 0.0, %v4000
        %v4002 = vpop.f32.mrb[0].mxu0
        %4003 = vmatprep.mubr.f32.mxu0 %v3494
        %4004 = vmatmul.mubr.f32.gmra.mrb[0].mxu0 %v3493
        %v4005 = vpop.f32.mrb[0].mxu0
        %v4006 = vadd.f32 0.0, %v4005
        %v4007 = vpop.f32.mrb[0].mxu0
        %4008 = vmatprep.mubr.f32.mxu0 %v3498
        %4009 = vmatmul.mubr.f32.gmra.mrb[0].mxu0 %v3497
        %v4010 = vpop.f32.mrb[0].mxu0
        %v4011 = vadd.f32 0.0, %v4010
        %v4012 = vpop.f32.mrb[0].mxu0
        %4013 = vdwg.mxu0
        %4014 = vmatprep.subr.mxu0 0.0
        %4015 = vmatpush1.msra.mxu0 %v3597
        %4016 = vmatprep.subr.mxu0 0.0
        %4017 = vmatpush1.msra.mxu0 %v3598
        %4018 = vmatprep.subr.mxu0 0.0
        %4019 = vmatpush1.msra.mxu0 %v3599
        %4020 = vmatprep.subr.mxu0 0.0
        %4021 = vmatpush1.msra.mxu0 %v3600
        %4022 = vmatprep.subr.mxu0 0.0
        %4023 = vmatpush1.msra.mxu0 %v3601
        %4024 = vmatprep.subr.mxu0 0.0
        %4025 = vmatpush1.msra.mxu0 %v3602
        %4026 = vmatprep.subr.mxu0 0.0
        %4027 = vmatpush1.msra.mxu0 %v3603
        %4028 = vmatprep.subr.mxu0 0.0
        %4029 = vmatpush1.msra.mxu0 %v3604
        %4030 = vmatprep.subr.mxu0 0.0
        %4031 = vmatpush1.msra.mxu0 %v3605
        %4032 = vmatprep.subr.mxu0 0.0
        %4033 = vmatpush1.msra.mxu0 %v3606
        %4034 = vmatprep.subr.mxu0 0.0
        %4035 = vmatpush1.msra.mxu0 %v3607
        %4036 = vmatprep.subr.mxu0 0.0
        %4037 = vmatpush1.msra.mxu0 %v3608
        %4038 = vmatprep.subr.mxu0 0.0
        %4039 = vmatpush1.msra.mxu0 %v3609
        %4040 = vmatprep.subr.mxu0 0.0
        %4041 = vmatpush1.msra.mxu0 %v3610
        %4042 = vmatprep.subr.mxu0 0.0
        %4043 = vmatpush1.msra.mxu0 %v3611
        %4044 = vmatprep.subr.mxu0 0.0
        %4045 = vmatpush1.msra.mxu0 %v3612
        %4046 = vmatprep.subr.mxu0 0.0
        %4047 = vmatpush1.msra.mxu0 %v3613
        %4048 = vmatprep.subr.mxu0 0.0
        %4049 = vmatpush1.msra.mxu0 %v3614
        %4050 = vmatprep.subr.mxu0 0.0
        %4051 = vmatpush1.msra.mxu0 %v3615
        %4052 = vmatprep.subr.mxu0 0.0
        %4053 = vmatpush1.msra.mxu0 %v3616
        %4054 = vmatprep.subr.mxu0 0.0
        %4055 = vmatpush1.msra.mxu0 %v3617
        %4056 = vmatprep.subr.mxu0 0.0
        %4057 = vmatpush1.msra.mxu0 %v3618
        %4058 = vmatprep.subr.mxu0 0.0
        %4059 = vmatpush1.msra.mxu0 %v3619
        %4060 = vmatprep.subr.mxu0 0.0
        %4061 = vmatpush1.msra.mxu0 %v3620
        %4062 = vmatprep.subr.mxu0 0.0
        %4063 = vmatpush1.msra.mxu0 %v3621
        %4064 = vmatprep.subr.mxu0 0.0
        %4065 = vmatpush1.msra.mxu0 %v3622
        %4066 = vmatprep.subr.mxu0 0.0
        %4067 = vmatpush1.msra.mxu0 %v3623
        %4068 = vmatprep.subr.mxu0 0.0
        %4069 = vmatpush1.msra.mxu0 %v3624
        %4070 = vmatprep.subr.mxu0 0.0
        %4071 = vmatpush1.msra.mxu0 %v3625
        %4072 = vmatprep.subr.mxu0 0.0
        %4073 = vmatpush1.msra.mxu0 %v3626
        %4074 = vmatprep.subr.mxu0 0.0
        %4075 = vmatpush1.msra.mxu0 %v3627
        %4076 = vmatprep.subr.mxu0 0.0
        %4077 = vmatpush1.msra.mxu0 %v3628
        %4078 = vmatprep.mubr.f32.mxu0 %v3248
        %4079 = vmatmul.mubr.f32.gmra.mrb[0].mxu0 %v3247
        %v4080 = vpop.f32.mrb[0].mxu0
        %v4081 = vadd.f32 %v3696, %v4080
        %v4082 = vpop.f32.mrb[0].mxu0
        %4083 = vmatprep.mubr.f32.mxu0 %v3252
        %4084 = vmatmul.mubr.f32.gmra.mrb[0].mxu0 %v3251
        %v4085 = vpop.f32.mrb[0].mxu0
        %v4086 = vadd.f32 %v3701, %v4085
        %v4087 = vpop.f32.mrb[0].mxu0
        %4088 = vmatprep.mubr.f32.mxu0 %v3256
        %4089 = vmatmul.mubr.f32.gmra.mrb[0].mxu0 %v3255
        %v4090 = vpop.f32.mrb[0].mxu0
        %v4091 = vadd.f32 %v3706, %v4090
        %v4092 = vpop.f32.mrb[0].mxu0
        %4093 = vmatprep.mubr.f32.mxu0 %v3260
        %4094 = vmatmul.mubr.f32.gmra.mrb[0].mxu0 %v3259
        %v4095 = vpop.f32.mrb[0].mxu0
        %v4096 = vadd.f32 %v3711, %v4095
        %v4097 = vpop.f32.mrb[0].mxu0
        %4098 = vmatprep.mubr.f32.mxu0 %v3264
        %4099 = vmatmul.mubr.f32.gmra.mrb[0].mxu0 %v3263
        %v4100 = vpop.f32.mrb[0].mxu0
        %v4101 = vadd.f32 %v3716, %v4100
        %v4102 = vpop.f32.mrb[0].mxu0
        %4103 = vmatprep.mubr.f32.mxu0 %v3268
        %4104 = vmatmul.mubr.f32.gmra.mrb[0].mxu0 %v3267
        %v4105 = vpop.f32.mrb[0].mxu0
        %v4106 = vadd.f32 %v3721, %v4105
        %v4107 = vpop.f32.mrb[0].mxu0
        %4108 = vmatprep.mubr.f32.mxu0 %v3272
        %4109 = vmatmul.mubr.f32.gmra.mrb[0].mxu0 %v3271
        %v4110 = vpop.f32.mrb[0].mxu0
        %v4111 = vadd.f32 %v3726, %v4110
        %v4112 = vpop.f32.mrb[0].mxu0
        %4113 = vmatprep.mubr.f32.mxu0 %v3276
        %4114 = vmatmul.mubr.f32.gmra.mrb[0].mxu0 %v3275
        %v4115 = vpop.f32.mrb[0].mxu0
        %v4116 = vadd.f32 %v3731, %v4115
        %v4117 = vpop.f32.mrb[0].mxu0
        %4118 = vmatprep.mubr.f32.mxu0 %v3280
        %4119 = vmatmul.mubr.f32.gmra.mrb[0].mxu0 %v3279
        %v4120 = vpop.f32.mrb[0].mxu0
        %v4121 = vadd.f32 %v3736, %v4120
        %v4122 = vpop.f32.mrb[0].mxu0
        %4123 = vmatprep.mubr.f32.mxu0 %v3284
        %4124 = vmatmul.mubr.f32.gmra.mrb[0].mxu0 %v3283
        %v4125 = vpop.f32.mrb[0].mxu0
        %v4126 = vadd.f32 %v3741, %v4125
        %v4127 = vpop.f32.mrb[0].mxu0
        %4128 = vmatprep.mubr.f32.mxu0 %v3288
        %4129 = vmatmul.mubr.f32.gmra.mrb[0].mxu0 %v3287
        %v4130 = vpop.f32.mrb[0].mxu0
        %v4131 = vadd.f32 %v3746, %v4130
        %v4132 = vpop.f32.mrb[0].mxu0
        %4133 = vmatprep.mubr.f32.mxu0 %v3292
        %4134 = vmatmul.mubr.f32.gmra.mrb[0].mxu0 %v3291
        %v4135 = vpop.f32.mrb[0].mxu0
        %v4136 = vadd.f32 %v3751, %v4135
        %v4137 = vpop.f32.mrb[0].mxu0
        %4138 = vmatprep.mubr.f32.mxu0 %v3296
        %4139 = vmatmul.mubr.f32.gmra.mrb[0].mxu0 %v3295
        %v4140 = vpop.f32.mrb[0].mxu0
        %v4141 = vadd.f32 %v3756, %v4140
        %v4142 = vpop.f32.mrb[0].mxu0
        %4143 = vmatprep.mubr.f32.mxu0 %v3300
        %4144 = vmatmul.mubr.f32.gmra.mrb[0].mxu0 %v3299
        %v4145 = vpop.f32.mrb[0].mxu0
        %v4146 = vadd.f32 %v3761, %v4145
        %v4147 = vpop.f32.mrb[0].mxu0
        %4148 = vmatprep.mubr.f32.mxu0 %v3304
        %4149 = vmatmul.mubr.f32.gmra.mrb[0].mxu0 %v3303
        %v4150 = vpop.f32.mrb[0].mxu0
        %v4151 = vadd.f32 %v3766, %v4150
        %v4152 = vpop.f32.mrb[0].mxu0
        %4153 = vmatprep.mubr.f32.mxu0 %v3308
        %4154 = vmatmul.mubr.f32.gmra.mrb[0].mxu0 %v3307
        %v4155 = vpop.f32.mrb[0].mxu0
        %v4156 = vadd.f32 %v3771, %v4155
        %v4157 = vpop.f32.mrb[0].mxu0
        %4158 = vmatprep.mubr.f32.mxu0 %v3312
        %4159 = vmatmul.mubr.f32.gmra.mrb[0].mxu0 %v3311
        %v4160 = vpop.f32.mrb[0].mxu0
        %v4161 = vadd.f32 %v3776, %v4160
        %v4162 = vpop.f32.mrb[0].mxu0
        %4163 = vmatprep.mubr.f32.mxu0 %v3316
        %4164 = vmatmul.mubr.f32.gmra.mrb[0].mxu0 %v3315
        %v4165 = vpop.f32.mrb[0].mxu0
        %v4166 = vadd.f32 %v3781, %v4165
        %v4167 = vpop.f32.mrb[0].mxu0
        %4168 = vmatprep.mubr.f32.mxu0 %v3320
        %4169 = vmatmul.mubr.f32.gmra.mrb[0].mxu0 %v3319
        %v4170 = vpop.f32.mrb[0].mxu0
        %v4171 = vadd.f32 %v3786, %v4170
        %v4172 = vpop.f32.mrb[0].mxu0
        %4173 = vmatprep.mubr.f32.mxu0 %v3324
        %4174 = vmatmul.mubr.f32.gmra.mrb[0].mxu0 %v3323
        %v4175 = vpop.f32.mrb[0].mxu0
        %v4176 = vadd.f32 %v3791, %v4175
        %v4177 = vpop.f32.mrb[0].mxu0
        %4178 = vmatprep.mubr.f32.mxu0 %v3328
        %4179 = vmatmul.mubr.f32.gmra.mrb[0].mxu0 %v3327
        %v4180 = vpop.f32.mrb[0].mxu0
        %v4181 = vadd.f32 %v3796, %v4180
        %v4182 = vpop.f32.mrb[0].mxu0
        %4183 = vmatprep.mubr.f32.mxu0 %v3332
        %4184 = vmatmul.mubr.f32.gmra.mrb[0].mxu0 %v3331
        %v4185 = vpop.f32.mrb[0].mxu0
        %v4186 = vadd.f32 %v3801, %v4185
        %v4187 = vpop.f32.mrb[0].mxu0
        %4188 = vmatprep.mubr.f32.mxu0 %v3336
        %4189 = vmatmul.mubr.f32.gmra.mrb[0].mxu0 %v3335
        %v4190 = vpop.f32.mrb[0].mxu0
        %v4191 = vadd.f32 %v3806, %v4190
        %v4192 = vpop.f32.mrb[0].mxu0
        %4193 = vmatprep.mubr.f32.mxu0 %v3340
        %4194 = vmatmul.mubr.f32.gmra.mrb[0].mxu0 %v3339
        %v4195 = vpop.f32.mrb[0].mxu0
        %v4196 = vadd.f32 %v3811, %v4195
        %v4197 = vpop.f32.mrb[0].mxu0
        %4198 = vmatprep.mubr.f32.mxu0 %v3344
        %4199 = vmatmul.mubr.f32.gmra.mrb[0].mxu0 %v3343
        %v4200 = vpop.f32.mrb[0].mxu0
        %v4201 = vadd.f32 %v3816, %v4200
        %v4202 = vpop.f32.mrb[0].mxu0
        %4203 = vmatprep.mubr.f32.mxu0 %v3348
        %4204 = vmatmul.mubr.f32.gmra.mrb[0].mxu0 %v3347
        %v4205 = vpop.f32.mrb[0].mxu0
        %v4206 = vadd.f32 %v3821, %v4205
        %v4207 = vpop.f32.mrb[0].mxu0
        %4208 = vmatprep.mubr.f32.mxu0 %v3352
        %4209 = vmatmul.mubr.f32.gmra.mrb[0].mxu0 %v3351
        %v4210 = vpop.f32.mrb[0].mxu0
        %v4211 = vadd.f32 %v3826, %v4210
        %v4212 = vpop.f32.mrb[0].mxu0
        %4213 = vmatprep.mubr.f32.mxu0 %v3356
        %4214 = vmatmul.mubr.f32.gmra.mrb[0].mxu0 %v3355
        %v4215 = vpop.f32.mrb[0].mxu0
        %v4216 = vadd.f32 %v3831, %v4215
        %v4217 = vpop.f32.mrb[0].mxu0
        %4218 = vmatprep.mubr.f32.mxu0 %v3360
        %4219 = vmatmul.mubr.f32.gmra.mrb[0].mxu0 %v3359
        %v4220 = vpop.f32.mrb[0].mxu0
        %v4221 = vadd.f32 %v3836, %v4220
        %v4222 = vpop.f32.mrb[0].mxu0
        %4223 = vmatprep.mubr.f32.mxu0 %v3364
        %4224 = vmatmul.mubr.f32.gmra.mrb[0].mxu0 %v3363
        %v4225 = vpop.f32.mrb[0].mxu0
        %v4226 = vadd.f32 %v3841, %v4225
        %v4227 = vpop.f32.mrb[0].mxu0
        %4228 = vmatprep.mubr.f32.mxu0 %v3368
        %4229 = vmatmul.mubr.f32.gmra.mrb[0].mxu0 %v3367
        %v4230 = vpop.f32.mrb[0].mxu0
        %v4231 = vadd.f32 %v3846, %v4230
        %v4232 = vpop.f32.mrb[0].mxu0
        %4233 = vmatprep.mubr.f32.mxu0 %v3372
        %4234 = vmatmul.mubr.f32.gmra.mrb[0].mxu0 %v3371
        %v4235 = vpop.f32.mrb[0].mxu0
        %v4236 = vadd.f32 %v3851, %v4235
        %v4237 = vpop.f32.mrb[0].mxu0
        %4238 = vmatprep.mubr.f32.mxu0 %v3376
        %4239 = vmatmul.mubr.f32.gmra.mrb[0].mxu0 %v3375
        %v4240 = vpop.f32.mrb[0].mxu0
        %v4241 = vadd.f32 %v3856, %v4240
        %v4242 = vpop.f32.mrb[0].mxu0
        %4243 = vmatprep.mubr.f32.mxu0 %v3380
        %4244 = vmatmul.mubr.f32.gmra.mrb[0].mxu0 %v3379
        %v4245 = vpop.f32.mrb[0].mxu0
        %v4246 = vadd.f32 %v3861, %v4245
        %v4247 = vpop.f32.mrb[0].mxu0
        %4248 = vmatprep.mubr.f32.mxu0 %v3384
        %4249 = vmatmul.mubr.f32.gmra.mrb[0].mxu0 %v3383
        %v4250 = vpop.f32.mrb[0].mxu0
        %v4251 = vadd.f32 %v3866, %v4250
        %v4252 = vpop.f32.mrb[0].mxu0
        %4253 = vmatprep.mubr.f32.mxu0 %v3388
        %4254 = vmatmul.mubr.f32.gmra.mrb[0].mxu0 %v3387
        %v4255 = vpop.f32.mrb[0].mxu0
        %v4256 = vadd.f32 %v3871, %v4255
        %v4257 = vpop.f32.mrb[0].mxu0
        %4258 = vmatprep.mubr.f32.mxu0 %v3392
        %4259 = vmatmul.mubr.f32.gmra.mrb[0].mxu0 %v3391
        %v4260 = vpop.f32.mrb[0].mxu0
        %v4261 = vadd.f32 %v3876, %v4260
        %v4262 = vpop.f32.mrb[0].mxu0
        %4263 = vmatprep.mubr.f32.mxu0 %v3396
        %4264 = vmatmul.mubr.f32.gmra.mrb[0].mxu0 %v3395
        %v4265 = vpop.f32.mrb[0].mxu0
        %v4266 = vadd.f32 %v3881, %v4265
        %v4267 = vpop.f32.mrb[0].mxu0
        %4268 = vmatprep.mubr.f32.mxu0 %v3400
        %4269 = vmatmul.mubr.f32.gmra.mrb[0].mxu0 %v3399
        %v4270 = vpop.f32.mrb[0].mxu0
        %v4271 = vadd.f32 %v3886, %v4270
        %v4272 = vpop.f32.mrb[0].mxu0
        %4273 = vmatprep.mubr.f32.mxu0 %v3404
        %4274 = vmatmul.mubr.f32.gmra.mrb[0].mxu0 %v3403
        %v4275 = vpop.f32.mrb[0].mxu0
        %v4276 = vadd.f32 %v3891, %v4275
        %v4277 = vpop.f32.mrb[0].mxu0
        %4278 = vmatprep.mubr.f32.mxu0 %v3408
        %4279 = vmatmul.mubr.f32.gmra.mrb[0].mxu0 %v3407
        %v4280 = vpop.f32.mrb[0].mxu0
        %v4281 = vadd.f32 %v3896, %v4280
        %v4282 = vpop.f32.mrb[0].mxu0
        %4283 = vmatprep.mubr.f32.mxu0 %v3412
        %4284 = vmatmul.mubr.f32.gmra.mrb[0].mxu0 %v3411
        %v4285 = vpop.f32.mrb[0].mxu0
        %v4286 = vadd.f32 %v3901, %v4285
        %v4287 = vpop.f32.mrb[0].mxu0
        %4288 = vmatprep.mubr.f32.mxu0 %v3416
        %4289 = vmatmul.mubr.f32.gmra.mrb[0].mxu0 %v3415
        %v4290 = vpop.f32.mrb[0].mxu0
        %v4291 = vadd.f32 %v3906, %v4290
        %v4292 = vpop.f32.mrb[0].mxu0
        %4293 = vmatprep.mubr.f32.mxu0 %v3420
        %4294 = vmatmul.mubr.f32.gmra.mrb[0].mxu0 %v3419
        %v4295 = vpop.f32.mrb[0].mxu0
        %v4296 = vadd.f32 %v3911, %v4295
        %v4297 = vpop.f32.mrb[0].mxu0
        %4298 = vmatprep.mubr.f32.mxu0 %v3424
        %4299 = vmatmul.mubr.f32.gmra.mrb[0].mxu0 %v3423
        %v4300 = vpop.f32.mrb[0].mxu0
        %v4301 = vadd.f32 %v3916, %v4300
        %v4302 = vpop.f32.mrb[0].mxu0
        %4303 = vmatprep.mubr.f32.mxu0 %v3428
        %4304 = vmatmul.mubr.f32.gmra.mrb[0].mxu0 %v3427
        %v4305 = vpop.f32.mrb[0].mxu0
        %v4306 = vadd.f32 %v3921, %v4305
        %v4307 = vpop.f32.mrb[0].mxu0
        %4308 = vmatprep.mubr.f32.mxu0 %v3432
        %4309 = vmatmul.mubr.f32.gmra.mrb[0].mxu0 %v3431
        %v4310 = vpop.f32.mrb[0].mxu0
        %v4311 = vadd.f32 %v3926, %v4310
        %v4312 = vpop.f32.mrb[0].mxu0
        %4313 = vmatprep.mubr.f32.mxu0 %v3436
        %4314 = vmatmul.mubr.f32.gmra.mrb[0].mxu0 %v3435
        %v4315 = vpop.f32.mrb[0].mxu0
        %v4316 = vadd.f32 %v3931, %v4315
        %v4317 = vpop.f32.mrb[0].mxu0
        %4318 = vmatprep.mubr.f32.mxu0 %v3440
        %4319 = vmatmul.mubr.f32.gmra.mrb[0].mxu0 %v3439
        %v4320 = vpop.f32.mrb[0].mxu0
        %v4321 = vadd.f32 %v3936, %v4320
        %v4322 = vpop.f32.mrb[0].mxu0
        %4323 = vmatprep.mubr.f32.mxu0 %v3444
        %4324 = vmatmul.mubr.f32.gmra.mrb[0].mxu0 %v3443
        %v4325 = vpop.f32.mrb[0].mxu0
        %v4326 = vadd.f32 %v3941, %v4325
        %v4327 = vpop.f32.mrb[0].mxu0
        %4328 = vmatprep.mubr.f32.mxu0 %v3448
        %4329 = vmatmul.mubr.f32.gmra.mrb[0].mxu0 %v3447
        %v4330 = vpop.f32.mrb[0].mxu0
        %v4331 = vadd.f32 %v3946, %v4330
        %v4332 = vpop.f32.mrb[0].mxu0
        %4333 = vmatprep.mubr.f32.mxu0 %v3452
        %4334 = vmatmul.mubr.f32.gmra.mrb[0].mxu0 %v3451
        %v4335 = vpop.f32.mrb[0].mxu0
        %v4336 = vadd.f32 %v3951, %v4335
        %v4337 = vpop.f32.mrb[0].mxu0
        %4338 = vmatprep.mubr.f32.mxu0 %v3456
        %4339 = vmatmul.mubr.f32.gmra.mrb[0].mxu0 %v3455
        %v4340 = vpop.f32.mrb[0].mxu0
        %v4341 = vadd.f32 %v3956, %v4340
        %v4342 = vpop.f32.mrb[0].mxu0
        %4343 = vmatprep.mubr.f32.mxu0 %v3460
        %4344 = vmatmul.mubr.f32.gmra.mrb[0].mxu0 %v3459
        %v4345 = vpop.f32.mrb[0].mxu0
        %v4346 = vadd.f32 %v3961, %v4345
        %v4347 = vpop.f32.mrb[0].mxu0
        %4348 = vmatprep.mubr.f32.mxu0 %v3464
        %4349 = vmatmul.mubr.f32.gmra.mrb[0].mxu0 %v3463
        %v4350 = vpop.f32.mrb[0].mxu0
        %v4351 = vadd.f32 %v3966, %v4350
        %v4352 = vpop.f32.mrb[0].mxu0
        %4353 = vmatprep.mubr.f32.mxu0 %v3468
        %4354 = vmatmul.mubr.f32.gmra.mrb[0].mxu0 %v3467
        %v4355 = vpop.f32.mrb[0].mxu0
        %v4356 = vadd.f32 %v3971, %v4355
        %v4357 = vpop.f32.mrb[0].mxu0
        %4358 = vmatprep.mubr.f32.mxu0 %v3472
        %4359 = vmatmul.mubr.f32.gmra.mrb[0].mxu0 %v3471
        %v4360 = vpop.f32.mrb[0].mxu0
        %v4361 = vadd.f32 %v3976, %v4360
        %v4362 = vpop.f32.mrb[0].mxu0
        %4363 = vmatprep.mubr.f32.mxu0 %v3476
        %4364 = vmatmul.mubr.f32.gmra.mrb[0].mxu0 %v3475
        %v4365 = vpop.f32.mrb[0].mxu0
        %v4366 = vadd.f32 %v3981, %v4365
        %v4367 = vpop.f32.mrb[0].mxu0
        %4368 = vmatprep.mubr.f32.mxu0 %v3480
        %4369 = vmatmul.mubr.f32.gmra.mrb[0].mxu0 %v3479
        %v4370 = vpop.f32.mrb[0].mxu0
        %v4371 = vadd.f32 %v3986, %v4370
        %v4372 = vpop.f32.mrb[0].mxu0
        %4373 = vmatprep.mubr.f32.mxu0 %v3484
        %4374 = vmatmul.mubr.f32.gmra.mrb[0].mxu0 %v3483
        %v4375 = vpop.f32.mrb[0].mxu0
        %v4376 = vadd.f32 %v3991, %v4375
        %v4377 = vpop.f32.mrb[0].mxu0
        %4378 = vmatprep.mubr.f32.mxu0 %v3488
        %4379 = vmatmul.mubr.f32.gmra.mrb[0].mxu0 %v3487
        %v4380 = vpop.f32.mrb[0].mxu0
        %v4381 = vadd.f32 %v3996, %v4380
        %v4382 = vpop.f32.mrb[0].mxu0
        %4383 = vmatprep.mubr.f32.mxu0 %v3492
        %4384 = vmatmul.mubr.f32.gmra.mrb[0].mxu0 %v3491
        %v4385 = vpop.f32.mrb[0].mxu0
        %v4386 = vadd.f32 %v4001, %v4385
        %v4387 = vpop.f32.mrb[0].mxu0
        %4388 = vmatprep.mubr.f32.mxu0 %v3496
        %4389 = vmatmul.mubr.f32.gmra.mrb[0].mxu0 %v3495
        %v4390 = vpop.f32.mrb[0].mxu0
        %v4391 = vadd.f32 %v4006, %v4390
        %v4392 = vpop.f32.mrb[0].mxu0
        %4393 = vmatprep.mubr.f32.mxu0 %v3500
        %4394 = vmatmul.mubr.f32.gmra.mrb[0].mxu0 %v3499
        %v4395 = vpop.f32.mrb[0].mxu0
        %v4396 = vadd.f32 %v4011, %v4395
        %v4397 = vpop.f32.mrb[0].mxu0
        %4398 = vdwg.mxu0
        %v4399 = vadd.f32 %v3501, %v4081
        %v4400 = vadd.f32 %v3502, %v4086
        %v4401 = vadd.f32 %v3503, %v4091
        %v4402 = vadd.f32 %v3504, %v4096
        %v4403 = vadd.f32 %v3505, %v4101
        %v4404 = vadd.f32 %v3506, %v4106
        %v4405 = vadd.f32 %v3507, %v4111
        %v4406 = vadd.f32 %v3508, %v4116
        %v4407 = vadd.f32 %v3509, %v4121
        %v4408 = vadd.f32 %v3510, %v4126
        %v4409 = vadd.f32 %v3511, %v4131
        %v4410 = vadd.f32 %v3512, %v4136
        %v4411 = vadd.f32 %v3513, %v4141
        %v4412 = vadd.f32 %v3514, %v4146
        %v4413 = vadd.f32 %v3515, %v4151
        %v4414 = vadd.f32 %v3516, %v4156
        %v4415 = vadd.f32 %v3517, %v4161
        %v4416 = vadd.f32 %v3518, %v4166
        %v4417 = vadd.f32 %v3519, %v4171
        %v4418 = vadd.f32 %v3520, %v4176
        %v4419 = vadd.f32 %v3521, %v4181
        %v4420 = vadd.f32 %v3522, %v4186
        %v4421 = vadd.f32 %v3523, %v4191
        %v4422 = vadd.f32 %v3524, %v4196
        %v4423 = vadd.f32 %v3525, %v4201
        %v4424 = vadd.f32 %v3526, %v4206
        %v4425 = vadd.f32 %v3527, %v4211
        %v4426 = vadd.f32 %v3528, %v4216
        %v4427 = vadd.f32 %v3529, %v4221
        %v4428 = vadd.f32 %v3530, %v4226
        %v4429 = vadd.f32 %v3531, %v4231
        %v4430 = vadd.f32 %v3532, %v4236
        %v4431 = vadd.f32 %v3533, %v4241
        %v4432 = vadd.f32 %v3534, %v4246
        %v4433 = vadd.f32 %v3535, %v4251
        %v4434 = vadd.f32 %v3536, %v4256
        %v4435 = vadd.f32 %v3537, %v4261
        %v4436 = vadd.f32 %v3538, %v4266
        %v4437 = vadd.f32 %v3539, %v4271
        %v4438 = vadd.f32 %v3540, %v4276
        %v4439 = vadd.f32 %v3541, %v4281
        %v4440 = vadd.f32 %v3542, %v4286
        %v4441 = vadd.f32 %v3543, %v4291
        %v4442 = vadd.f32 %v3544, %v4296
        %v4443 = vadd.f32 %v3545, %v4301
        %v4444 = vadd.f32 %v3546, %v4306
        %v4445 = vadd.f32 %v3547, %v4311
        %v4446 = vadd.f32 %v3548, %v4316
        %v4447 = vadd.f32 %v3549, %v4321
        %v4448 = vadd.f32 %v3550, %v4326
        %v4449 = vadd.f32 %v3551, %v4331
        %v4450 = vadd.f32 %v3552, %v4336
        %v4451 = vadd.f32 %v3553, %v4341
        %v4452 = vadd.f32 %v3554, %v4346
        %v4453 = vadd.f32 %v3555, %v4351
        %v4454 = vadd.f32 %v3556, %v4356
        %v4455 = vadd.f32 %v3557, %v4361
        %v4456 = vadd.f32 %v3558, %v4366
        %v4457 = vadd.f32 %v3559, %v4371
        %v4458 = vadd.f32 %v3560, %v4376
        %v4459 = vadd.f32 %v3561, %v4381
        %v4460 = vadd.f32 %v3562, %v4386
        %v4461 = vadd.f32 %v3563, %v4391
        %v4462 = vadd.f32 %v3564, %v4396
        %4463 = vst [vmem:[#allocation2] sm:$0xff] %v4399
        %4464 = vst [vmem:[#allocation2 + $0x8] sm:$0xff] %v4400
        %4465 = vst [vmem:[#allocation2 + $0x10] sm:$0xff] %v4401
        %4466 = vst [vmem:[#allocation2 + $0x18] sm:$0xff] %v4402
        %4467 = vst [vmem:[#allocation2 + $0x20] sm:$0xff] %v4403
        %4468 = vst [vmem:[#allocation2 + $0x28] sm:$0xff] %v4404
        %4469 = vst [vmem:[#allocation2 + $0x30] sm:$0xff] %v4405
        %4470 = vst [vmem:[#allocation2 + $0x38] sm:$0xff] %v4406
        %4471 = vst [vmem:[#allocation2 + $0x40] sm:$0xff] %v4407
        %4472 = vst [vmem:[#allocation2 + $0x48] sm:$0xff] %v4408
        %4473 = vst [vmem:[#allocation2 + $0x50] sm:$0xff] %v4409
        %4474 = vst [vmem:[#allocation2 + $0x58] sm:$0xff] %v4410
        %4475 = vst [vmem:[#allocation2 + $0x60] sm:$0xff] %v4411
        %4476 = vst [vmem:[#allocation2 + $0x68] sm:$0xff] %v4412
        %4477 = vst [vmem:[#allocation2 + $0x70] sm:$0xff] %v4413
        %4478 = vst [vmem:[#allocation2 + $0x78] sm:$0xff] %v4414
        %4479 = vst [vmem:[#allocation2 + $0x80] sm:$0xff] %v4415
        %4480 = vst [vmem:[#allocation2 + $0x88] sm:$0xff] %v4416
        %4481 = vst [vmem:[#allocation2 + $0x90] sm:$0xff] %v4417
        %4482 = vst [vmem:[#allocation2 + $0x98] sm:$0xff] %v4418
        %4483 = vst [vmem:[#allocation2 + $0xa0] sm:$0xff] %v4419
        %4484 = vst [vmem:[#allocation2 + $0xa8] sm:$0xff] %v4420
        %4485 = vst [vmem:[#allocation2 + $0xb0] sm:$0xff] %v4421
        %4486 = vst [vmem:[#allocation2 + $0xb8] sm:$0xff] %v4422
        %4487 = vst [vmem:[#allocation2 + $0xc0] sm:$0xff] %v4423
        %4488 = vst [vmem:[#allocation2 + $0xc8] sm:$0xff] %v4424
        %4489 = vst [vmem:[#allocation2 + $0xd0] sm:$0xff] %v4425
        %4490 = vst [vmem:[#allocation2 + $0xd8] sm:$0xff] %v4426
        %4491 = vst [vmem:[#allocation2 + $0xe0] sm:$0xff] %v4427
        %4492 = vst [vmem:[#allocation2 + $0xe8] sm:$0xff] %v4428
        %4493 = vst [vmem:[#allocation2 + $0xf0] sm:$0xff] %v4429
        %4494 = vst [vmem:[#allocation2 + $0xf8] sm:$0xff] %v4430
        %4495 = vst [vmem:[#allocation2 + $0x100] sm:$0xff] %v4431
        %4496 = vst [vmem:[#allocation2 + $0x108] sm:$0xff] %v4432
        %4497 = vst [vmem:[#allocation2 + $0x110] sm:$0xff] %v4433
        %4498 = vst [vmem:[#allocation2 + $0x118] sm:$0xff] %v4434
        %4499 = vst [vmem:[#allocation2 + $0x120] sm:$0xff] %v4435
        %4500 = vst [vmem:[#allocation2 + $0x128] sm:$0xff] %v4436
        %4501 = vst [vmem:[#allocation2 + $0x130] sm:$0xff] %v4437
        %4502 = vst [vmem:[#allocation2 + $0x138] sm:$0xff] %v4438
        %4503 = vst [vmem:[#allocation2 + $0x140] sm:$0xff] %v4439
        %4504 = vst [vmem:[#allocation2 + $0x148] sm:$0xff] %v4440
        %4505 = vst [vmem:[#allocation2 + $0x150] sm:$0xff] %v4441
        %4506 = vst [vmem:[#allocation2 + $0x158] sm:$0xff] %v4442
        %4507 = vst [vmem:[#allocation2 + $0x160] sm:$0xff] %v4443
        %4508 = vst [vmem:[#allocation2 + $0x168] sm:$0xff] %v4444
        %4509 = vst [vmem:[#allocation2 + $0x170] sm:$0xff] %v4445
        %4510 = vst [vmem:[#allocation2 + $0x178] sm:$0xff] %v4446
        %4511 = vst [vmem:[#allocation2 + $0x180] sm:$0xff] %v4447
        %4512 = vst [vmem:[#allocation2 + $0x188] sm:$0xff] %v4448
        %4513 = vst [vmem:[#allocation2 + $0x190] sm:$0xff] %v4449
        %4514 = vst [vmem:[#allocation2 + $0x198] sm:$0xff] %v4450
        %4515 = vst [vmem:[#allocation2 + $0x1a0] sm:$0xff] %v4451
        %4516 = vst [vmem:[#allocation2 + $0x1a8] sm:$0xff] %v4452
        %4517 = vst [vmem:[#allocation2 + $0x1b0] sm:$0xff] %v4453
        %4518 = vst [vmem:[#allocation2 + $0x1b8] sm:$0xff] %v4454
        %4519 = vst [vmem:[#allocation2 + $0x1c0] sm:$0xff] %v4455
        %4520 = vst [vmem:[#allocation2 + $0x1c8] sm:$0xff] %v4456
        %4521 = vst [vmem:[#allocation2 + $0x1d0] sm:$0xff] %v4457
        %4522 = vst [vmem:[#allocation2 + $0x1d8] sm:$0xff] %v4458
        %4523 = vst [vmem:[#allocation2 + $0x1e0] sm:$0xff] %v4459
        %4524 = vst [vmem:[#allocation2 + $0x1e8] sm:$0xff] %v4460
        %4525 = vst [vmem:[#allocation2 + $0x1f0] sm:$0xff] %v4461
        %4526 = vst [vmem:[#allocation2 + $0x1f8] sm:$0xff] %v4462
        // Predicated region
        $region57: #{mlp_forward.1} parent=39 // pred_check
          %p4527 = pneg %p337
        $region58: #{mlp_forward.1} parent=39 // pred_check_branch
          %4529 = sbr.rel (%p4527) target = $region60
        $region59: #{mlp_forward.1} parent=39 // pred_region
          %v4530 = vld [vmem:[#allocation2] sm:$0xff]
          %v4531 = vld [vmem:[#allocation2 + $0x8] sm:$0xff]
          %v4532 = vld [vmem:[#allocation2 + $0x10] sm:$0xff]
          %v4533 = vld [vmem:[#allocation2 + $0x18] sm:$0xff]
          %v4534 = vld [vmem:[#allocation2 + $0x20] sm:$0xff]
          %v4535 = vld [vmem:[#allocation2 + $0x28] sm:$0xff]
          %v4536 = vld [vmem:[#allocation2 + $0x30] sm:$0xff]
          %v4537 = vld [vmem:[#allocation2 + $0x38] sm:$0xff]
          %v4538 = vld [vmem:[#allocation2 + $0x40] sm:$0xff]
          %v4539 = vld [vmem:[#allocation2 + $0x48] sm:$0xff]
          %v4540 = vld [vmem:[#allocation2 + $0x50] sm:$0xff]
          %v4541 = vld [vmem:[#allocation2 + $0x58] sm:$0xff]
          %v4542 = vld [vmem:[#allocation2 + $0x60] sm:$0xff]
          %v4543 = vld [vmem:[#allocation2 + $0x68] sm:$0xff]
          %v4544 = vld [vmem:[#allocation2 + $0x70] sm:$0xff]
          %v4545 = vld [vmem:[#allocation2 + $0x78] sm:$0xff]
          %v4546 = vld [vmem:[#allocation2 + $0x80] sm:$0xff]
          %v4547 = vld [vmem:[#allocation2 + $0x88] sm:$0xff]
          %v4548 = vld [vmem:[#allocation2 + $0x90] sm:$0xff]
          %v4549 = vld [vmem:[#allocation2 + $0x98] sm:$0xff]
          %v4550 = vld [vmem:[#allocation2 + $0xa0] sm:$0xff]
          %v4551 = vld [vmem:[#allocation2 + $0xa8] sm:$0xff]
          %v4552 = vld [vmem:[#allocation2 + $0xb0] sm:$0xff]
          %v4553 = vld [vmem:[#allocation2 + $0xb8] sm:$0xff]
          %v4554 = vld [vmem:[#allocation2 + $0xc0] sm:$0xff]
          %v4555 = vld [vmem:[#allocation2 + $0xc8] sm:$0xff]
          %v4556 = vld [vmem:[#allocation2 + $0xd0] sm:$0xff]
          %v4557 = vld [vmem:[#allocation2 + $0xd8] sm:$0xff]
          %v4558 = vld [vmem:[#allocation2 + $0xe0] sm:$0xff]
          %v4559 = vld [vmem:[#allocation2 + $0xe8] sm:$0xff]
          %v4560 = vld [vmem:[#allocation2 + $0xf0] sm:$0xff]
          %v4561 = vld [vmem:[#allocation2 + $0xf8] sm:$0xff]
          %v4562 = vld [vmem:[#allocation2 + $0x100] sm:$0xff]
          %v4563 = vld [vmem:[#allocation2 + $0x108] sm:$0xff]
          %v4564 = vld [vmem:[#allocation2 + $0x110] sm:$0xff]
          %v4565 = vld [vmem:[#allocation2 + $0x118] sm:$0xff]
          %v4566 = vld [vmem:[#allocation2 + $0x120] sm:$0xff]
          %v4567 = vld [vmem:[#allocation2 + $0x128] sm:$0xff]
          %v4568 = vld [vmem:[#allocation2 + $0x130] sm:$0xff]
          %v4569 = vld [vmem:[#allocation2 + $0x138] sm:$0xff]
          %v4570 = vld [vmem:[#allocation2 + $0x140] sm:$0xff]
          %v4571 = vld [vmem:[#allocation2 + $0x148] sm:$0xff]
          %v4572 = vld [vmem:[#allocation2 + $0x150] sm:$0xff]
          %v4573 = vld [vmem:[#allocation2 + $0x158] sm:$0xff]
          %v4574 = vld [vmem:[#allocation2 + $0x160] sm:$0xff]
          %v4575 = vld [vmem:[#allocation2 + $0x168] sm:$0xff]
          %v4576 = vld [vmem:[#allocation2 + $0x170] sm:$0xff]
          %v4577 = vld [vmem:[#allocation2 + $0x178] sm:$0xff]
          %v4578 = vld [vmem:[#allocation2 + $0x180] sm:$0xff]
          %v4579 = vld [vmem:[#allocation2 + $0x188] sm:$0xff]
          %v4580 = vld [vmem:[#allocation2 + $0x190] sm:$0xff]
          %v4581 = vld [vmem:[#allocation2 + $0x198] sm:$0xff]
          %v4582 = vld [vmem:[#allocation2 + $0x1a0] sm:$0xff]
          %v4583 = vld [vmem:[#allocation2 + $0x1a8] sm:$0xff]
          %v4584 = vld [vmem:[#allocation2 + $0x1b0] sm:$0xff]
          %v4585 = vld [vmem:[#allocation2 + $0x1b8] sm:$0xff]
          %v4586 = vld [vmem:[#allocation2 + $0x1c0] sm:$0xff]
          %v4587 = vld [vmem:[#allocation2 + $0x1c8] sm:$0xff]
          %v4588 = vld [vmem:[#allocation2 + $0x1d0] sm:$0xff]
          %v4589 = vld [vmem:[#allocation2 + $0x1d8] sm:$0xff]
          %v4590 = vld [vmem:[#allocation2 + $0x1e0] sm:$0xff]
          %v4591 = vld [vmem:[#allocation2 + $0x1e8] sm:$0xff]
          %v4592 = vld [vmem:[#allocation2 + $0x1f0] sm:$0xff]
          %v4593 = vld [vmem:[#allocation2 + $0x1f8] sm:$0xff]
          %v4594 = vld [vmem:[%s4] sm:$0x1]
          %v4596 = vlaneseq
          %v4597 = vshrl.u32 %v4596, 7
          %v4598 = vsub.s32 0, %v4597
          %v4599 = vrot.slane %v4594, %v4598
          %v4601 = vadd.f32 %v4530, %v4599
          %v4602 = vadd.f32 %v4531, %v4599
          %v4603 = vadd.f32 %v4532, %v4599
          %v4604 = vadd.f32 %v4533, %v4599
          %v4605 = vadd.f32 %v4534, %v4599
          %v4606 = vadd.f32 %v4535, %v4599
          %v4607 = vadd.f32 %v4536, %v4599
          %v4608 = vadd.f32 %v4537, %v4599
          %v4609 = vadd.f32 %v4538, %v4599
          %v4610 = vadd.f32 %v4539, %v4599
          %v4611 = vadd.f32 %v4540, %v4599
          %v4612 = vadd.f32 %v4541, %v4599
          %v4613 = vadd.f32 %v4542, %v4599
          %v4614 = vadd.f32 %v4543, %v4599
          %v4615 = vadd.f32 %v4544, %v4599
          %v4616 = vadd.f32 %v4545, %v4599
          %v4617 = vadd.f32 %v4546, %v4599
          %v4618 = vadd.f32 %v4547, %v4599
          %v4619 = vadd.f32 %v4548, %v4599
          %v4620 = vadd.f32 %v4549, %v4599
          %v4621 = vadd.f32 %v4550, %v4599
          %v4622 = vadd.f32 %v4551, %v4599
          %v4623 = vadd.f32 %v4552, %v4599
          %v4624 = vadd.f32 %v4553, %v4599
          %v4625 = vadd.f32 %v4554, %v4599
          %v4626 = vadd.f32 %v4555, %v4599
          %v4627 = vadd.f32 %v4556, %v4599
          %v4628 = vadd.f32 %v4557, %v4599
          %v4629 = vadd.f32 %v4558, %v4599
          %v4630 = vadd.f32 %v4559, %v4599
          %v4631 = vadd.f32 %v4560, %v4599
          %v4632 = vadd.f32 %v4561, %v4599
          %v4633 = vadd.f32 %v4562, %v4599
          %v4634 = vadd.f32 %v4563, %v4599
          %v4635 = vadd.f32 %v4564, %v4599
          %v4636 = vadd.f32 %v4565, %v4599
          %v4637 = vadd.f32 %v4566, %v4599
          %v4638 = vadd.f32 %v4567, %v4599
          %v4639 = vadd.f32 %v4568, %v4599
          %v4640 = vadd.f32 %v4569, %v4599
          %v4641 = vadd.f32 %v4570, %v4599
          %v4642 = vadd.f32 %v4571, %v4599
          %v4643 = vadd.f32 %v4572, %v4599
          %v4644 = vadd.f32 %v4573, %v4599
          %v4645 = vadd.f32 %v4574, %v4599
          %v4646 = vadd.f32 %v4575, %v4599
          %v4647 = vadd.f32 %v4576, %v4599
          %v4648 = vadd.f32 %v4577, %v4599
          %v4649 = vadd.f32 %v4578, %v4599
          %v4650 = vadd.f32 %v4579, %v4599
          %v4651 = vadd.f32 %v4580, %v4599
          %v4652 = vadd.f32 %v4581, %v4599
          %v4653 = vadd.f32 %v4582, %v4599
          %v4654 = vadd.f32 %v4583, %v4599
          %v4655 = vadd.f32 %v4584, %v4599
          %v4656 = vadd.f32 %v4585, %v4599
          %v4657 = vadd.f32 %v4586, %v4599
          %v4658 = vadd.f32 %v4587, %v4599
          %v4659 = vadd.f32 %v4588, %v4599
          %v4660 = vadd.f32 %v4589, %v4599
          %v4661 = vadd.f32 %v4590, %v4599
          %v4662 = vadd.f32 %v4591, %v4599
          %v4663 = vadd.f32 %v4592, %v4599
          %v4664 = vadd.f32 %v4593, %v4599
          %4665 = vst [vmem:[%s319] sm:$0xff] %v4601
          %4666 = vst [vmem:[%s319 + $0x8] sm:$0xff] %v4602
          %4667 = vst [vmem:[%s319 + $0x10] sm:$0xff] %v4603
          %4668 = vst [vmem:[%s319 + $0x18] sm:$0xff] %v4604
          %4669 = vst [vmem:[%s319 + $0x20] sm:$0xff] %v4605
          %4670 = vst [vmem:[%s319 + $0x28] sm:$0xff] %v4606
          %4671 = vst [vmem:[%s319 + $0x30] sm:$0xff] %v4607
          %4672 = vst [vmem:[%s319 + $0x38] sm:$0xff] %v4608
          %4673 = vst [vmem:[%s319 + $0x40] sm:$0xff] %v4609
          %4674 = vst [vmem:[%s319 + $0x48] sm:$0xff] %v4610
          %4675 = vst [vmem:[%s319 + $0x50] sm:$0xff] %v4611
          %4676 = vst [vmem:[%s319 + $0x58] sm:$0xff] %v4612
          %4677 = vst [vmem:[%s319 + $0x60] sm:$0xff] %v4613
          %4678 = vst [vmem:[%s319 + $0x68] sm:$0xff] %v4614
          %4679 = vst [vmem:[%s319 + $0x70] sm:$0xff] %v4615
          %4680 = vst [vmem:[%s319 + $0x78] sm:$0xff] %v4616
          %4681 = vst [vmem:[%s319 + $0x80] sm:$0xff] %v4617
          %4682 = vst [vmem:[%s319 + $0x88] sm:$0xff] %v4618
          %4683 = vst [vmem:[%s319 + $0x90] sm:$0xff] %v4619
          %4684 = vst [vmem:[%s319 + $0x98] sm:$0xff] %v4620
          %4685 = vst [vmem:[%s319 + $0xa0] sm:$0xff] %v4621
          %4686 = vst [vmem:[%s319 + $0xa8] sm:$0xff] %v4622
          %4687 = vst [vmem:[%s319 + $0xb0] sm:$0xff] %v4623
          %4688 = vst [vmem:[%s319 + $0xb8] sm:$0xff] %v4624
          %4689 = vst [vmem:[%s319 + $0xc0] sm:$0xff] %v4625
          %4690 = vst [vmem:[%s319 + $0xc8] sm:$0xff] %v4626
          %4691 = vst [vmem:[%s319 + $0xd0] sm:$0xff] %v4627
          %4692 = vst [vmem:[%s319 + $0xd8] sm:$0xff] %v4628
          %4693 = vst [vmem:[%s319 + $0xe0] sm:$0xff] %v4629
          %4694 = vst [vmem:[%s319 + $0xe8] sm:$0xff] %v4630
          %4695 = vst [vmem:[%s319 + $0xf0] sm:$0xff] %v4631
          %4696 = vst [vmem:[%s319 + $0xf8] sm:$0xff] %v4632
          %4697 = vst [vmem:[%s319 + $0x100] sm:$0xff] %v4633
          %4698 = vst [vmem:[%s319 + $0x108] sm:$0xff] %v4634
          %4699 = vst [vmem:[%s319 + $0x110] sm:$0xff] %v4635
          %4700 = vst [vmem:[%s319 + $0x118] sm:$0xff] %v4636
          %4701 = vst [vmem:[%s319 + $0x120] sm:$0xff] %v4637
          %4702 = vst [vmem:[%s319 + $0x128] sm:$0xff] %v4638
          %4703 = vst [vmem:[%s319 + $0x130] sm:$0xff] %v4639
          %4704 = vst [vmem:[%s319 + $0x138] sm:$0xff] %v4640
          %4705 = vst [vmem:[%s319 + $0x140] sm:$0xff] %v4641
          %4706 = vst [vmem:[%s319 + $0x148] sm:$0xff] %v4642
          %4707 = vst [vmem:[%s319 + $0x150] sm:$0xff] %v4643
          %4708 = vst [vmem:[%s319 + $0x158] sm:$0xff] %v4644
          %4709 = vst [vmem:[%s319 + $0x160] sm:$0xff] %v4645
          %4710 = vst [vmem:[%s319 + $0x168] sm:$0xff] %v4646
          %4711 = vst [vmem:[%s319 + $0x170] sm:$0xff] %v4647
          %4712 = vst [vmem:[%s319 + $0x178] sm:$0xff] %v4648
          %4713 = vst [vmem:[%s319 + $0x180] sm:$0xff] %v4649
          %4714 = vst [vmem:[%s319 + $0x188] sm:$0xff] %v4650
          %4715 = vst [vmem:[%s319 + $0x190] sm:$0xff] %v4651
          %4716 = vst [vmem:[%s319 + $0x198] sm:$0xff] %v4652
          %4717 = vst [vmem:[%s319 + $0x1a0] sm:$0xff] %v4653
          %4718 = vst [vmem:[%s319 + $0x1a8] sm:$0xff] %v4654
          %4719 = vst [vmem:[%s319 + $0x1b0] sm:$0xff] %v4655
          %4720 = vst [vmem:[%s319 + $0x1b8] sm:$0xff] %v4656
          %4721 = vst [vmem:[%s319 + $0x1c0] sm:$0xff] %v4657
          %4722 = vst [vmem:[%s319 + $0x1c8] sm:$0xff] %v4658
          %4723 = vst [vmem:[%s319 + $0x1d0] sm:$0xff] %v4659
          %4724 = vst [vmem:[%s319 + $0x1d8] sm:$0xff] %v4660
          %4725 = vst [vmem:[%s319 + $0x1e0] sm:$0xff] %v4661
          %4726 = vst [vmem:[%s319 + $0x1e8] sm:$0xff] %v4662
          %4727 = vst [vmem:[%s319 + $0x1f0] sm:$0xff] %v4663
          %4728 = vst [vmem:[%s319 + $0x1f8] sm:$0xff] %v4664
        $region60: #{mlp_forward.1} parent=39 // pred_fallthru
          _
        %s4729 = sand.u32 %s168, 1
        %s4730 = scalar_lea.sflag [#allocation5], %s4729
        %s4731 = sand.u32 %s168, 1
        %s4732 = smul.addr %s4731, 512
        %s4733 = scalar_lea.vmem [#allocation9], %s4732
        // Predicated region
        $region61: #{mlp_forward.1} parent=39 // pred_check
          %p4734 = pneg %p178
        $region62: #{mlp_forward.1} parent=39 // pred_check_branch
          %4736 = sbr.rel (%p4734) target = $region64
        $region63: #{mlp_forward.1} parent=39 // pred_region
          %s4737 = smul.u32 64, %s27
          %s4738 = ssub.s32 80, %s4737
          %p4739 = scmp.lt.s32.totalorder %s4738, 64
          %s4740 = scalar_select %p4739, %s4738, 64
          %s4741 = smul.u32 128, %s4740
          %s4743 = ssub.s32 8192, %s4741
          %4744 = vsyncadd %s4730, %s4743
          %p4745 = scmp.ne.s32.totalorder 0, %s4741
          %s4746 = smul.addr %s4737, 128
          %s4747 = scalar_lea.hbm %s5, %s4746
          %s4748 = smul.u32 8, %s4740
          %s4749 = sshll.u32 %s4733, 4
          %s4750 = int_to_ptr.vmem [resolvable:$true] %s4749
          %s4751 = sshll.u32 %s4748, 4
          %4755 = dma.vmem_to_hbm [thread:$0]  (%p4745), %s4750, %s4751, %s4747, %s4730, 128, 128, 8
        $region64: #{mlp_forward.1} parent=39 // pred_fallthru
          _
      $region40: #{mlp_forward.1} parent=5 // pred_fallthru
        _
      %p4756 = scmp.le.s32.totalorder 2, %s18
      // Predicated region
      $region65: #{mlp_forward.1} parent=5 // pred_check
        %p4757 = pneg %p4756
      $region66: #{mlp_forward.1} parent=5 // pred_check_branch
        %4759 = sbr.rel (%p4757) target = $region68
      $region67: #{mlp_forward.1} parent=5 // pred_region
        %s4760 = ssub.s32 %s18, 2
        // Predicated region
        $region69: #{mlp_forward.1} parent=67 // pred_check
          %p4761 = pneg %p184
        $region70: #{mlp_forward.1} parent=67 // pred_check_branch
          %4763 = sbr.rel (%p4761) target = $region72
        $region71: #{mlp_forward.1} parent=67 // pred_region
          %s4764 = sand.u32 %s169, 1
          %s4765 = scalar_lea.sflag [#allocation5], %s4764
          %s4766 = sand.u32 %s169, 1
          %s4767 = smul.addr %s4766, 512
          %s4768 = scalar_lea.vmem [#allocation9], %s4767
          %4769 = dma.done %s4765, 8192
        $region72: #{mlp_forward.1} parent=67 // pred_fallthru
          _
      $region68: #{mlp_forward.1} parent=5 // pred_fallthru
        _
    $region6: #{mlp_forward.1} parent=1 // loop_footer
      %s22 = sadd.s32 1, %s18
    $region7: #{mlp_forward.1} parent=1 // loop_footer_branch
      %17 = sbr.rel target = $region3
    $region8: #{mlp_forward.1} parent=1 // loop_exit
      _
    %4770 = vsyncpa [#allocation4], 1
    %s4771 = scalar_lea.sflag [#allocation4], 1
    %4772 = vsyncpa %s4771, 1
    %4773 = vsyncpa [#allocation7], 1
    %4774 = vsyncpa [#allocation5], 1
    %s4775 = scalar_lea.sflag [#allocation5], 1
    %4776 = vsyncpa %s4775, 1

</llo_original>
